<compile_context>
chip_gen: v7x
topology: tpu7x:2x2x1
jax: 0.10.0
libtpu: 0.0.40
codegen_flags: <defaults>
</compile_context>

<pallas_src>
import functools

import jax
import jax.numpy as jnp
from jax import lax
from jax.experimental import pallas as pl
from jax.experimental.pallas import tpu as pltpu


def _block_kernel(x_ref, ln_g_ref, ln_b_ref, wc_ref, wf_ref, bf_ref,
                  wg_ref, bg_ref, o_ref, pad_ref, *, H, W):
  # x_ref: (1, C, HW) channel-major tile for one batch element (HW on lanes).
  x = x_ref[0].astype(jnp.float32)                        # (C, HW)
  C, HW = x.shape

  # ---- LayerNorm over the channel (sublane) axis ----------------------------
  mu = jnp.mean(x, axis=0, keepdims=True)                 # (1, HW)
  var = jnp.mean((x - mu) ** 2, axis=0, keepdims=True)
  xn = (x - mu) * lax.rsqrt(var + 1e-5)
  xn = xn * ln_g_ref[...] + ln_b_ref[...]                 # (C, 1) broadcasts

  # ---- transpose xn to spatial-major via an identity matmul (MXU, exact) ----
  xn_bf = xn.astype(jnp.bfloat16)
  eye = (lax.broadcasted_iota(jnp.int32, (C, C), 0) ==
         lax.broadcasted_iota(jnp.int32, (C, C), 1)).astype(jnp.bfloat16)
  xn_sm = lax.dot_general(xn_bf, eye, (((0,), (0,)), ((), ())),
                          preferred_element_type=jnp.float32)      # (HW, C)
  xn_sm = xn_sm.astype(jnp.bfloat16).reshape(H, W, C)

  # ---- padded activation (bf16) for the dilated conv ------------------------
  # Halo is re-zeroed every step so it stays correct under megacore sharding.
  zrow = jnp.zeros((2, W + 4, C), jnp.bfloat16)
  zcol = jnp.zeros((H, 2, C), jnp.bfloat16)
  pad_ref[0:2, :, :] = zrow
  pad_ref[H + 2:H + 4, :, :] = zrow
  pad_ref[2:2 + H, 0:2, :] = zcol
  pad_ref[2:2 + H, W + 2:W + 4, :] = zcol
  pad_ref[2:2 + H, 2:2 + W, :] = xn_sm

  # ---- dilated 3x3 conv (dilation=2, pad=2): im2col + ONE N-T matmul --------
  taps = [pad_ref[2 * kh:2 * kh + H, 2 * kw:2 * kw + W, :]
          for kh in range(3) for kw in range(3)]           # 9 x (H, W, C) bf16
  patches = jnp.concatenate(taps, axis=-1).reshape(HW, 9 * C)
  # conv (C, HW) = Wc (C, 9C) @ patches^T  -> channel-major, N = HW lane-dense.
  conv = lax.dot_general(wc_ref[...], patches, (((1,), (1,)), ((), ())),
                         preferred_element_type=jnp.float32)       # (C, HW)

  # ---- merged Linear f: (6C, C) @ (C, HW); conv bias folded into bf ---------
  y = jnp.dot(wf_ref[...], conv.astype(jnp.bfloat16),
              preferred_element_type=jnp.float32) + bf_ref[...]    # (6C, HW)
  y1 = y[:3 * C]
  y2 = y[3 * C:]
  gated = jax.nn.gelu(y1, approximate=True) * y2                   # (3C, HW)

  # ---- Linear g with layer-scale gamma folded into Wg / bg ------------------
  z = jnp.dot(wg_ref[...], gated.astype(jnp.bfloat16),
              preferred_element_type=jnp.float32) + bg_ref[...]    # (C, HW)

  # ---- residual: out = inp * (gamma * g(...)) + inp  (mode='*') -------------
  o_ref[0] = (x * z + x).astype(o_ref.dtype)


def block_forward(x_nchw, params):
  """x_nchw: (B, C, H, W) float32 -> (B, C, H, W) float32."""
  B, C, H, W = x_nchw.shape
  HW = H * W
  f32, bf16 = jnp.float32, jnp.bfloat16

  # NCHW -> (B, C, H*W) is a free, contiguity-preserving reshape (no HBM
  # transpose round trip).
  x_flat = x_nchw.reshape(B, C, HW)

  # ---- derived / fused kernel-side parameters (pure-JAX prep) ---------------
  # conv weight OIHW -> (C, 9C) with columns ordered (kh, kw, cin).
  wc_mat = jnp.transpose(params["conv_w"], (0, 2, 3, 1)).reshape(C, 9 * C)
  wf_t = params["wf"].T                                    # (6C, C) merged f
  bf_fold = params["bf"] + params["conv_b"] @ params["wf"]  # fold conv bias
  wg_t = (params["wg"] * params["gamma"][None, :]).T        # (C, 3C), gamma fold
  bg_fold = params["bg"] * params["gamma"]

  kernel = pl.pallas_call(
      functools.partial(_block_kernel, H=H, W=W),
      out_shape=jax.ShapeDtypeStruct((B, C, HW), jnp.float32),
      grid_spec=pltpu.PrefetchScalarGridSpec(
          num_scalar_prefetch=0,
          grid=(B,),
          in_specs=[
              pl.BlockSpec((1, C, HW), lambda b: (b, 0, 0)),     # x (chan-major)
              pl.BlockSpec((C, 1), lambda b: (0, 0)),            # ln gamma
              pl.BlockSpec((C, 1), lambda b: (0, 0)),            # ln beta
              pl.BlockSpec((C, 9 * C), lambda b: (0, 0)),        # conv (im2col)
              pl.BlockSpec((6 * C, C), lambda b: (0, 0)),        # Wf^T (merged)
              pl.BlockSpec((6 * C, 1), lambda b: (0, 0)),        # bf (+conv bias)
              pl.BlockSpec((C, 3 * C), lambda b: (0, 0)),        # Wg^T * gamma
              pl.BlockSpec((C, 1), lambda b: (0, 0)),            # bg * gamma
          ],
          out_specs=pl.BlockSpec((1, C, HW), lambda b: (b, 0, 0)),
          scratch_shapes=[pltpu.VMEM((H + 4, W + 4, C), jnp.bfloat16)],
      ),
      compiler_params=pltpu.CompilerParams(
          dimension_semantics=("parallel",)),
      cost_estimate=pl.CostEstimate(
          flops=38 * B * HW * C * C,
          transcendentals=3 * B * HW * C,
          bytes_accessed=8 * B * C * HW + 36 * C * C + 36 * C),
  )

  out_flat = kernel(
      x_flat,
      params["ln_g"].reshape(C, 1).astype(f32),
      params["ln_b"].reshape(C, 1).astype(f32),
      wc_mat.astype(bf16),
      wf_t.astype(bf16),
      bf_fold.reshape(6 * C, 1).astype(f32),
      wg_t.astype(bf16),
      bg_fold.reshape(C, 1).astype(f32),
  )
  return out_flat.reshape(B, C, H, W)


def reference_forward(x_nchw, params):
  """Pure-JAX f32 reference mirroring the PyTorch Block (mode='*')."""
  C = x_nchw.shape[1]
  x = jnp.transpose(x_nchw, (0, 2, 3, 1))
  inp = x
  mu = x.mean(-1, keepdims=True)
  var = ((x - mu) ** 2).mean(-1, keepdims=True)
  xn = (x - mu) / jnp.sqrt(var + 1e-5) * params["ln_g"] + params["ln_b"]
  wc_hwio = jnp.transpose(params["conv_w"], (2, 3, 1, 0))
  y = lax.conv_general_dilated(
      xn, wc_hwio, window_strides=(1, 1),
      padding=((2, 2), (2, 2)), rhs_dilation=(2, 2),
      dimension_numbers=("NHWC", "HWIO", "NHWC")) + params["conv_b"]
  y = y @ params["wf"] + params["bf"]
  x1, x2 = y[..., :3 * C], y[..., 3 * C:]
  z = jax.nn.gelu(x1, approximate=False) * x2
  z = z @ params["wg"] + params["bg"]
  out = inp * (params["gamma"] * z)
  return x_nchw + jnp.transpose(out, (0, 3, 1, 2))


def make_params(key, dim, layer_scale_init_value=1e-6):
  ks = jax.random.split(key, 6)
  return {
      "ln_g": jnp.ones((dim,), jnp.float32),
      "ln_b": jnp.zeros((dim,), jnp.float32),
      "conv_w": 0.1 * jax.random.normal(ks[0], (dim, dim, 3, 3), jnp.float32),
      "conv_b": 0.1 * jax.random.normal(ks[1], (dim,), jnp.float32),
      "wf": 0.1 * jax.random.normal(ks[2], (dim, 6 * dim), jnp.float32),
      "bf": 0.1 * jax.random.normal(ks[3], (6 * dim,), jnp.float32),
      "wg": 0.1 * jax.random.normal(ks[4], (3 * dim, dim), jnp.float32),
      "bg": 0.1 * jax.random.normal(ks[5], (dim,), jnp.float32),
      "gamma": jnp.full((dim,), layer_scale_init_value, jnp.float32),
  }


if __name__ == "__main__":
  B, dim, H, W = 2, 32, 16, 16
  key = jax.random.PRNGKey(0)
  kx, kp = jax.random.split(key)
  x = jax.random.normal(kx, (B, dim, H, W), jnp.float32)

  # (1) module-default layer scale (1e-6): tight elementwise check.
  params = make_params(kp, dim)
  out = jax.block_until_ready(block_forward(x, params))
  ref = reference_forward(x, params)
  assert out.shape == (B, dim, H, W)
  assert jnp.allclose(out, ref, rtol=1e-3, atol=1e-3)

  # (2) layer scale = 1.0 so the conv/MLP path dominates the output; loose
  #     norm-relative check (bf16 matmul inputs + tanh GELU vs exact-f32 ref).
  params_big = make_params(kp, dim, layer_scale_init_value=1.0)
  out2 = jax.block_until_ready(block_forward(x, params_big))
  ref2 = reference_forward(x, params_big)
  rel = jnp.linalg.norm(out2 - ref2) / jnp.linalg.norm(ref2)
  assert float(rel) < 3e-2, float(rel)

  print("KERNEL_OK")
</pallas_src>

<mosaic_0001>
module attributes {stable_mosaic.version = 11 : i64} {
  func.func @_block_kernel(%arg0: i32, %arg1: memref<1x32x256xf32, #tpu.memory_space<vmem>>, %arg2: memref<32x1xf32, #tpu.memory_space<vmem>>, %arg3: memref<32x1xf32, #tpu.memory_space<vmem>>, %arg4: memref<32x288xbf16, #tpu.memory_space<vmem>>, %arg5: memref<192x32xbf16, #tpu.memory_space<vmem>>, %arg6: memref<192x1xf32, #tpu.memory_space<vmem>>, %arg7: memref<32x96xbf16, #tpu.memory_space<vmem>>, %arg8: memref<32x1xf32, #tpu.memory_space<vmem>>, %arg9: memref<1x32x256xf32, #tpu.memory_space<vmem>>, %arg10: memref<20x20x32xbf16, #tpu.memory_space<vmem>>) attributes {dimension_semantics = [#tpu.dimension_semantics<parallel>], iteration_bounds = array<i64: 2>, scalar_prefetch = 0 : i64, scratch_operands = 1 : i64, tpu.core_type = #tpu.core_type<tc>, window_params = [{transform_indices = @transform_0, window_bounds = array<i64: 1, 32, 256>}, {pipeline_mode = #tpu.pipeline_mode<synchronous>, transform_indices = @transform_1, window_bounds = array<i64: 32, 1>}, {pipeline_mode = #tpu.pipeline_mode<synchronous>, transform_indices = @transform_2, window_bounds = array<i64: 32, 1>}, {pipeline_mode = #tpu.pipeline_mode<synchronous>, transform_indices = @transform_3, window_bounds = array<i64: 32, 288>}, {pipeline_mode = #tpu.pipeline_mode<synchronous>, transform_indices = @transform_4, window_bounds = array<i64: 192, 32>}, {pipeline_mode = #tpu.pipeline_mode<synchronous>, transform_indices = @transform_5, window_bounds = array<i64: 192, 1>}, {pipeline_mode = #tpu.pipeline_mode<synchronous>, transform_indices = @transform_6, window_bounds = array<i64: 32, 96>}, {pipeline_mode = #tpu.pipeline_mode<synchronous>, transform_indices = @transform_7, window_bounds = array<i64: 32, 1>}, {transform_indices = @transform_8, window_bounds = array<i64: 1, 32, 256>}]} {
    %c0 = arith.constant 0 : index
    %c0_0 = arith.constant 0 : index
    %c0_1 = arith.constant 0 : index
    %0 = vector.load %arg1[%c0, %c0_0, %c0_1] : memref<1x32x256xf32, #tpu.memory_space<vmem>>, vector<1x32x256xf32>
    %1 = vector.shape_cast %0 : vector<1x32x256xf32> to vector<32x256xf32>
    %cst = arith.constant dense<0.000000e+00> : vector<256xf32>
    %2 = vector.multi_reduction <add>, %1, %cst [0] : vector<32x256xf32> to vector<256xf32>
    %3 = vector.shape_cast %2 : vector<256xf32> to vector<1x256xf32>
    %cst_2 = arith.constant 3.200000e+01 : f32
    %4 = vector.broadcast %cst_2 : f32 to vector<1x256xf32>
    %5 = arith.divf %3, %4 : vector<1x256xf32>
    %6 = vector.broadcast %5 : vector<1x256xf32> to vector<32x256xf32>
    %7 = arith.subf %1, %6 : vector<32x256xf32>
    %8 = arith.mulf %7, %7 : vector<32x256xf32>
    %cst_3 = arith.constant dense<0.000000e+00> : vector<256xf32>
    %9 = vector.multi_reduction <add>, %8, %cst_3 [0] : vector<32x256xf32> to vector<256xf32>
    %10 = vector.shape_cast %9 : vector<256xf32> to vector<1x256xf32>
    %cst_4 = arith.constant 3.200000e+01 : f32
    %11 = vector.broadcast %cst_4 : f32 to vector<1x256xf32>
    %12 = arith.divf %10, %11 : vector<1x256xf32>
    %13 = vector.broadcast %5 : vector<1x256xf32> to vector<32x256xf32>
    %14 = arith.subf %1, %13 : vector<32x256xf32>
    %cst_5 = arith.constant 9.99999974E-6 : f32
    %15 = vector.broadcast %cst_5 : f32 to vector<1x256xf32>
    %16 = arith.addf %12, %15 : vector<1x256xf32>
    %17 = math.rsqrt %16 : vector<1x256xf32>
    %18 = vector.broadcast %17 : vector<1x256xf32> to vector<32x256xf32>
    %19 = arith.mulf %14, %18 : vector<32x256xf32>
    %c0_6 = arith.constant 0 : index
    %c0_7 = arith.constant 0 : index
    %20 = vector.load %arg2[%c0_6, %c0_7] : memref<32x1xf32, #tpu.memory_space<vmem>>, vector<32x1xf32>
    %21 = vector.broadcast %20 : vector<32x1xf32> to vector<32x256xf32>
    %22 = arith.mulf %19, %21 : vector<32x256xf32>
    %c0_8 = arith.constant 0 : index
    %c0_9 = arith.constant 0 : index
    %23 = vector.load %arg3[%c0_8, %c0_9] : memref<32x1xf32, #tpu.memory_space<vmem>>, vector<32x1xf32>
    %24 = vector.broadcast %23 : vector<32x1xf32> to vector<32x256xf32>
    %25 = arith.addf %22, %24 : vector<32x256xf32>
    %26 = arith.truncf %25 : vector<32x256xf32> to vector<32x256xbf16>
    %27 = tpu.iota {dimensions = array<i32: 0>} : vector<32x32xi32>
    %28 = tpu.iota {dimensions = array<i32: 1>} : vector<32x32xi32>
    %29 = arith.cmpi eq, %27, %28 : vector<32x32xi32>
    %30 = arith.extui %29 : vector<32x32xi1> to vector<32x32xi32>
    %31 = arith.sitofp %30 : vector<32x32xi32> to vector<32x32xf32>
    %32 = arith.truncf %31 : vector<32x32xf32> to vector<32x32xbf16>
    %cst_10 = arith.constant dense<0.000000e+00> : vector<256x32xf32>
    %33 = tpu.matmul %26, %32, %cst_10 {dimension_numbers = #tpu.dot_dimension_numbers<[0], [0], [1], [1], [0, 1, 1, 1], [], []>} : vector<32x256xbf16>, vector<32x32xbf16>, vector<256x32xf32> -> vector<256x32xf32>
    %34 = arith.truncf %33 : vector<256x32xf32> to vector<256x32xbf16>
    %35 = vector.shape_cast %34 : vector<256x32xbf16> to vector<16x16x32xbf16>
    %cst_11 = arith.constant 0.000000e+00 : bf16
    %36 = vector.broadcast %cst_11 : bf16 to vector<2x20x32xbf16>
    %cst_12 = arith.constant 0.000000e+00 : bf16
    %37 = vector.broadcast %cst_12 : bf16 to vector<16x2x32xbf16>
    %c0_13 = arith.constant 0 : index
    %c0_14 = arith.constant 0 : index
    %c0_15 = arith.constant 0 : index
    %38 = vector.load %arg10[%c0_13, %c0_14, %c0_15] : memref<20x20x32xbf16, #tpu.memory_space<vmem>>, vector<2x20x32xbf16>
    tpu.vector_store %arg10[%c0_13, %c0_14, %c0_15], %36 {strides = array<i32>} : memref<20x20x32xbf16, #tpu.memory_space<vmem>>, vector<2x20x32xbf16>,
    %c18 = arith.constant 18 : index
    %c0_16 = arith.constant 0 : index
    %c0_17 = arith.constant 0 : index
    %39 = vector.load %arg10[%c18, %c0_16, %c0_17] : memref<20x20x32xbf16, #tpu.memory_space<vmem>>, vector<2x20x32xbf16>
    tpu.vector_store %arg10[%c18, %c0_16, %c0_17], %36 {strides = array<i32>} : memref<20x20x32xbf16, #tpu.memory_space<vmem>>, vector<2x20x32xbf16>,
    %c2 = arith.constant 2 : index
    %c0_18 = arith.constant 0 : index
    %c0_19 = arith.constant 0 : index
    %40 = vector.load %arg10[%c2, %c0_18, %c0_19] : memref<20x20x32xbf16, #tpu.memory_space<vmem>>, vector<16x2x32xbf16>
    tpu.vector_store %arg10[%c2, %c0_18, %c0_19], %37 {strides = array<i32>} : memref<20x20x32xbf16, #tpu.memory_space<vmem>>, vector<16x2x32xbf16>,
    %c2_20 = arith.constant 2 : index
    %c18_21 = arith.constant 18 : index
    %c0_22 = arith.constant 0 : index
    %41 = vector.load %arg10[%c2_20, %c18_21, %c0_22] : memref<20x20x32xbf16, #tpu.memory_space<vmem>>, vector<16x2x32xbf16>
    tpu.vector_store %arg10[%c2_20, %c18_21, %c0_22], %37 {strides = array<i32>} : memref<20x20x32xbf16, #tpu.memory_space<vmem>>, vector<16x2x32xbf16>,
    %c2_23 = arith.constant 2 : index
    %c2_24 = arith.constant 2 : index
    %c0_25 = arith.constant 0 : index
    %42 = vector.load %arg10[%c2_23, %c2_24, %c0_25] : memref<20x20x32xbf16, #tpu.memory_space<vmem>>, vector<16x16x32xbf16>
    tpu.vector_store %arg10[%c2_23, %c2_24, %c0_25], %35 {strides = array<i32>} : memref<20x20x32xbf16, #tpu.memory_space<vmem>>, vector<16x16x32xbf16>,
    %c0_26 = arith.constant 0 : index
    %c0_27 = arith.constant 0 : index
    %c0_28 = arith.constant 0 : index
    %43 = vector.load %arg10[%c0_26, %c0_27, %c0_28] : memref<20x20x32xbf16, #tpu.memory_space<vmem>>, vector<16x16x32xbf16>
    %c0_29 = arith.constant 0 : index
    %c2_30 = arith.constant 2 : index
    %c0_31 = arith.constant 0 : index
    %44 = vector.load %arg10[%c0_29, %c2_30, %c0_31] : memref<20x20x32xbf16, #tpu.memory_space<vmem>>, vector<16x16x32xbf16>
    %c0_32 = arith.constant 0 : index
    %c4 = arith.constant 4 : index
    %c0_33 = arith.constant 0 : index
    %45 = vector.load %arg10[%c0_32, %c4, %c0_33] : memref<20x20x32xbf16, #tpu.memory_space<vmem>>, vector<16x16x32xbf16>
    %c2_34 = arith.constant 2 : index
    %c0_35 = arith.constant 0 : index
    %c0_36 = arith.constant 0 : index
    %46 = vector.load %arg10[%c2_34, %c0_35, %c0_36] : memref<20x20x32xbf16, #tpu.memory_space<vmem>>, vector<16x16x32xbf16>
    %c2_37 = arith.constant 2 : index
    %c2_38 = arith.constant 2 : index
    %c0_39 = arith.constant 0 : index
    %47 = vector.load %arg10[%c2_37, %c2_38, %c0_39] : memref<20x20x32xbf16, #tpu.memory_space<vmem>>, vector<16x16x32xbf16>
    %c2_40 = arith.constant 2 : index
    %c4_41 = arith.constant 4 : index
    %c0_42 = arith.constant 0 : index
    %48 = vector.load %arg10[%c2_40, %c4_41, %c0_42] : memref<20x20x32xbf16, #tpu.memory_space<vmem>>, vector<16x16x32xbf16>
    %c4_43 = arith.constant 4 : index
    %c0_44 = arith.constant 0 : index
    %c0_45 = arith.constant 0 : index
    %49 = vector.load %arg10[%c4_43, %c0_44, %c0_45] : memref<20x20x32xbf16, #tpu.memory_space<vmem>>, vector<16x16x32xbf16>
    %c4_46 = arith.constant 4 : index
    %c2_47 = arith.constant 2 : index
    %c0_48 = arith.constant 0 : index
    %50 = vector.load %arg10[%c4_46, %c2_47, %c0_48] : memref<20x20x32xbf16, #tpu.memory_space<vmem>>, vector<16x16x32xbf16>
    %c4_49 = arith.constant 4 : index
    %c4_50 = arith.constant 4 : index
    %c0_51 = arith.constant 0 : index
    %51 = vector.load %arg10[%c4_49, %c4_50, %c0_51] : memref<20x20x32xbf16, #tpu.memory_space<vmem>>, vector<16x16x32xbf16>
    %52 = tpu.concatenate %43, %44, %45, %46, %47, %48, %49, %50, %51 in 2 : vector<16x16x32xbf16>, vector<16x16x32xbf16>, vector<16x16x32xbf16>, vector<16x16x32xbf16>, vector<16x16x32xbf16>, vector<16x16x32xbf16>, vector<16x16x32xbf16>, vector<16x16x32xbf16>, vector<16x16x32xbf16> -> vector<16x16x288xbf16>
    %53 = vector.shape_cast %52 : vector<16x16x288xbf16> to vector<256x288xbf16>
    %c0_52 = arith.constant 0 : index
    %c0_53 = arith.constant 0 : index
    %54 = vector.load %arg4[%c0_52, %c0_53] : memref<32x288xbf16, #tpu.memory_space<vmem>>, vector<32x288xbf16>
    %cst_54 = arith.constant dense<0.000000e+00> : vector<32x256xf32>
    %55 = tpu.matmul %54, %53, %cst_54 {dimension_numbers = #tpu.dot_dimension_numbers<[1], [1], [0], [0], [0, 0, 1, 0], [], []>} : vector<32x288xbf16>, vector<256x288xbf16>, vector<32x256xf32> -> vector<32x256xf32>
    %c0_55 = arith.constant 0 : index
    %c0_56 = arith.constant 0 : index
    %56 = vector.load %arg5[%c0_55, %c0_56] : memref<192x32xbf16, #tpu.memory_space<vmem>>, vector<192x32xbf16>
    %57 = arith.truncf %55 : vector<32x256xf32> to vector<32x256xbf16>
    %cst_57 = arith.constant dense<0.000000e+00> : vector<192x256xf32>
    %58 = tpu.matmul %56, %57, %cst_57 {dimension_numbers = #tpu.dot_dimension_numbers<[1], [0], [0], [1], [0, 0, 1, 1], [], []>} : vector<192x32xbf16>, vector<32x256xbf16>, vector<192x256xf32> -> vector<192x256xf32>
    %c0_58 = arith.constant 0 : index
    %c0_59 = arith.constant 0 : index
    %59 = vector.load %arg6[%c0_58, %c0_59] : memref<192x1xf32, #tpu.memory_space<vmem>>, vector<192x1xf32>
    %60 = vector.broadcast %59 : vector<192x1xf32> to vector<192x256xf32>
    %61 = arith.addf %58, %60 : vector<192x256xf32>
    %62 = vector.extract_strided_slice %61 {offsets = [0, 0], sizes = [96, 256], strides = [1, 1]} : vector<192x256xf32> to vector<96x256xf32>
    %63 = vector.extract_strided_slice %61 {offsets = [96, 0], sizes = [96, 256], strides = [1, 1]} : vector<192x256xf32> to vector<96x256xf32>
    %64 = arith.mulf %62, %62 : vector<96x256xf32>
    %65 = arith.mulf %62, %64 : vector<96x256xf32>
    %cst_60 = arith.constant 4.471500e-02 : f32
    %66 = vector.broadcast %cst_60 : f32 to vector<96x256xf32>
    %67 = arith.mulf %66, %65 : vector<96x256xf32>
    %68 = arith.addf %62, %67 : vector<96x256xf32>
    %cst_61 = arith.constant 0.797884583 : f32
    %69 = vector.broadcast %cst_61 : f32 to vector<96x256xf32>
    %70 = arith.mulf %69, %68 : vector<96x256xf32>
    %71 = math.tanh %70 : vector<96x256xf32>
    %cst_62 = arith.constant 1.000000e+00 : f32
    %72 = vector.broadcast %cst_62 : f32 to vector<96x256xf32>
    %73 = arith.addf %72, %71 : vector<96x256xf32>
    %cst_63 = arith.constant 5.000000e-01 : f32
    %74 = vector.broadcast %cst_63 : f32 to vector<96x256xf32>
    %75 = arith.mulf %74, %73 : vector<96x256xf32>
    %76 = arith.mulf %62, %75 : vector<96x256xf32>
    %77 = arith.mulf %76, %63 : vector<96x256xf32>
    %c0_64 = arith.constant 0 : index
    %c0_65 = arith.constant 0 : index
    %78 = vector.load %arg7[%c0_64, %c0_65] : memref<32x96xbf16, #tpu.memory_space<vmem>>, vector<32x96xbf16>
    %79 = arith.truncf %77 : vector<96x256xf32> to vector<96x256xbf16>
    %cst_66 = arith.constant dense<0.000000e+00> : vector<32x256xf32>
    %80 = tpu.matmul %78, %79, %cst_66 {dimension_numbers = #tpu.dot_dimension_numbers<[1], [0], [0], [1], [0, 0, 1, 1], [], []>} : vector<32x96xbf16>, vector<96x256xbf16>, vector<32x256xf32> -> vector<32x256xf32>
    %c0_67 = arith.constant 0 : index
    %c0_68 = arith.constant 0 : index
    %81 = vector.load %arg8[%c0_67, %c0_68] : memref<32x1xf32, #tpu.memory_space<vmem>>, vector<32x1xf32>
    %82 = vector.broadcast %81 : vector<32x1xf32> to vector<32x256xf32>
    %83 = arith.addf %80, %82 : vector<32x256xf32>
    %84 = arith.mulf %1, %83 : vector<32x256xf32>
    %85 = arith.addf %84, %1 : vector<32x256xf32>
    %c0_69 = arith.constant 0 : index
    %c0_70 = arith.constant 0 : index
    %c0_71 = arith.constant 0 : index
    %86 = vector.load %arg9[%c0_69, %c0_70, %c0_71] : memref<1x32x256xf32, #tpu.memory_space<vmem>>, vector<1x32x256xf32>
    %87 = vector.shape_cast %86 : vector<1x32x256xf32> to vector<32x256xf32>
    %88 = vector.shape_cast %85 : vector<32x256xf32> to vector<1x32x256xf32>
    tpu.vector_store %arg9[%c0_69, %c0_70, %c0_71], %88 {strides = array<i32>} : memref<1x32x256xf32, #tpu.memory_space<vmem>>, vector<1x32x256xf32>,
    return
  }
  func.func @transform_0(%arg0: i32) -> (i32, i32, i32) {
    %c0_i32 = arith.constant 0 : i32
    %c0_i32_0 = arith.constant 0 : i32
    %c0_i32_1 = arith.constant 0 : i32
    return %arg0, %c0_i32, %c0_i32_0 : i32, i32, i32
  }
  func.func @transform_1(%arg0: i32) -> (i32, i32) {
    %c0_i32 = arith.constant 0 : i32
    %c0_i32_0 = arith.constant 0 : i32
    %c0_i32_1 = arith.constant 0 : i32
    return %c0_i32, %c0_i32_0 : i32, i32
  }
  func.func @transform_2(%arg0: i32) -> (i32, i32) {
    %c0_i32 = arith.constant 0 : i32
    %c0_i32_0 = arith.constant 0 : i32
    %c0_i32_1 = arith.constant 0 : i32
    return %c0_i32, %c0_i32_0 : i32, i32
  }
  func.func @transform_3(%arg0: i32) -> (i32, i32) {
    %c0_i32 = arith.constant 0 : i32
    %c0_i32_0 = arith.constant 0 : i32
    %c0_i32_1 = arith.constant 0 : i32
    return %c0_i32, %c0_i32_0 : i32, i32
  }
  func.func @transform_4(%arg0: i32) -> (i32, i32) {
    %c0_i32 = arith.constant 0 : i32
    %c0_i32_0 = arith.constant 0 : i32
    %c0_i32_1 = arith.constant 0 : i32
    return %c0_i32, %c0_i32_0 : i32, i32
  }
  func.func @transform_5(%arg0: i32) -> (i32, i32) {
    %c0_i32 = arith.constant 0 : i32
    %c0_i32_0 = arith.constant 0 : i32
    %c0_i32_1 = arith.constant 0 : i32
    return %c0_i32, %c0_i32_0 : i32, i32
  }
  func.func @transform_6(%arg0: i32) -> (i32, i32) {
    %c0_i32 = arith.constant 0 : i32
    %c0_i32_0 = arith.constant 0 : i32
    %c0_i32_1 = arith.constant 0 : i32
    return %c0_i32, %c0_i32_0 : i32, i32
  }
  func.func @transform_7(%arg0: i32) -> (i32, i32) {
    %c0_i32 = arith.constant 0 : i32
    %c0_i32_0 = arith.constant 0 : i32
    %c0_i32_1 = arith.constant 0 : i32
    return %c0_i32, %c0_i32_0 : i32, i32
  }
  func.func @transform_8(%arg0: i32) -> (i32, i32, i32) {
    %c0_i32 = arith.constant 0 : i32
    %c0_i32_0 = arith.constant 0 : i32
    %c0_i32_1 = arith.constant 0 : i32
    return %arg0, %c0_i32, %c0_i32_0 : i32, i32, i32
  }
}

</mosaic_0001>

<llo_original>
// kernel: tpu_custom_call.1
$region0: #{tpu_custom_call.1}
  #allocation0 [shape = 'u32[]', space=smem, size = 0x4, offset = 0x4, fixed_abs, tag = 'smem constant byte address 0x4 - core index']
  #allocation1 [shape = 'u32[144,128]{1,0:T(1,128)}', space=vmem, size = 0x12000, scoped, tag = 'internal scratch']
  #allocation2 [shape = 'bf16[20,20,32]{2,1,0:T(8,128)(2,1)}', space=vmem, size = 0x1e000, scoped, tag = 'scratch operand']
  %s0 = inlined_call_operand.vmem [shape: f32[2,32,256], index: 0, kind: input, shape index: {}]
  %s1 = inlined_call_operand.vmem [shape: f32[32,1], index: 1, kind: input, shape index: {}]
  %s2 = inlined_call_operand.vmem [shape: f32[32,1], index: 2, kind: input, shape index: {}]
  %s3 = inlined_call_operand.vmem [shape: bf16[32,288], index: 3, kind: input, shape index: {}]
  %s4 = inlined_call_operand.vmem [shape: bf16[192,32], index: 4, kind: input, shape index: {}]
  %s5 = inlined_call_operand.vmem [shape: f32[192,1], index: 5, kind: input, shape index: {}]
  %s6 = inlined_call_operand.vmem [shape: bf16[32,96], index: 6, kind: input, shape index: {}]
  %s7 = inlined_call_operand.vmem [shape: f32[32,1], index: 7, kind: input, shape index: {}]
  %s8 = inlined_call_operand.hbm [shape: f32[2,32,256], index: 8, kind: output, shape index: {}]
  %s9 = sld [smem:[#allocation0]]
  $region65: #{tpu_custom_call.1} parent=0
    _
  %s11 = ssub.s32 1, %s9
  %s12 = scalar_select 0, %s11, %s9
  $region1: #{tpu_custom_call.1} parent=0
    #allocation3 [shape = 'u8[65536]{0}', space=vmem, size = 0x10000, scoped, tag = 'output window, operand 0']
    #allocation4 [shape = 's32[2]{0}', space=sflag, size = 0x8, scoped, tag = 'scoped memory for tpu_custom_call.1']
    %13 = vsyncpa [#allocation4], 0
    %s14 = scalar_lea.sflag [#allocation4], 1
    %15 = vsyncpa %s14, 0
    loop: start=0, step=1, limit=4
    $region2: #{tpu_custom_call.1} parent=1 // loop_pre_header
      _
    $region3: #{tpu_custom_call.1} parent=1 // loop_header
      %s17 = sphi 0, %s21
      %p18 = scmp.ge.s32.totalorder %s17, 4
      %s27 = sphi 0, %s29
      %s30 = sphi 0, %s27
      %s31 = sphi 0, %s30
      %s47 = sphi 0, %s31
      %s51 = sphi 0, %s51
      %s53 = sphi 0, %s51
      %s54 = sphi 0, %s53
      %s68 = sphi 0, %s54
      %s72 = sphi 0, %s72
      %s74 = sphi 0, %s72
      %s75 = sphi 0, %s74
      %s89 = sphi 0, %s75
      %s93 = sphi 0, %s93
      %s95 = sphi 0, %s93
      %s96 = sphi 0, %s95
      %s110 = sphi 0, %s96
      %s114 = sphi 0, %s114
      %s116 = sphi 0, %s114
      %s117 = sphi 0, %s116
      %s131 = sphi 0, %s117
      %s135 = sphi 0, %s135
      %s137 = sphi 0, %s135
      %s138 = sphi 0, %s137
      %s152 = sphi 0, %s138
      %s156 = sphi 0, %s156
      %s158 = sphi 0, %s156
      %s159 = sphi 0, %s158
      %s173 = sphi 0, %s159
      %s177 = sphi 0, %s177
      %s179 = sphi 0, %s177
      %s180 = sphi 0, %s179
      %s194 = sphi 0, %s180
      %s200 = sphi 0, %s202
      %s203 = sphi 0, %s200
      %s204 = sphi 0, %s203
      %s220 = sphi 0, %s204
    $region4: #{tpu_custom_call.1} parent=1 // loop_header_branch
      %20 = sbr.rel (%p18) target = $region8
    $region5: #{tpu_custom_call.1} parent=1 // loop_body
      %s22 = ssub.s32 %s17, 1
      %s23 = ssub.s32 %s17, 2
      %s24 = sadd.s32 %s17, 1
      %s25 = ssub.s32 %s17, %s24
      %p26 = scmp.eq.s32.totalorder %s25, 0
      %s28 = sadd.s32 %s27, 1
      %s29 = scalar_select %p26, %s27, %s28
      %p32 = pneg %p26
      %p33 = scmp.eq.s32.totalorder %s17, 1
      %p34 = por %p32, %p33
      %p35 = scmp.ne.s32.totalorder %s27, %s30
      %p36 = scmp.eq.s32.totalorder %s17, 0
      %p37 = por %p35, %p36
      %p38 = scmp.ne.s32.totalorder %s27, %s30
      %p39 = scmp.eq.s32.totalorder %s22, 1
      %p40 = por %p38, %p39
      %p41 = scmp.ne.s32.totalorder %s30, %s31
      %p42 = scmp.eq.s32.totalorder %s22, 0
      %p43 = por %p41, %p42
      %p44 = scmp.ne.s32.totalorder %s30, %s31
      %p45 = scmp.eq.s32.totalorder %s23, 1
      %p46 = por %p44, %p45
      %p48 = scmp.ne.s32.totalorder %s31, %s47
      %p49 = scmp.eq.s32.totalorder %s23, 0
      %p50 = por %p48, %p49
      %s52 = sadd.s32 %s51, 1
      %p55 = scmp.eq.s32.totalorder %s17, 1
      %p56 = scmp.ne.s32.totalorder %s51, %s53
      %p57 = scmp.eq.s32.totalorder %s17, 0
      %p58 = por %p56, %p57
      %p59 = scmp.ne.s32.totalorder %s51, %s53
      %p60 = scmp.eq.s32.totalorder %s22, 1
      %p61 = por %p59, %p60
      %p62 = scmp.ne.s32.totalorder %s53, %s54
      %p63 = scmp.eq.s32.totalorder %s22, 0
      %p64 = por %p62, %p63
      %p65 = scmp.ne.s32.totalorder %s53, %s54
      %p66 = scmp.eq.s32.totalorder %s23, 1
      %p67 = por %p65, %p66
      %p69 = scmp.ne.s32.totalorder %s54, %s68
      %p70 = scmp.eq.s32.totalorder %s23, 0
      %p71 = por %p69, %p70
      %s73 = sadd.s32 %s72, 1
      %p76 = scmp.eq.s32.totalorder %s17, 1
      %p77 = scmp.ne.s32.totalorder %s72, %s74
      %p78 = scmp.eq.s32.totalorder %s17, 0
      %p79 = por %p77, %p78
      %p80 = scmp.ne.s32.totalorder %s72, %s74
      %p81 = scmp.eq.s32.totalorder %s22, 1
      %p82 = por %p80, %p81
      %p83 = scmp.ne.s32.totalorder %s74, %s75
      %p84 = scmp.eq.s32.totalorder %s22, 0
      %p85 = por %p83, %p84
      %p86 = scmp.ne.s32.totalorder %s74, %s75
      %p87 = scmp.eq.s32.totalorder %s23, 1
      %p88 = por %p86, %p87
      %p90 = scmp.ne.s32.totalorder %s75, %s89
      %p91 = scmp.eq.s32.totalorder %s23, 0
      %p92 = por %p90, %p91
      %s94 = sadd.s32 %s93, 1
      %p97 = scmp.eq.s32.totalorder %s17, 1
      %p98 = scmp.ne.s32.totalorder %s93, %s95
      %p99 = scmp.eq.s32.totalorder %s17, 0
      %p100 = por %p98, %p99
      %p101 = scmp.ne.s32.totalorder %s93, %s95
      %p102 = scmp.eq.s32.totalorder %s22, 1
      %p103 = por %p101, %p102
      %p104 = scmp.ne.s32.totalorder %s95, %s96
      %p105 = scmp.eq.s32.totalorder %s22, 0
      %p106 = por %p104, %p105
      %p107 = scmp.ne.s32.totalorder %s95, %s96
      %p108 = scmp.eq.s32.totalorder %s23, 1
      %p109 = por %p107, %p108
      %p111 = scmp.ne.s32.totalorder %s96, %s110
      %p112 = scmp.eq.s32.totalorder %s23, 0
      %p113 = por %p111, %p112
      %s115 = sadd.s32 %s114, 1
      %p118 = scmp.eq.s32.totalorder %s17, 1
      %p119 = scmp.ne.s32.totalorder %s114, %s116
      %p120 = scmp.eq.s32.totalorder %s17, 0
      %p121 = por %p119, %p120
      %p122 = scmp.ne.s32.totalorder %s114, %s116
      %p123 = scmp.eq.s32.totalorder %s22, 1
      %p124 = por %p122, %p123
      %p125 = scmp.ne.s32.totalorder %s116, %s117
      %p126 = scmp.eq.s32.totalorder %s22, 0
      %p127 = por %p125, %p126
      %p128 = scmp.ne.s32.totalorder %s116, %s117
      %p129 = scmp.eq.s32.totalorder %s23, 1
      %p130 = por %p128, %p129
      %p132 = scmp.ne.s32.totalorder %s117, %s131
      %p133 = scmp.eq.s32.totalorder %s23, 0
      %p134 = por %p132, %p133
      %s136 = sadd.s32 %s135, 1
      %p139 = scmp.eq.s32.totalorder %s17, 1
      %p140 = scmp.ne.s32.totalorder %s135, %s137
      %p141 = scmp.eq.s32.totalorder %s17, 0
      %p142 = por %p140, %p141
      %p143 = scmp.ne.s32.totalorder %s135, %s137
      %p144 = scmp.eq.s32.totalorder %s22, 1
      %p145 = por %p143, %p144
      %p146 = scmp.ne.s32.totalorder %s137, %s138
      %p147 = scmp.eq.s32.totalorder %s22, 0
      %p148 = por %p146, %p147
      %p149 = scmp.ne.s32.totalorder %s137, %s138
      %p150 = scmp.eq.s32.totalorder %s23, 1
      %p151 = por %p149, %p150
      %p153 = scmp.ne.s32.totalorder %s138, %s152
      %p154 = scmp.eq.s32.totalorder %s23, 0
      %p155 = por %p153, %p154
      %s157 = sadd.s32 %s156, 1
      %p160 = scmp.eq.s32.totalorder %s17, 1
      %p161 = scmp.ne.s32.totalorder %s156, %s158
      %p162 = scmp.eq.s32.totalorder %s17, 0
      %p163 = por %p161, %p162
      %p164 = scmp.ne.s32.totalorder %s156, %s158
      %p165 = scmp.eq.s32.totalorder %s22, 1
      %p166 = por %p164, %p165
      %p167 = scmp.ne.s32.totalorder %s158, %s159
      %p168 = scmp.eq.s32.totalorder %s22, 0
      %p169 = por %p167, %p168
      %p170 = scmp.ne.s32.totalorder %s158, %s159
      %p171 = scmp.eq.s32.totalorder %s23, 1
      %p172 = por %p170, %p171
      %p174 = scmp.ne.s32.totalorder %s159, %s173
      %p175 = scmp.eq.s32.totalorder %s23, 0
      %p176 = por %p174, %p175
      %s178 = sadd.s32 %s177, 1
      %p181 = scmp.eq.s32.totalorder %s17, 1
      %p182 = scmp.ne.s32.totalorder %s177, %s179
      %p183 = scmp.eq.s32.totalorder %s17, 0
      %p184 = por %p182, %p183
      %p185 = scmp.ne.s32.totalorder %s177, %s179
      %p186 = scmp.eq.s32.totalorder %s22, 1
      %p187 = por %p185, %p186
      %p188 = scmp.ne.s32.totalorder %s179, %s180
      %p189 = scmp.eq.s32.totalorder %s22, 0
      %p190 = por %p188, %p189
      %p191 = scmp.ne.s32.totalorder %s179, %s180
      %p192 = scmp.eq.s32.totalorder %s23, 1
      %p193 = por %p191, %p192
      %p195 = scmp.ne.s32.totalorder %s180, %s194
      %p196 = scmp.eq.s32.totalorder %s23, 0
      %p197 = por %p195, %p196
      %s198 = ssub.s32 %s17, %s24
      %p199 = scmp.eq.s32.totalorder %s198, 0
      %s201 = sadd.s32 %s200, 1
      %s202 = scalar_select %p199, %s200, %s201
      %p205 = pneg %p199
      %p206 = scmp.eq.s32.totalorder %s17, 1
      %p207 = por %p205, %p206
      %p208 = scmp.ne.s32.totalorder %s200, %s203
      %p209 = scmp.eq.s32.totalorder %s17, 0
      %p210 = por %p208, %p209
      %p211 = scmp.ne.s32.totalorder %s200, %s203
      %p212 = scmp.eq.s32.totalorder %s22, 1
      %p213 = por %p211, %p212
      %p214 = scmp.ne.s32.totalorder %s203, %s204
      %p215 = scmp.eq.s32.totalorder %s22, 0
      %p216 = por %p214, %p215
      %p217 = scmp.ne.s32.totalorder %s203, %s204
      %p218 = scmp.eq.s32.totalorder %s23, 1
      %p219 = por %p217, %p218
      %p221 = scmp.ne.s32.totalorder %s204, %s220
      %p222 = scmp.eq.s32.totalorder %s23, 0
      %p223 = por %p221, %p222
      %p224 = scmp.le.s32.totalorder 1, %s17
      %p225 = scmp.lt.s32.totalorder %s17, 3
      %p226 = pnand %p224, %p225
      %p227 = pneg %p226
      // Predicated region
      $region9: #{tpu_custom_call.1} parent=5 // pred_check
        _
      $region10: #{tpu_custom_call.1} parent=5 // pred_check_branch
        %229 = sbr.rel (%p226) target = $region12
      $region11: #{tpu_custom_call.1} parent=5 // pred_region
        %s230 = ssub.s32 %s17, 1
        // Predicated region
        $region13: #{tpu_custom_call.1} parent=11 // pred_check
          %p231 = pneg %p64
        $region14: #{tpu_custom_call.1} parent=11 // pred_check_branch
          %233 = sbr.rel (%p231) target = $region16
        $region15: #{tpu_custom_call.1} parent=11 // pred_region
          _
        $region16: #{tpu_custom_call.1} parent=11 // pred_fallthru
          _
        // Predicated region
        $region17: #{tpu_custom_call.1} parent=11 // pred_check
          %p234 = pneg %p85
        $region18: #{tpu_custom_call.1} parent=11 // pred_check_branch
          %236 = sbr.rel (%p234) target = $region20
        $region19: #{tpu_custom_call.1} parent=11 // pred_region
          _
        $region20: #{tpu_custom_call.1} parent=11 // pred_fallthru
          _
        // Predicated region
        $region21: #{tpu_custom_call.1} parent=11 // pred_check
          %p237 = pneg %p106
        $region22: #{tpu_custom_call.1} parent=11 // pred_check_branch
          %239 = sbr.rel (%p237) target = $region24
        $region23: #{tpu_custom_call.1} parent=11 // pred_region
          _
        $region24: #{tpu_custom_call.1} parent=11 // pred_fallthru
          _
        // Predicated region
        $region25: #{tpu_custom_call.1} parent=11 // pred_check
          %p240 = pneg %p127
        $region26: #{tpu_custom_call.1} parent=11 // pred_check_branch
          %242 = sbr.rel (%p240) target = $region28
        $region27: #{tpu_custom_call.1} parent=11 // pred_region
          _
        $region28: #{tpu_custom_call.1} parent=11 // pred_fallthru
          _
        // Predicated region
        $region29: #{tpu_custom_call.1} parent=11 // pred_check
          %p243 = pneg %p148
        $region30: #{tpu_custom_call.1} parent=11 // pred_check_branch
          %245 = sbr.rel (%p243) target = $region32
        $region31: #{tpu_custom_call.1} parent=11 // pred_region
          _
        $region32: #{tpu_custom_call.1} parent=11 // pred_fallthru
          _
        // Predicated region
        $region33: #{tpu_custom_call.1} parent=11 // pred_check
          %p246 = pneg %p169
        $region34: #{tpu_custom_call.1} parent=11 // pred_check_branch
          %248 = sbr.rel (%p246) target = $region36
        $region35: #{tpu_custom_call.1} parent=11 // pred_region
          _
        $region36: #{tpu_custom_call.1} parent=11 // pred_fallthru
          _
        // Predicated region
        $region37: #{tpu_custom_call.1} parent=11 // pred_check
          %p249 = pneg %p190
        $region38: #{tpu_custom_call.1} parent=11 // pred_check_branch
          %251 = sbr.rel (%p249) target = $region40
        $region39: #{tpu_custom_call.1} parent=11 // pred_region
          _
        $region40: #{tpu_custom_call.1} parent=11 // pred_fallthru
          _
      $region12: #{tpu_custom_call.1} parent=5 // pred_fallthru
        _
      %p252 = scmp.lt.s32.totalorder %s17, 2
      // Predicated region
      $region41: #{tpu_custom_call.1} parent=5 // pred_check
        %p253 = pneg %p252
      $region42: #{tpu_custom_call.1} parent=5 // pred_check_branch
        %255 = sbr.rel (%p253) target = $region44
      $region43: #{tpu_custom_call.1} parent=5 // pred_region
        // Predicated region
        $region45: #{tpu_custom_call.1} parent=43 // pred_check
          %p256 = pneg %p37
        $region46: #{tpu_custom_call.1} parent=43 // pred_check_branch
          %258 = sbr.rel (%p256) target = $region48
        $region47: #{tpu_custom_call.1} parent=43 // pred_region
          %p259 = scmp.lt.s32.totalorder %s17, 1
          %s260 = scalar_select %p259, %s17, 1
          %s261 = smul.addr %s260, 8
          %s262 = smul.addr %s261, 8
          %s263 = scalar_lea.vmem %s0, %s262
        $region48: #{tpu_custom_call.1} parent=43 // pred_fallthru
          _
      $region44: #{tpu_custom_call.1} parent=5 // pred_fallthru
        _
      %p264 = scmp.le.s32.totalorder 1, %s17
      %p265 = scmp.lt.s32.totalorder %s17, 3
      %p266 = pnand %p264, %p265
      %p267 = pneg %p266
      // Predicated region
      $region49: #{tpu_custom_call.1} parent=5 // pred_check
        _
      $region50: #{tpu_custom_call.1} parent=5 // pred_check_branch
        %269 = sbr.rel (%p266) target = $region52
      $region51: #{tpu_custom_call.1} parent=5 // pred_region
        %s270 = ssub.s32 %s17, 1
        %p271 = scmp.lt.s32.totalorder %s22, 1
        %s272 = scalar_select %p271, %s22, 1
        %s273 = smul.addr %s272, 8
        %s274 = smul.addr %s273, 8
        %s275 = scalar_lea.vmem %s0, %s274
        %p276 = pneg %p43
        %p277 = pneg %p40
        %p278 = pneg %p64
        %p279 = pneg %p61
        %p280 = pneg %p85
        %p281 = pneg %p82
        %p282 = pneg %p106
        %p283 = pneg %p103
        %p284 = pneg %p127
        %p285 = pneg %p124
        %p286 = pneg %p148
        %p287 = pneg %p145
        %p288 = pneg %p169
        %p289 = pneg %p166
        %p290 = pneg %p190
        %p291 = pneg %p187
        %p292 = pneg %p216
        %p293 = pneg %p213
        %s294 = sand.u32 %s203, 1
        %s295 = scalar_lea.sflag [#allocation4], %s294
        %s296 = sand.u32 %s203, 1
        %s297 = smul.addr %s296, 64
        %s298 = scalar_lea.vmem [#allocation3], %s297
        %p299 = scmp.lt.s32.totalorder %s22, 1
        %s300 = scalar_select %p299, %s22, 1
        %s301 = smul.addr %s300, 8
        %s302 = smul.addr %s301, 8
        %s303 = scalar_lea.vmem %s0, %s302
        %v305 = vld [vmem:[%s303] sm:$0xff]
        %v306 = vld [vmem:[%s303 + $0x8] sm:$0xff]
        %v307 = vld [vmem:[%s303 + $0x10] sm:$0xff]
        %v308 = vld [vmem:[%s303 + $0x18] sm:$0xff]
        %v309 = vld [vmem:[%s303 + $0x20] sm:$0xff]
        %v310 = vld [vmem:[%s303 + $0x28] sm:$0xff]
        %v311 = vld [vmem:[%s303 + $0x30] sm:$0xff]
        %v312 = vld [vmem:[%s303 + $0x38] sm:$0xff]
        %v313 = vadd.f32 %v305, %v307
        %v314 = vadd.f32 %v313, %v309
        %v315 = vadd.f32 %v314, %v311
        %v316 = vrot.slane %v315, 4
        %v317 = vadd.f32 %v315, %v316
        %v318 = vrot.slane %v317, 2
        %v319 = vadd.f32 %v317, %v318
        %v320 = vrot.slane %v319, 1
        %v321 = vadd.f32 %v319, %v320
        %v322 = vadd.f32 %v306, %v308
        %v323 = vadd.f32 %v322, %v310
        %v324 = vadd.f32 %v323, %v312
        %v325 = vrot.slane %v324, 4
        %v326 = vadd.f32 %v324, %v325
        %v327 = vrot.slane %v326, 2
        %v328 = vadd.f32 %v326, %v327
        %v329 = vrot.slane %v328, 1
        %v330 = vadd.f32 %v328, %v329
        %v331 = vrcp.pop 32.0
        %v332 = vmul.f32 %v321, %v331
        %v333 = vmul.f32 %v330, %v331
        %v334 = vsub.f32 %v305, %v332
        %v335 = vsub.f32 %v306, %v333
        %v336 = vsub.f32 %v307, %v332
        %v337 = vsub.f32 %v308, %v333
        %v338 = vsub.f32 %v309, %v332
        %v339 = vsub.f32 %v310, %v333
        %v340 = vsub.f32 %v311, %v332
        %v341 = vsub.f32 %v312, %v333
        %v342 = vmul.f32 %v334, %v334
        %v343 = vmul.f32 %v335, %v335
        %v344 = vmul.f32 %v336, %v336
        %v345 = vmul.f32 %v337, %v337
        %v346 = vmul.f32 %v338, %v338
        %v347 = vmul.f32 %v339, %v339
        %v348 = vmul.f32 %v340, %v340
        %v349 = vmul.f32 %v341, %v341
        %v350 = vadd.f32 %v342, %v344
        %v351 = vadd.f32 %v350, %v346
        %v352 = vadd.f32 %v351, %v348
        %v353 = vrot.slane %v352, 4
        %v354 = vadd.f32 %v352, %v353
        %v355 = vrot.slane %v354, 2
        %v356 = vadd.f32 %v354, %v355
        %v357 = vrot.slane %v356, 1
        %v358 = vadd.f32 %v356, %v357
        %v359 = vadd.f32 %v343, %v345
        %v360 = vadd.f32 %v359, %v347
        %v361 = vadd.f32 %v360, %v349
        %v362 = vrot.slane %v361, 4
        %v363 = vadd.f32 %v361, %v362
        %v364 = vrot.slane %v363, 2
        %v365 = vadd.f32 %v363, %v364
        %v366 = vrot.slane %v365, 1
        %v367 = vadd.f32 %v365, %v366
        %v368 = vmul.f32 %v358, %v331
        %v369 = vmul.f32 %v367, %v331
        %v370 = vadd.f32 %v368, 1e-05
        %v371 = vadd.f32 %v369, 1e-05
        %v372 = vrsqrt.pop %v370
        %v373 = vrsqrt.pop %v371
        %v374 = vmul.f32 %v334, %v372
        %v375 = vmul.f32 %v335, %v373
        %v376 = vmul.f32 %v336, %v372
        %v377 = vmul.f32 %v337, %v373
        %v378 = vmul.f32 %v338, %v372
        %v379 = vmul.f32 %v339, %v373
        %v380 = vmul.f32 %v340, %v372
        %v381 = vmul.f32 %v341, %v373
        %v382 = vld [vmem:[%s1] sm:$0xff]
        %v383 = vld [vmem:[%s1 + $0x8] sm:$0xff]
        %v384 = vld [vmem:[%s1 + $0x10] sm:$0xff]
        %v385 = vld [vmem:[%s1 + $0x18] sm:$0xff]
        %387 = vset.pattern.permute.xlu0 0
        %388 = vperm.xlu0 %387, %v382
        %v389 = vpop.permute.xlu0 %388
        %392 = vset.pattern.permute.xlu0 0
        %393 = vperm.xlu0 %392, %v383
        %v394 = vpop.permute.xlu0 %393
        %397 = vset.pattern.permute.xlu0 0
        %398 = vperm.xlu0 %397, %v384
        %v399 = vpop.permute.xlu0 %398
        %402 = vset.pattern.permute.xlu0 0
        %403 = vperm.xlu0 %402, %v385
        %v404 = vpop.permute.xlu0 %403
        %v406 = vmul.f32 %v374, %v389
        %v407 = vmul.f32 %v375, %v389
        %v408 = vmul.f32 %v376, %v394
        %v409 = vmul.f32 %v377, %v394
        %v410 = vmul.f32 %v378, %v399
        %v411 = vmul.f32 %v379, %v399
        %v412 = vmul.f32 %v380, %v404
        %v413 = vmul.f32 %v381, %v404
        %v414 = vld [vmem:[%s2] sm:$0xff]
        %v415 = vld [vmem:[%s2 + $0x8] sm:$0xff]
        %v416 = vld [vmem:[%s2 + $0x10] sm:$0xff]
        %v417 = vld [vmem:[%s2 + $0x18] sm:$0xff]
        %419 = vset.pattern.permute.xlu0 0
        %420 = vperm.xlu0 %419, %v414
        %v421 = vpop.permute.xlu0 %420
        %424 = vset.pattern.permute.xlu0 0
        %425 = vperm.xlu0 %424, %v415
        %v426 = vpop.permute.xlu0 %425
        %429 = vset.pattern.permute.xlu0 0
        %430 = vperm.xlu0 %429, %v416
        %v431 = vpop.permute.xlu0 %430
        %434 = vset.pattern.permute.xlu0 0
        %435 = vperm.xlu0 %434, %v417
        %v436 = vpop.permute.xlu0 %435
        %v438 = vadd.f32 %v406, %v421
        %v439 = vadd.f32 %v407, %v421
        %v440 = vadd.f32 %v408, %v426
        %v441 = vadd.f32 %v409, %v426
        %v442 = vadd.f32 %v410, %v431
        %v443 = vadd.f32 %v411, %v431
        %v444 = vadd.f32 %v412, %v436
        %v445 = vadd.f32 %v413, %v436
        %v446 = vpack.c.bf16 %v440, %v438
        %v447 = vpack.c.bf16 %v441, %v439
        %v448 = vpack.c.bf16 %v444, %v442
        %v449 = vpack.c.bf16 %v445, %v443
        %v450 = vlaneseq
        %v451 = vshrl.u32 %v450, 7
        %v452 = vadd.s32 %v451, 8
        %v453 = vadd.s32 %v451, 16
        %v454 = vadd.s32 %v451, 24
        %v455 = vlaneseq
        %v456 = vand.u32 %v455, 127
        %vm457 = vcmp.eq.s32.totalorder %v451, %v456
        %vm458 = vcmp.eq.s32.totalorder %v452, %v456
        %vm459 = vcmp.eq.s32.totalorder %v453, %v456
        %vm460 = vcmp.eq.s32.totalorder %v454, %v456
        %v461 = vsel %vm457, 1, 0
        %v462 = vsel %vm458, 1, 0
        %v463 = vsel %vm459, 1, 0
        %v464 = vsel %vm460, 1, 0
        %v465 = vcvt.s32.f32 %v461
        %v466 = vcvt.s32.f32 %v462
        %v467 = vcvt.s32.f32 %v463
        %v468 = vcvt.s32.f32 %v464
        %v469 = vpack.c.bf16 %v466, %v465
        %v470 = vpack.c.bf16 %v468, %v467
        %471 = vxpose.xlu0.c.b16.start [1/8] %v446, 128
        %472 = vxpose.xlu0.c.b16.cont [2/8] %v448, 128
        %473 = vxpose.xlu0.c.b16.cont [3/8] 0, 128
        %474 = vxpose.xlu0.c.b16.cont [4/8] 0, 128
        %475 = vxpose.xlu0.c.b16.cont [5/8] 0, 128
        %476 = vxpose.xlu0.c.b16.cont [6/8] 0, 128
        %477 = vxpose.xlu0.c.b16.cont [7/8] 0, 128
        %478 = vxpose.xlu0.c.b16.end [8/8] 0, 128
        %v479 = vpop.trf.xlu0
        %v480 = vpop.trf.xlu0
        %v481 = vpop.trf.xlu0
        %v482 = vpop.trf.xlu0
        %v483 = vpop.trf.xlu0
        %v484 = vpop.trf.xlu0
        %v485 = vpop.trf.xlu0
        %v486 = vpop.trf.xlu0
        %487 = vxpose.xlu0.c.b16.start [1/8] %v447, 128
        %488 = vxpose.xlu0.c.b16.cont [2/8] %v449, 128
        %489 = vxpose.xlu0.c.b16.cont [3/8] 0, 128
        %490 = vxpose.xlu0.c.b16.cont [4/8] 0, 128
        %491 = vxpose.xlu0.c.b16.cont [5/8] 0, 128
        %492 = vxpose.xlu0.c.b16.cont [6/8] 0, 128
        %493 = vxpose.xlu0.c.b16.cont [7/8] 0, 128
        %494 = vxpose.xlu0.c.b16.end [8/8] 0, 128
        %v495 = vpop.trf.xlu0
        %v496 = vpop.trf.xlu0
        %v497 = vpop.trf.xlu0
        %v498 = vpop.trf.xlu0
        %v499 = vpop.trf.xlu0
        %v500 = vpop.trf.xlu0
        %v501 = vpop.trf.xlu0
        %v502 = vpop.trf.xlu0
        %vm503 = vcmask 261120
        %v505 = vsel %vm503, %v479, 0
        %v508 = vsel %vm503, %v480, 0
        %v511 = vsel %vm503, %v481, 0
        %v514 = vsel %vm503, %v482, 0
        %v517 = vsel %vm503, %v483, 0
        %v520 = vsel %vm503, %v484, 0
        %v523 = vsel %vm503, %v485, 0
        %v526 = vsel %vm503, %v486, 0
        %v529 = vsel %vm503, %v495, 0
        %v532 = vsel %vm503, %v496, 0
        %v535 = vsel %vm503, %v497, 0
        %v538 = vsel %vm503, %v498, 0
        %v541 = vsel %vm503, %v499, 0
        %v544 = vsel %vm503, %v500, 0
        %v547 = vsel %vm503, %v501, 0
        %v550 = vsel %vm503, %v502, 0
        %552 = vmatprep.subr.bf16.mxu0 0
        %553 = vmatpush1.bf16.msra.mxu0 %v469
        %554 = vmatprep.subr.bf16.mxu0 0
        %555 = vmatpush1.bf16.msra.mxu0 %v470
        %556 = vmatprep.subr.bf16.mxu0 0
        %557 = vmatpush1.bf16.msra.mxu0 0
        %558 = vmatprep.subr.bf16.mxu0 0
        %559 = vmatpush1.bf16.msra.mxu0 0
        %560 = vmatprep.subr.bf16.mxu0 0
        %561 = vmatpush1.bf16.msra.mxu0 0
        %562 = vmatprep.subr.bf16.mxu0 0
        %563 = vmatpush1.bf16.msra.mxu0 0
        %564 = vmatprep.subr.bf16.mxu0 0
        %565 = vmatpush1.bf16.msra.mxu0 0
        %566 = vmatprep.subr.bf16.mxu0 0
        %567 = vmatpush1.bf16.msra.mxu0 0
        %568 = vmatprep.subr.bf16.mxu0 0
        %569 = vmatpush1.bf16.msra.mxu0 0
        %570 = vmatprep.subr.bf16.mxu0 0
        %571 = vmatpush1.bf16.msra.mxu0 0
        %572 = vmatprep.subr.bf16.mxu0 0
        %573 = vmatpush1.bf16.msra.mxu0 0
        %574 = vmatprep.subr.bf16.mxu0 0
        %575 = vmatpush1.bf16.msra.mxu0 0
        %576 = vmatprep.subr.bf16.mxu0 0
        %577 = vmatpush1.bf16.msra.mxu0 0
        %578 = vmatprep.subr.bf16.mxu0 0
        %579 = vmatpush1.bf16.msra.mxu0 0
        %580 = vmatprep.subr.bf16.mxu0 0
        %581 = vmatpush1.bf16.msra.mxu0 0
        %582 = vmatprep.subr.bf16.mxu0 0
        %583 = vmatpush1.bf16.msra.mxu0 0
        %584 = vmatprep.mubr.bf16.mxu0 0
        %585 = vmatmul.mubr.bf16.gmra.mrb[0].mxu0 %v505
        %v586 = vpop.f32.mrb[0].mxu0
        %v587 = vadd.f32 0.0, %v586
        %v588 = vpop.f32.mrb[0].mxu0
        %v589 = vpop.f32.mrb[0].mxu0
        %v590 = vadd.f32 0.0, %v589
        %v591 = vpop.f32.mrb[0].mxu0
        %592 = vmatprep.mubr.bf16.mxu0 0
        %593 = vmatmul.mubr.bf16.gmra.mrb[0].mxu0 %v508
        %v594 = vpop.f32.mrb[0].mxu0
        %v595 = vadd.f32 0.0, %v594
        %v596 = vpop.f32.mrb[0].mxu0
        %v597 = vpop.f32.mrb[0].mxu0
        %v598 = vadd.f32 0.0, %v597
        %v599 = vpop.f32.mrb[0].mxu0
        %600 = vmatprep.mubr.bf16.mxu0 0
        %601 = vmatmul.mubr.bf16.gmra.mrb[0].mxu0 %v511
        %v602 = vpop.f32.mrb[0].mxu0
        %v603 = vadd.f32 0.0, %v602
        %v604 = vpop.f32.mrb[0].mxu0
        %v605 = vpop.f32.mrb[0].mxu0
        %v606 = vadd.f32 0.0, %v605
        %v607 = vpop.f32.mrb[0].mxu0
        %608 = vmatprep.mubr.bf16.mxu0 0
        %609 = vmatmul.mubr.bf16.gmra.mrb[0].mxu0 %v514
        %v610 = vpop.f32.mrb[0].mxu0
        %v611 = vadd.f32 0.0, %v610
        %v612 = vpop.f32.mrb[0].mxu0
        %v613 = vpop.f32.mrb[0].mxu0
        %v614 = vadd.f32 0.0, %v613
        %v615 = vpop.f32.mrb[0].mxu0
        %616 = vmatprep.mubr.bf16.mxu0 0
        %617 = vmatmul.mubr.bf16.gmra.mrb[0].mxu0 %v517
        %v618 = vpop.f32.mrb[0].mxu0
        %v619 = vadd.f32 0.0, %v618
        %v620 = vpop.f32.mrb[0].mxu0
        %v621 = vpop.f32.mrb[0].mxu0
        %v622 = vadd.f32 0.0, %v621
        %v623 = vpop.f32.mrb[0].mxu0
        %624 = vmatprep.mubr.bf16.mxu0 0
        %625 = vmatmul.mubr.bf16.gmra.mrb[0].mxu0 %v520
        %v626 = vpop.f32.mrb[0].mxu0
        %v627 = vadd.f32 0.0, %v626
        %v628 = vpop.f32.mrb[0].mxu0
        %v629 = vpop.f32.mrb[0].mxu0
        %v630 = vadd.f32 0.0, %v629
        %v631 = vpop.f32.mrb[0].mxu0
        %632 = vmatprep.mubr.bf16.mxu0 0
        %633 = vmatmul.mubr.bf16.gmra.mrb[0].mxu0 %v523
        %v634 = vpop.f32.mrb[0].mxu0
        %v635 = vadd.f32 0.0, %v634
        %v636 = vpop.f32.mrb[0].mxu0
        %v637 = vpop.f32.mrb[0].mxu0
        %v638 = vadd.f32 0.0, %v637
        %v639 = vpop.f32.mrb[0].mxu0
        %640 = vmatprep.mubr.bf16.mxu0 0
        %641 = vmatmul.mubr.bf16.gmra.mrb[0].mxu0 %v526
        %v642 = vpop.f32.mrb[0].mxu0
        %v643 = vadd.f32 0.0, %v642
        %v644 = vpop.f32.mrb[0].mxu0
        %v645 = vpop.f32.mrb[0].mxu0
        %v646 = vadd.f32 0.0, %v645
        %v647 = vpop.f32.mrb[0].mxu0
        %648 = vmatprep.mubr.bf16.mxu0 0
        %649 = vmatmul.mubr.bf16.gmra.mrb[0].mxu0 %v529
        %v650 = vpop.f32.mrb[0].mxu0
        %v651 = vadd.f32 0.0, %v650
        %v652 = vpop.f32.mrb[0].mxu0
        %v653 = vpop.f32.mrb[0].mxu0
        %v654 = vadd.f32 0.0, %v653
        %v655 = vpop.f32.mrb[0].mxu0
        %656 = vmatprep.mubr.bf16.mxu0 0
        %657 = vmatmul.mubr.bf16.gmra.mrb[0].mxu0 %v532
        %v658 = vpop.f32.mrb[0].mxu0
        %v659 = vadd.f32 0.0, %v658
        %v660 = vpop.f32.mrb[0].mxu0
        %v661 = vpop.f32.mrb[0].mxu0
        %v662 = vadd.f32 0.0, %v661
        %v663 = vpop.f32.mrb[0].mxu0
        %664 = vmatprep.mubr.bf16.mxu0 0
        %665 = vmatmul.mubr.bf16.gmra.mrb[0].mxu0 %v535
        %v666 = vpop.f32.mrb[0].mxu0
        %v667 = vadd.f32 0.0, %v666
        %v668 = vpop.f32.mrb[0].mxu0
        %v669 = vpop.f32.mrb[0].mxu0
        %v670 = vadd.f32 0.0, %v669
        %v671 = vpop.f32.mrb[0].mxu0
        %672 = vmatprep.mubr.bf16.mxu0 0
        %673 = vmatmul.mubr.bf16.gmra.mrb[0].mxu0 %v538
        %v674 = vpop.f32.mrb[0].mxu0
        %v675 = vadd.f32 0.0, %v674
        %v676 = vpop.f32.mrb[0].mxu0
        %v677 = vpop.f32.mrb[0].mxu0
        %v678 = vadd.f32 0.0, %v677
        %v679 = vpop.f32.mrb[0].mxu0
        %680 = vmatprep.mubr.bf16.mxu0 0
        %681 = vmatmul.mubr.bf16.gmra.mrb[0].mxu0 %v541
        %v682 = vpop.f32.mrb[0].mxu0
        %v683 = vadd.f32 0.0, %v682
        %v684 = vpop.f32.mrb[0].mxu0
        %v685 = vpop.f32.mrb[0].mxu0
        %v686 = vadd.f32 0.0, %v685
        %v687 = vpop.f32.mrb[0].mxu0
        %688 = vmatprep.mubr.bf16.mxu0 0
        %689 = vmatmul.mubr.bf16.gmra.mrb[0].mxu0 %v544
        %v690 = vpop.f32.mrb[0].mxu0
        %v691 = vadd.f32 0.0, %v690
        %v692 = vpop.f32.mrb[0].mxu0
        %v693 = vpop.f32.mrb[0].mxu0
        %v694 = vadd.f32 0.0, %v693
        %v695 = vpop.f32.mrb[0].mxu0
        %696 = vmatprep.mubr.bf16.mxu0 0
        %697 = vmatmul.mubr.bf16.gmra.mrb[0].mxu0 %v547
        %v698 = vpop.f32.mrb[0].mxu0
        %v699 = vadd.f32 0.0, %v698
        %v700 = vpop.f32.mrb[0].mxu0
        %v701 = vpop.f32.mrb[0].mxu0
        %v702 = vadd.f32 0.0, %v701
        %v703 = vpop.f32.mrb[0].mxu0
        %704 = vmatprep.mubr.bf16.mxu0 0
        %705 = vmatmul.mubr.bf16.gmra.mrb[0].mxu0 %v550
        %v706 = vpop.f32.mrb[0].mxu0
        %v707 = vadd.f32 0.0, %v706
        %v708 = vpop.f32.mrb[0].mxu0
        %v709 = vpop.f32.mrb[0].mxu0
        %v710 = vadd.f32 0.0, %v709
        %v711 = vpop.f32.mrb[0].mxu0
        %712 = vdwg.mxu0
        %v713 = vpack.c.bf16 %v590, %v587
        %v714 = vpack.c.bf16 %v598, %v595
        %v715 = vpack.c.bf16 %v606, %v603
        %v716 = vpack.c.bf16 %v614, %v611
        %v717 = vpack.c.bf16 %v622, %v619
        %v718 = vpack.c.bf16 %v630, %v627
        %v719 = vpack.c.bf16 %v638, %v635
        %v720 = vpack.c.bf16 %v646, %v643
        %v721 = vpack.c.bf16 %v654, %v651
        %v722 = vpack.c.bf16 %v662, %v659
        %v723 = vpack.c.bf16 %v670, %v667
        %v724 = vpack.c.bf16 %v678, %v675
        %v725 = vpack.c.bf16 %v686, %v683
        %v726 = vpack.c.bf16 %v694, %v691
        %v727 = vpack.c.bf16 %v702, %v699
        %v728 = vpack.c.bf16 %v710, %v707
        %vm729 = vcmask 257024
        %730 = vst.msk [vmem:[#allocation2] sm:$0xf] %vm729, 0
        %731 = vst.msk [vmem:[#allocation2 + $0x4] sm:$0xf] %vm729, 0
        %vm732 = vcmask 254976
        %733 = vst.msk [vmem:[#allocation2 + $0x8] sm:$0x3] %vm732, 0
        %734 = vst.msk [vmem:[#allocation2 + $0xc] sm:$0xf] %vm729, 0
        %735 = vst.msk [vmem:[#allocation2 + $0x10] sm:$0xf] %vm729, 0
        %736 = vst.msk [vmem:[#allocation2 + $0x14] sm:$0x3] %vm732, 0
        %s737 = scalar_lea.vmem [#allocation2], 216
        %738 = vst.msk [vmem:[%s737] sm:$0xf] %vm729, 0
        %739 = vst.msk [vmem:[%s737 + $0x4] sm:$0xf] %vm729, 0
        %740 = vst.msk [vmem:[%s737 + $0x8] sm:$0x3] %vm732, 0
        %741 = vst.msk [vmem:[%s737 + $0xc] sm:$0xf] %vm729, 0
        %742 = vst.msk [vmem:[%s737 + $0x10] sm:$0xf] %vm729, 0
        %743 = vst.msk [vmem:[%s737 + $0x14] sm:$0x3] %vm732, 0
        %s744 = scalar_lea.vmem [#allocation2], 24
        %vm745 = vcmask 253952
        %746 = vst.msk [vmem:[%s744] sm:$0x1] %vm745, 0
        %747 = vst.msk [vmem:[%s744 + $0xc] sm:$0x1] %vm745, 0
        %748 = vst.msk [vmem:[%s744 + $0x18] sm:$0x1] %vm745, 0
        %749 = vst.msk [vmem:[%s744 + $0x24] sm:$0x1] %vm745, 0
        %750 = vst.msk [vmem:[%s744 + $0x30] sm:$0x1] %vm745, 0
        %751 = vst.msk [vmem:[%s744 + $0x3c] sm:$0x1] %vm745, 0
        %752 = vst.msk [vmem:[%s744 + $0x48] sm:$0x1] %vm745, 0
        %753 = vst.msk [vmem:[%s744 + $0x54] sm:$0x1] %vm745, 0
        %754 = vst.msk [vmem:[%s744 + $0x60] sm:$0x1] %vm745, 0
        %755 = vst.msk [vmem:[%s744 + $0x6c] sm:$0x1] %vm745, 0
        %756 = vst.msk [vmem:[%s744 + $0x78] sm:$0x1] %vm745, 0
        %757 = vst.msk [vmem:[%s744 + $0x84] sm:$0x1] %vm745, 0
        %758 = vst.msk [vmem:[%s744 + $0x90] sm:$0x1] %vm745, 0
        %759 = vst.msk [vmem:[%s744 + $0x9c] sm:$0x1] %vm745, 0
        %760 = vst.msk [vmem:[%s744 + $0xa8] sm:$0x1] %vm745, 0
        %761 = vst.msk [vmem:[%s744 + $0xb4] sm:$0x1] %vm745, 0
        %vm762 = vcmask 254977
        %763 = vst.msk [vmem:[%s744 + $0x8] sm:$0x2] %vm762, 0
        %764 = vst.msk [vmem:[%s744 + $0x14] sm:$0x2] %vm762, 0
        %765 = vst.msk [vmem:[%s744 + $0x20] sm:$0x2] %vm762, 0
        %766 = vst.msk [vmem:[%s744 + $0x2c] sm:$0x2] %vm762, 0
        %767 = vst.msk [vmem:[%s744 + $0x38] sm:$0x2] %vm762, 0
        %768 = vst.msk [vmem:[%s744 + $0x44] sm:$0x2] %vm762, 0
        %769 = vst.msk [vmem:[%s744 + $0x50] sm:$0x2] %vm762, 0
        %770 = vst.msk [vmem:[%s744 + $0x5c] sm:$0x2] %vm762, 0
        %771 = vst.msk [vmem:[%s744 + $0x68] sm:$0x2] %vm762, 0
        %772 = vst.msk [vmem:[%s744 + $0x74] sm:$0x2] %vm762, 0
        %773 = vst.msk [vmem:[%s744 + $0x80] sm:$0x2] %vm762, 0
        %774 = vst.msk [vmem:[%s744 + $0x8c] sm:$0x2] %vm762, 0
        %775 = vst.msk [vmem:[%s744 + $0x98] sm:$0x2] %vm762, 0
        %776 = vst.msk [vmem:[%s744 + $0xa4] sm:$0x2] %vm762, 0
        %777 = vst.msk [vmem:[%s744 + $0xb0] sm:$0x2] %vm762, 0
        %778 = vst.msk [vmem:[%s744 + $0xbc] sm:$0x2] %vm762, 0
        %v795 = vunpack.c.l.b16 %v713
        %v796 = vunpack.c.h.b16 %v713
        %v797 = vunpack.c.l.b16 %v714
        %v798 = vunpack.c.h.b16 %v714
        %v799 = vunpack.c.l.b16 %v715
        %v800 = vunpack.c.h.b16 %v715
        %v801 = vunpack.c.l.b16 %v716
        %v802 = vunpack.c.h.b16 %v716
        %v803 = vunpack.c.l.b16 %v717
        %v804 = vunpack.c.h.b16 %v717
        %v805 = vunpack.c.l.b16 %v718
        %v806 = vunpack.c.h.b16 %v718
        %v807 = vunpack.c.l.b16 %v719
        %v808 = vunpack.c.h.b16 %v719
        %v809 = vunpack.c.l.b16 %v720
        %v810 = vunpack.c.h.b16 %v720
        %v811 = vunpack.c.l.b16 %v721
        %v812 = vunpack.c.h.b16 %v721
        %v813 = vunpack.c.l.b16 %v722
        %v814 = vunpack.c.h.b16 %v722
        %v815 = vunpack.c.l.b16 %v723
        %v816 = vunpack.c.h.b16 %v723
        %v817 = vunpack.c.l.b16 %v724
        %v818 = vunpack.c.h.b16 %v724
        %v819 = vunpack.c.l.b16 %v725
        %v820 = vunpack.c.h.b16 %v725
        %v821 = vunpack.c.l.b16 %v726
        %v822 = vunpack.c.h.b16 %v726
        %v823 = vunpack.c.l.b16 %v727
        %v824 = vunpack.c.h.b16 %v727
        %v825 = vunpack.c.l.b16 %v728
        %v826 = vunpack.c.h.b16 %v728
        %v827 = vpack.c.b16 %v795, %v795
        %v828 = vpack.c.b16 %v796, %v796
        %v829 = vpack.c.b16 %v797, %v797
        %v830 = vpack.c.b16 %v798, %v798
        %v831 = vpack.c.b16 %v799, %v799
        %v832 = vpack.c.b16 %v800, %v800
        %v833 = vpack.c.b16 %v801, %v801
        %v834 = vpack.c.b16 %v802, %v802
        %v835 = vpack.c.b16 %v803, %v803
        %v836 = vpack.c.b16 %v804, %v804
        %v837 = vpack.c.b16 %v805, %v805
        %v838 = vpack.c.b16 %v806, %v806
        %v839 = vpack.c.b16 %v807, %v807
        %v840 = vpack.c.b16 %v808, %v808
        %v841 = vpack.c.b16 %v809, %v809
        %v842 = vpack.c.b16 %v810, %v810
        %v843 = vpack.c.b16 %v811, %v811
        %v844 = vpack.c.b16 %v812, %v812
        %v845 = vpack.c.b16 %v813, %v813
        %v846 = vpack.c.b16 %v814, %v814
        %v847 = vpack.c.b16 %v815, %v815
        %v848 = vpack.c.b16 %v816, %v816
        %v849 = vpack.c.b16 %v817, %v817
        %v850 = vpack.c.b16 %v818, %v818
        %v851 = vpack.c.b16 %v819, %v819
        %v852 = vpack.c.b16 %v820, %v820
        %v853 = vpack.c.b16 %v821, %v821
        %v854 = vpack.c.b16 %v822, %v822
        %v855 = vpack.c.b16 %v823, %v823
        %v856 = vpack.c.b16 %v824, %v824
        %v857 = vpack.c.b16 %v825, %v825
        %v858 = vpack.c.b16 %v826, %v826
        %vm859 = vcmask 1040384
        %vm860 = vcmask 1044484
        %vm861 = vmor %vm859, %vm860
        %v862 = vrot.slane %v827, 7
        %v863 = vrot.slane %v862, 4
        %v864 = vrot.slane %v828, 7
        %v865 = vsel %vm861, %v863, %v864
        %v866 = vrot.slane %v864, 4
        %v867 = vrot.slane %v829, 7
        %v868 = vrot.slane %v867, 4
        %v869 = vrot.slane %v830, 7
        %v870 = vsel %vm861, %v868, %v869
        %v871 = vrot.slane %v869, 4
        %v872 = vrot.slane %v831, 7
        %v873 = vrot.slane %v872, 4
        %v874 = vrot.slane %v832, 7
        %v875 = vsel %vm861, %v873, %v874
        %v876 = vrot.slane %v874, 4
        %v877 = vrot.slane %v833, 7
        %v878 = vrot.slane %v877, 4
        %v879 = vrot.slane %v834, 7
        %v880 = vsel %vm861, %v878, %v879
        %v881 = vrot.slane %v879, 4
        %v882 = vrot.slane %v835, 7
        %v883 = vrot.slane %v882, 4
        %v884 = vrot.slane %v836, 7
        %v885 = vsel %vm861, %v883, %v884
        %v886 = vrot.slane %v884, 4
        %v887 = vrot.slane %v837, 7
        %v888 = vrot.slane %v887, 4
        %v889 = vrot.slane %v838, 7
        %v890 = vsel %vm861, %v888, %v889
        %v891 = vrot.slane %v889, 4
        %v892 = vrot.slane %v839, 7
        %v893 = vrot.slane %v892, 4
        %v894 = vrot.slane %v840, 7
        %v895 = vsel %vm861, %v893, %v894
        %v896 = vrot.slane %v894, 4
        %v897 = vrot.slane %v841, 7
        %v898 = vrot.slane %v897, 4
        %v899 = vrot.slane %v842, 7
        %v900 = vsel %vm861, %v898, %v899
        %v901 = vrot.slane %v899, 4
        %v902 = vrot.slane %v843, 7
        %v903 = vrot.slane %v902, 4
        %v904 = vrot.slane %v844, 7
        %v905 = vsel %vm861, %v903, %v904
        %v906 = vrot.slane %v904, 4
        %v907 = vrot.slane %v845, 7
        %v908 = vrot.slane %v907, 4
        %v909 = vrot.slane %v846, 7
        %v910 = vsel %vm861, %v908, %v909
        %v911 = vrot.slane %v909, 4
        %v912 = vrot.slane %v847, 7
        %v913 = vrot.slane %v912, 4
        %v914 = vrot.slane %v848, 7
        %v915 = vsel %vm861, %v913, %v914
        %v916 = vrot.slane %v914, 4
        %v917 = vrot.slane %v849, 7
        %v918 = vrot.slane %v917, 4
        %v919 = vrot.slane %v850, 7
        %v920 = vsel %vm861, %v918, %v919
        %v921 = vrot.slane %v919, 4
        %v922 = vrot.slane %v851, 7
        %v923 = vrot.slane %v922, 4
        %v924 = vrot.slane %v852, 7
        %v925 = vsel %vm861, %v923, %v924
        %v926 = vrot.slane %v924, 4
        %v927 = vrot.slane %v853, 7
        %v928 = vrot.slane %v927, 4
        %v929 = vrot.slane %v854, 7
        %v930 = vsel %vm861, %v928, %v929
        %v931 = vrot.slane %v929, 4
        %v932 = vrot.slane %v855, 7
        %v933 = vrot.slane %v932, 4
        %v934 = vrot.slane %v856, 7
        %v935 = vsel %vm861, %v933, %v934
        %v936 = vrot.slane %v934, 4
        %v937 = vrot.slane %v857, 7
        %v938 = vrot.slane %v937, 4
        %v939 = vrot.slane %v858, 7
        %v940 = vsel %vm861, %v938, %v939
        %v941 = vrot.slane %v939, 4
        %vm990 = vcmask 257025
        %991 = vst.msk [vmem:[%s744] sm:$0xe] %vm990, %v862
        %992 = vst.msk [vmem:[%s744 + $0x4] sm:$0xf] %vm729, %v865
        %993 = vst.msk [vmem:[%s744 + $0x8] sm:$0x1] %vm745, %v866
        %994 = vst.msk [vmem:[%s744 + $0xc] sm:$0xe] %vm990, %v867
        %995 = vst.msk [vmem:[%s744 + $0x10] sm:$0xf] %vm729, %v870
        %996 = vst.msk [vmem:[%s744 + $0x14] sm:$0x1] %vm745, %v871
        %997 = vst.msk [vmem:[%s744 + $0x18] sm:$0xe] %vm990, %v872
        %998 = vst.msk [vmem:[%s744 + $0x1c] sm:$0xf] %vm729, %v875
        %999 = vst.msk [vmem:[%s744 + $0x20] sm:$0x1] %vm745, %v876
        %1000 = vst.msk [vmem:[%s744 + $0x24] sm:$0xe] %vm990, %v877
        %1001 = vst.msk [vmem:[%s744 + $0x28] sm:$0xf] %vm729, %v880
        %1002 = vst.msk [vmem:[%s744 + $0x2c] sm:$0x1] %vm745, %v881
        %1003 = vst.msk [vmem:[%s744 + $0x30] sm:$0xe] %vm990, %v882
        %1004 = vst.msk [vmem:[%s744 + $0x34] sm:$0xf] %vm729, %v885
        %1005 = vst.msk [vmem:[%s744 + $0x38] sm:$0x1] %vm745, %v886
        %1006 = vst.msk [vmem:[%s744 + $0x3c] sm:$0xe] %vm990, %v887
        %1007 = vst.msk [vmem:[%s744 + $0x40] sm:$0xf] %vm729, %v890
        %1008 = vst.msk [vmem:[%s744 + $0x44] sm:$0x1] %vm745, %v891
        %1009 = vst.msk [vmem:[%s744 + $0x48] sm:$0xe] %vm990, %v892
        %1010 = vst.msk [vmem:[%s744 + $0x4c] sm:$0xf] %vm729, %v895
        %1011 = vst.msk [vmem:[%s744 + $0x50] sm:$0x1] %vm745, %v896
        %1012 = vst.msk [vmem:[%s744 + $0x54] sm:$0xe] %vm990, %v897
        %1013 = vst.msk [vmem:[%s744 + $0x58] sm:$0xf] %vm729, %v900
        %1014 = vst.msk [vmem:[%s744 + $0x5c] sm:$0x1] %vm745, %v901
        %1015 = vst.msk [vmem:[%s744 + $0x60] sm:$0xe] %vm990, %v902
        %1016 = vst.msk [vmem:[%s744 + $0x64] sm:$0xf] %vm729, %v905
        %1017 = vst.msk [vmem:[%s744 + $0x68] sm:$0x1] %vm745, %v906
        %1018 = vst.msk [vmem:[%s744 + $0x6c] sm:$0xe] %vm990, %v907
        %1019 = vst.msk [vmem:[%s744 + $0x70] sm:$0xf] %vm729, %v910
        %1020 = vst.msk [vmem:[%s744 + $0x74] sm:$0x1] %vm745, %v911
        %1021 = vst.msk [vmem:[%s744 + $0x78] sm:$0xe] %vm990, %v912
        %1022 = vst.msk [vmem:[%s744 + $0x7c] sm:$0xf] %vm729, %v915
        %1023 = vst.msk [vmem:[%s744 + $0x80] sm:$0x1] %vm745, %v916
        %1024 = vst.msk [vmem:[%s744 + $0x84] sm:$0xe] %vm990, %v917
        %1025 = vst.msk [vmem:[%s744 + $0x88] sm:$0xf] %vm729, %v920
        %1026 = vst.msk [vmem:[%s744 + $0x8c] sm:$0x1] %vm745, %v921
        %1027 = vst.msk [vmem:[%s744 + $0x90] sm:$0xe] %vm990, %v922
        %1028 = vst.msk [vmem:[%s744 + $0x94] sm:$0xf] %vm729, %v925
        %1029 = vst.msk [vmem:[%s744 + $0x98] sm:$0x1] %vm745, %v926
        %1030 = vst.msk [vmem:[%s744 + $0x9c] sm:$0xe] %vm990, %v927
        %1031 = vst.msk [vmem:[%s744 + $0xa0] sm:$0xf] %vm729, %v930
        %1032 = vst.msk [vmem:[%s744 + $0xa4] sm:$0x1] %vm745, %v931
        %1033 = vst.msk [vmem:[%s744 + $0xa8] sm:$0xe] %vm990, %v932
        %1034 = vst.msk [vmem:[%s744 + $0xac] sm:$0xf] %vm729, %v935
        %1035 = vst.msk [vmem:[%s744 + $0xb0] sm:$0x1] %vm745, %v936
        %1036 = vst.msk [vmem:[%s744 + $0xb4] sm:$0xe] %vm990, %v937
        %1037 = vst.msk [vmem:[%s744 + $0xb8] sm:$0xf] %vm729, %v940
        %1038 = vst.msk [vmem:[%s744 + $0xbc] sm:$0x1] %vm745, %v941
        %v1039 = vld [vmem:[#allocation2] sm:$0xf]
        %v1040 = vld [vmem:[#allocation2 + $0x4] sm:$0xf]
        %v1041 = vld [vmem:[#allocation2 + $0xc] sm:$0xf]
        %v1042 = vld [vmem:[#allocation2 + $0x10] sm:$0xf]
        %v1043 = vld [vmem:[#allocation2 + $0x18] sm:$0xf]
        %v1044 = vld [vmem:[#allocation2 + $0x1c] sm:$0xf]
        %v1045 = vld [vmem:[#allocation2 + $0x24] sm:$0xf]
        %v1046 = vld [vmem:[#allocation2 + $0x28] sm:$0xf]
        %v1047 = vld [vmem:[#allocation2 + $0x30] sm:$0xf]
        %v1048 = vld [vmem:[#allocation2 + $0x34] sm:$0xf]
        %v1049 = vld [vmem:[#allocation2 + $0x3c] sm:$0xf]
        %v1050 = vld [vmem:[#allocation2 + $0x40] sm:$0xf]
        %v1051 = vld [vmem:[#allocation2 + $0x48] sm:$0xf]
        %v1052 = vld [vmem:[#allocation2 + $0x4c] sm:$0xf]
        %v1053 = vld [vmem:[#allocation2 + $0x54] sm:$0xf]
        %v1054 = vld [vmem:[#allocation2 + $0x58] sm:$0xf]
        %v1055 = vld [vmem:[#allocation2 + $0x60] sm:$0xf]
        %v1056 = vld [vmem:[#allocation2 + $0x64] sm:$0xf]
        %v1057 = vld [vmem:[#allocation2 + $0x6c] sm:$0xf]
        %v1058 = vld [vmem:[#allocation2 + $0x70] sm:$0xf]
        %v1059 = vld [vmem:[#allocation2 + $0x78] sm:$0xf]
        %v1060 = vld [vmem:[#allocation2 + $0x7c] sm:$0xf]
        %v1061 = vld [vmem:[#allocation2 + $0x84] sm:$0xf]
        %v1062 = vld [vmem:[#allocation2 + $0x88] sm:$0xf]
        %v1063 = vld [vmem:[#allocation2 + $0x90] sm:$0xf]
        %v1064 = vld [vmem:[#allocation2 + $0x94] sm:$0xf]
        %v1065 = vld [vmem:[#allocation2 + $0x9c] sm:$0xf]
        %v1066 = vld [vmem:[#allocation2 + $0xa0] sm:$0xf]
        %v1067 = vld [vmem:[#allocation2 + $0xa8] sm:$0xf]
        %v1068 = vld [vmem:[#allocation2 + $0xac] sm:$0xf]
        %v1069 = vld [vmem:[#allocation2 + $0xb4] sm:$0xf]
        %v1070 = vld [vmem:[#allocation2 + $0xb8] sm:$0xf]
        %v1071 = vld [vmem:[#allocation2] sm:$0xe]
        %v1072 = vld [vmem:[#allocation2 + $0x8] sm:$0x1]
        %v1073 = vld [vmem:[#allocation2 + $0xc] sm:$0xe]
        %v1074 = vld [vmem:[#allocation2 + $0x14] sm:$0x1]
        %v1075 = vld [vmem:[#allocation2 + $0x18] sm:$0xe]
        %v1076 = vld [vmem:[#allocation2 + $0x20] sm:$0x1]
        %v1077 = vld [vmem:[#allocation2 + $0x24] sm:$0xe]
        %v1078 = vld [vmem:[#allocation2 + $0x2c] sm:$0x1]
        %v1079 = vld [vmem:[#allocation2 + $0x30] sm:$0xe]
        %v1080 = vld [vmem:[#allocation2 + $0x38] sm:$0x1]
        %v1081 = vld [vmem:[#allocation2 + $0x3c] sm:$0xe]
        %v1082 = vld [vmem:[#allocation2 + $0x44] sm:$0x1]
        %v1083 = vld [vmem:[#allocation2 + $0x48] sm:$0xe]
        %v1084 = vld [vmem:[#allocation2 + $0x50] sm:$0x1]
        %v1085 = vld [vmem:[#allocation2 + $0x54] sm:$0xe]
        %v1086 = vld [vmem:[#allocation2 + $0x5c] sm:$0x1]
        %v1087 = vld [vmem:[#allocation2 + $0x60] sm:$0xe]
        %v1088 = vld [vmem:[#allocation2 + $0x68] sm:$0x1]
        %v1089 = vld [vmem:[#allocation2 + $0x6c] sm:$0xe]
        %v1090 = vld [vmem:[#allocation2 + $0x74] sm:$0x1]
        %v1091 = vld [vmem:[#allocation2 + $0x78] sm:$0xe]
        %v1092 = vld [vmem:[#allocation2 + $0x80] sm:$0x1]
        %v1093 = vld [vmem:[#allocation2 + $0x84] sm:$0xe]
        %v1094 = vld [vmem:[#allocation2 + $0x8c] sm:$0x1]
        %v1095 = vld [vmem:[#allocation2 + $0x90] sm:$0xe]
        %v1096 = vld [vmem:[#allocation2 + $0x98] sm:$0x1]
        %v1097 = vld [vmem:[#allocation2 + $0x9c] sm:$0xe]
        %v1098 = vld [vmem:[#allocation2 + $0xa4] sm:$0x1]
        %v1099 = vld [vmem:[#allocation2 + $0xa8] sm:$0xe]
        %v1100 = vld [vmem:[#allocation2 + $0xb0] sm:$0x1]
        %v1101 = vld [vmem:[#allocation2 + $0xb4] sm:$0xe]
        %v1102 = vld [vmem:[#allocation2 + $0xbc] sm:$0x1]
        %v1103 = vld [vmem:[#allocation2] sm:$0xc]
        %v1104 = vld [vmem:[#allocation2 + $0x8] sm:$0x3]
        %v1105 = vld [vmem:[#allocation2 + $0xc] sm:$0xc]
        %v1106 = vld [vmem:[#allocation2 + $0x14] sm:$0x3]
        %v1107 = vld [vmem:[#allocation2 + $0x18] sm:$0xc]
        %v1108 = vld [vmem:[#allocation2 + $0x20] sm:$0x3]
        %v1109 = vld [vmem:[#allocation2 + $0x24] sm:$0xc]
        %v1110 = vld [vmem:[#allocation2 + $0x2c] sm:$0x3]
        %v1111 = vld [vmem:[#allocation2 + $0x30] sm:$0xc]
        %v1112 = vld [vmem:[#allocation2 + $0x38] sm:$0x3]
        %v1113 = vld [vmem:[#allocation2 + $0x3c] sm:$0xc]
        %v1114 = vld [vmem:[#allocation2 + $0x44] sm:$0x3]
        %v1115 = vld [vmem:[#allocation2 + $0x48] sm:$0xc]
        %v1116 = vld [vmem:[#allocation2 + $0x50] sm:$0x3]
        %v1117 = vld [vmem:[#allocation2 + $0x54] sm:$0xc]
        %v1118 = vld [vmem:[#allocation2 + $0x5c] sm:$0x3]
        %v1119 = vld [vmem:[#allocation2 + $0x60] sm:$0xc]
        %v1120 = vld [vmem:[#allocation2 + $0x68] sm:$0x3]
        %v1121 = vld [vmem:[#allocation2 + $0x6c] sm:$0xc]
        %v1122 = vld [vmem:[#allocation2 + $0x74] sm:$0x3]
        %v1123 = vld [vmem:[#allocation2 + $0x78] sm:$0xc]
        %v1124 = vld [vmem:[#allocation2 + $0x80] sm:$0x3]
        %v1125 = vld [vmem:[#allocation2 + $0x84] sm:$0xc]
        %v1126 = vld [vmem:[#allocation2 + $0x8c] sm:$0x3]
        %v1127 = vld [vmem:[#allocation2 + $0x90] sm:$0xc]
        %v1128 = vld [vmem:[#allocation2 + $0x98] sm:$0x3]
        %v1129 = vld [vmem:[#allocation2 + $0x9c] sm:$0xc]
        %v1130 = vld [vmem:[#allocation2 + $0xa4] sm:$0x3]
        %v1131 = vld [vmem:[#allocation2 + $0xa8] sm:$0xc]
        %v1132 = vld [vmem:[#allocation2 + $0xb0] sm:$0x3]
        %v1133 = vld [vmem:[#allocation2 + $0xb4] sm:$0xc]
        %v1134 = vld [vmem:[#allocation2 + $0xbc] sm:$0x3]
        %v1135 = vld [vmem:[%s744] sm:$0xf]
        %v1136 = vld [vmem:[%s744 + $0x4] sm:$0xf]
        %v1137 = vld [vmem:[%s744 + $0xc] sm:$0xf]
        %v1138 = vld [vmem:[%s744 + $0x10] sm:$0xf]
        %v1139 = vld [vmem:[%s744 + $0x18] sm:$0xf]
        %v1140 = vld [vmem:[%s744 + $0x1c] sm:$0xf]
        %v1141 = vld [vmem:[%s744 + $0x24] sm:$0xf]
        %v1142 = vld [vmem:[%s744 + $0x28] sm:$0xf]
        %v1143 = vld [vmem:[%s744 + $0x30] sm:$0xf]
        %v1144 = vld [vmem:[%s744 + $0x34] sm:$0xf]
        %v1145 = vld [vmem:[%s744 + $0x3c] sm:$0xf]
        %v1146 = vld [vmem:[%s744 + $0x40] sm:$0xf]
        %v1147 = vld [vmem:[%s744 + $0x48] sm:$0xf]
        %v1148 = vld [vmem:[%s744 + $0x4c] sm:$0xf]
        %v1149 = vld [vmem:[%s744 + $0x54] sm:$0xf]
        %v1150 = vld [vmem:[%s744 + $0x58] sm:$0xf]
        %v1151 = vld [vmem:[%s744 + $0x60] sm:$0xf]
        %v1152 = vld [vmem:[%s744 + $0x64] sm:$0xf]
        %v1153 = vld [vmem:[%s744 + $0x6c] sm:$0xf]
        %v1154 = vld [vmem:[%s744 + $0x70] sm:$0xf]
        %v1155 = vld [vmem:[%s744 + $0x78] sm:$0xf]
        %v1156 = vld [vmem:[%s744 + $0x7c] sm:$0xf]
        %v1157 = vld [vmem:[%s744 + $0x84] sm:$0xf]
        %v1158 = vld [vmem:[%s744 + $0x88] sm:$0xf]
        %v1159 = vld [vmem:[%s744 + $0x90] sm:$0xf]
        %v1160 = vld [vmem:[%s744 + $0x94] sm:$0xf]
        %v1161 = vld [vmem:[%s744 + $0x9c] sm:$0xf]
        %v1162 = vld [vmem:[%s744 + $0xa0] sm:$0xf]
        %v1163 = vld [vmem:[%s744 + $0xa8] sm:$0xf]
        %v1164 = vld [vmem:[%s744 + $0xac] sm:$0xf]
        %v1165 = vld [vmem:[%s744 + $0xb4] sm:$0xf]
        %v1166 = vld [vmem:[%s744 + $0xb8] sm:$0xf]
        %v1167 = vld [vmem:[%s744] sm:$0xe]
        %v1168 = vld [vmem:[%s744 + $0x8] sm:$0x1]
        %v1169 = vld [vmem:[%s744 + $0xc] sm:$0xe]
        %v1170 = vld [vmem:[%s744 + $0x14] sm:$0x1]
        %v1171 = vld [vmem:[%s744 + $0x18] sm:$0xe]
        %v1172 = vld [vmem:[%s744 + $0x20] sm:$0x1]
        %v1173 = vld [vmem:[%s744 + $0x24] sm:$0xe]
        %v1174 = vld [vmem:[%s744 + $0x2c] sm:$0x1]
        %v1175 = vld [vmem:[%s744 + $0x30] sm:$0xe]
        %v1176 = vld [vmem:[%s744 + $0x38] sm:$0x1]
        %v1177 = vld [vmem:[%s744 + $0x3c] sm:$0xe]
        %v1178 = vld [vmem:[%s744 + $0x44] sm:$0x1]
        %v1179 = vld [vmem:[%s744 + $0x48] sm:$0xe]
        %v1180 = vld [vmem:[%s744 + $0x50] sm:$0x1]
        %v1181 = vld [vmem:[%s744 + $0x54] sm:$0xe]
        %v1182 = vld [vmem:[%s744 + $0x5c] sm:$0x1]
        %v1183 = vld [vmem:[%s744 + $0x60] sm:$0xe]
        %v1184 = vld [vmem:[%s744 + $0x68] sm:$0x1]
        %v1185 = vld [vmem:[%s744 + $0x6c] sm:$0xe]
        %v1186 = vld [vmem:[%s744 + $0x74] sm:$0x1]
        %v1187 = vld [vmem:[%s744 + $0x78] sm:$0xe]
        %v1188 = vld [vmem:[%s744 + $0x80] sm:$0x1]
        %v1189 = vld [vmem:[%s744 + $0x84] sm:$0xe]
        %v1190 = vld [vmem:[%s744 + $0x8c] sm:$0x1]
        %v1191 = vld [vmem:[%s744 + $0x90] sm:$0xe]
        %v1192 = vld [vmem:[%s744 + $0x98] sm:$0x1]
        %v1193 = vld [vmem:[%s744 + $0x9c] sm:$0xe]
        %v1194 = vld [vmem:[%s744 + $0xa4] sm:$0x1]
        %v1195 = vld [vmem:[%s744 + $0xa8] sm:$0xe]
        %v1196 = vld [vmem:[%s744 + $0xb0] sm:$0x1]
        %v1197 = vld [vmem:[%s744 + $0xb4] sm:$0xe]
        %v1198 = vld [vmem:[%s744 + $0xbc] sm:$0x1]
        %v1199 = vld [vmem:[%s744] sm:$0xc]
        %v1200 = vld [vmem:[%s744 + $0x8] sm:$0x3]
        %v1201 = vld [vmem:[%s744 + $0xc] sm:$0xc]
        %v1202 = vld [vmem:[%s744 + $0x14] sm:$0x3]
        %v1203 = vld [vmem:[%s744 + $0x18] sm:$0xc]
        %v1204 = vld [vmem:[%s744 + $0x20] sm:$0x3]
        %v1205 = vld [vmem:[%s744 + $0x24] sm:$0xc]
        %v1206 = vld [vmem:[%s744 + $0x2c] sm:$0x3]
        %v1207 = vld [vmem:[%s744 + $0x30] sm:$0xc]
        %v1208 = vld [vmem:[%s744 + $0x38] sm:$0x3]
        %v1209 = vld [vmem:[%s744 + $0x3c] sm:$0xc]
        %v1210 = vld [vmem:[%s744 + $0x44] sm:$0x3]
        %v1211 = vld [vmem:[%s744 + $0x48] sm:$0xc]
        %v1212 = vld [vmem:[%s744 + $0x50] sm:$0x3]
        %v1213 = vld [vmem:[%s744 + $0x54] sm:$0xc]
        %v1214 = vld [vmem:[%s744 + $0x5c] sm:$0x3]
        %v1215 = vld [vmem:[%s744 + $0x60] sm:$0xc]
        %v1216 = vld [vmem:[%s744 + $0x68] sm:$0x3]
        %v1217 = vld [vmem:[%s744 + $0x6c] sm:$0xc]
        %v1218 = vld [vmem:[%s744 + $0x74] sm:$0x3]
        %v1219 = vld [vmem:[%s744 + $0x78] sm:$0xc]
        %v1220 = vld [vmem:[%s744 + $0x80] sm:$0x3]
        %v1221 = vld [vmem:[%s744 + $0x84] sm:$0xc]
        %v1222 = vld [vmem:[%s744 + $0x8c] sm:$0x3]
        %v1223 = vld [vmem:[%s744 + $0x90] sm:$0xc]
        %v1224 = vld [vmem:[%s744 + $0x98] sm:$0x3]
        %v1225 = vld [vmem:[%s744 + $0x9c] sm:$0xc]
        %v1226 = vld [vmem:[%s744 + $0xa4] sm:$0x3]
        %v1227 = vld [vmem:[%s744 + $0xa8] sm:$0xc]
        %v1228 = vld [vmem:[%s744 + $0xb0] sm:$0x3]
        %v1229 = vld [vmem:[%s744 + $0xb4] sm:$0xc]
        %v1230 = vld [vmem:[%s744 + $0xbc] sm:$0x3]
        %s1231 = scalar_lea.vmem [#allocation2], 48
        %v1232 = vld [vmem:[%s1231] sm:$0xf]
        %v1233 = vld [vmem:[%s1231 + $0x4] sm:$0xf]
        %v1234 = vld [vmem:[%s1231 + $0xc] sm:$0xf]
        %v1235 = vld [vmem:[%s1231 + $0x10] sm:$0xf]
        %v1236 = vld [vmem:[%s1231 + $0x18] sm:$0xf]
        %v1237 = vld [vmem:[%s1231 + $0x1c] sm:$0xf]
        %v1238 = vld [vmem:[%s1231 + $0x24] sm:$0xf]
        %v1239 = vld [vmem:[%s1231 + $0x28] sm:$0xf]
        %v1240 = vld [vmem:[%s1231 + $0x30] sm:$0xf]
        %v1241 = vld [vmem:[%s1231 + $0x34] sm:$0xf]
        %v1242 = vld [vmem:[%s1231 + $0x3c] sm:$0xf]
        %v1243 = vld [vmem:[%s1231 + $0x40] sm:$0xf]
        %v1244 = vld [vmem:[%s1231 + $0x48] sm:$0xf]
        %v1245 = vld [vmem:[%s1231 + $0x4c] sm:$0xf]
        %v1246 = vld [vmem:[%s1231 + $0x54] sm:$0xf]
        %v1247 = vld [vmem:[%s1231 + $0x58] sm:$0xf]
        %v1248 = vld [vmem:[%s1231 + $0x60] sm:$0xf]
        %v1249 = vld [vmem:[%s1231 + $0x64] sm:$0xf]
        %v1250 = vld [vmem:[%s1231 + $0x6c] sm:$0xf]
        %v1251 = vld [vmem:[%s1231 + $0x70] sm:$0xf]
        %v1252 = vld [vmem:[%s1231 + $0x78] sm:$0xf]
        %v1253 = vld [vmem:[%s1231 + $0x7c] sm:$0xf]
        %v1254 = vld [vmem:[%s1231 + $0x84] sm:$0xf]
        %v1255 = vld [vmem:[%s1231 + $0x88] sm:$0xf]
        %v1256 = vld [vmem:[%s1231 + $0x90] sm:$0xf]
        %v1257 = vld [vmem:[%s1231 + $0x94] sm:$0xf]
        %v1258 = vld [vmem:[%s1231 + $0x9c] sm:$0xf]
        %v1259 = vld [vmem:[%s1231 + $0xa0] sm:$0xf]
        %v1260 = vld [vmem:[%s1231 + $0xa8] sm:$0xf]
        %v1261 = vld [vmem:[%s1231 + $0xac] sm:$0xf]
        %v1262 = vld [vmem:[%s1231 + $0xb4] sm:$0xf]
        %v1263 = vld [vmem:[%s1231 + $0xb8] sm:$0xf]
        %v1264 = vld [vmem:[%s1231] sm:$0xe]
        %v1265 = vld [vmem:[%s1231 + $0x8] sm:$0x1]
        %v1266 = vld [vmem:[%s1231 + $0xc] sm:$0xe]
        %v1267 = vld [vmem:[%s1231 + $0x14] sm:$0x1]
        %v1268 = vld [vmem:[%s1231 + $0x18] sm:$0xe]
        %v1269 = vld [vmem:[%s1231 + $0x20] sm:$0x1]
        %v1270 = vld [vmem:[%s1231 + $0x24] sm:$0xe]
        %v1271 = vld [vmem:[%s1231 + $0x2c] sm:$0x1]
        %v1272 = vld [vmem:[%s1231 + $0x30] sm:$0xe]
        %v1273 = vld [vmem:[%s1231 + $0x38] sm:$0x1]
        %v1274 = vld [vmem:[%s1231 + $0x3c] sm:$0xe]
        %v1275 = vld [vmem:[%s1231 + $0x44] sm:$0x1]
        %v1276 = vld [vmem:[%s1231 + $0x48] sm:$0xe]
        %v1277 = vld [vmem:[%s1231 + $0x50] sm:$0x1]
        %v1278 = vld [vmem:[%s1231 + $0x54] sm:$0xe]
        %v1279 = vld [vmem:[%s1231 + $0x5c] sm:$0x1]
        %v1280 = vld [vmem:[%s1231 + $0x60] sm:$0xe]
        %v1281 = vld [vmem:[%s1231 + $0x68] sm:$0x1]
        %v1282 = vld [vmem:[%s1231 + $0x6c] sm:$0xe]
        %v1283 = vld [vmem:[%s1231 + $0x74] sm:$0x1]
        %v1284 = vld [vmem:[%s1231 + $0x78] sm:$0xe]
        %v1285 = vld [vmem:[%s1231 + $0x80] sm:$0x1]
        %v1286 = vld [vmem:[%s1231 + $0x84] sm:$0xe]
        %v1287 = vld [vmem:[%s1231 + $0x8c] sm:$0x1]
        %v1288 = vld [vmem:[%s1231 + $0x90] sm:$0xe]
        %v1289 = vld [vmem:[%s1231 + $0x98] sm:$0x1]
        %v1290 = vld [vmem:[%s1231 + $0x9c] sm:$0xe]
        %v1291 = vld [vmem:[%s1231 + $0xa4] sm:$0x1]
        %v1292 = vld [vmem:[%s1231 + $0xa8] sm:$0xe]
        %v1293 = vld [vmem:[%s1231 + $0xb0] sm:$0x1]
        %v1294 = vld [vmem:[%s1231 + $0xb4] sm:$0xe]
        %v1295 = vld [vmem:[%s1231 + $0xbc] sm:$0x1]
        %v1296 = vld [vmem:[%s1231] sm:$0xc]
        %v1297 = vld [vmem:[%s1231 + $0x8] sm:$0x3]
        %v1298 = vld [vmem:[%s1231 + $0xc] sm:$0xc]
        %v1299 = vld [vmem:[%s1231 + $0x14] sm:$0x3]
        %v1300 = vld [vmem:[%s1231 + $0x18] sm:$0xc]
        %v1301 = vld [vmem:[%s1231 + $0x20] sm:$0x3]
        %v1302 = vld [vmem:[%s1231 + $0x24] sm:$0xc]
        %v1303 = vld [vmem:[%s1231 + $0x2c] sm:$0x3]
        %v1304 = vld [vmem:[%s1231 + $0x30] sm:$0xc]
        %v1305 = vld [vmem:[%s1231 + $0x38] sm:$0x3]
        %v1306 = vld [vmem:[%s1231 + $0x3c] sm:$0xc]
        %v1307 = vld [vmem:[%s1231 + $0x44] sm:$0x3]
        %v1308 = vld [vmem:[%s1231 + $0x48] sm:$0xc]
        %v1309 = vld [vmem:[%s1231 + $0x50] sm:$0x3]
        %v1310 = vld [vmem:[%s1231 + $0x54] sm:$0xc]
        %v1311 = vld [vmem:[%s1231 + $0x5c] sm:$0x3]
        %v1312 = vld [vmem:[%s1231 + $0x60] sm:$0xc]
        %v1313 = vld [vmem:[%s1231 + $0x68] sm:$0x3]
        %v1314 = vld [vmem:[%s1231 + $0x6c] sm:$0xc]
        %v1315 = vld [vmem:[%s1231 + $0x74] sm:$0x3]
        %v1316 = vld [vmem:[%s1231 + $0x78] sm:$0xc]
        %v1317 = vld [vmem:[%s1231 + $0x80] sm:$0x3]
        %v1318 = vld [vmem:[%s1231 + $0x84] sm:$0xc]
        %v1319 = vld [vmem:[%s1231 + $0x8c] sm:$0x3]
        %v1320 = vld [vmem:[%s1231 + $0x90] sm:$0xc]
        %v1321 = vld [vmem:[%s1231 + $0x98] sm:$0x3]
        %v1322 = vld [vmem:[%s1231 + $0x9c] sm:$0xc]
        %v1323 = vld [vmem:[%s1231 + $0xa4] sm:$0x3]
        %v1324 = vld [vmem:[%s1231 + $0xa8] sm:$0xc]
        %v1325 = vld [vmem:[%s1231 + $0xb0] sm:$0x3]
        %v1326 = vld [vmem:[%s1231 + $0xb4] sm:$0xc]
        %v1327 = vld [vmem:[%s1231 + $0xbc] sm:$0x3]
        %v1360 = vunpack.c.l.b16 %v1039
        %v1361 = vunpack.c.l.b16 %v1040
        %v1362 = vunpack.c.l.b16 %v1041
        %v1363 = vunpack.c.l.b16 %v1042
        %v1364 = vunpack.c.l.b16 %v1043
        %v1365 = vunpack.c.l.b16 %v1044
        %v1366 = vunpack.c.l.b16 %v1045
        %v1367 = vunpack.c.l.b16 %v1046
        %v1368 = vunpack.c.l.b16 %v1047
        %v1369 = vunpack.c.l.b16 %v1048
        %v1370 = vunpack.c.l.b16 %v1049
        %v1371 = vunpack.c.l.b16 %v1050
        %v1372 = vunpack.c.l.b16 %v1051
        %v1373 = vunpack.c.l.b16 %v1052
        %v1374 = vunpack.c.l.b16 %v1053
        %v1375 = vunpack.c.l.b16 %v1054
        %v1376 = vunpack.c.l.b16 %v1055
        %v1377 = vunpack.c.l.b16 %v1056
        %v1378 = vunpack.c.l.b16 %v1057
        %v1379 = vunpack.c.l.b16 %v1058
        %v1380 = vunpack.c.l.b16 %v1059
        %v1381 = vunpack.c.l.b16 %v1060
        %v1382 = vunpack.c.l.b16 %v1061
        %v1383 = vunpack.c.l.b16 %v1062
        %v1384 = vunpack.c.l.b16 %v1063
        %v1385 = vunpack.c.l.b16 %v1064
        %v1386 = vunpack.c.l.b16 %v1065
        %v1387 = vunpack.c.l.b16 %v1066
        %v1388 = vunpack.c.l.b16 %v1067
        %v1389 = vunpack.c.l.b16 %v1068
        %v1390 = vunpack.c.l.b16 %v1069
        %v1391 = vunpack.c.l.b16 %v1070
        %v1392 = vpack.c.b16 %v1361, %v1360
        %v1393 = vpack.c.b16 %v1363, %v1362
        %v1394 = vpack.c.b16 %v1365, %v1364
        %v1395 = vpack.c.b16 %v1367, %v1366
        %v1396 = vpack.c.b16 %v1369, %v1368
        %v1397 = vpack.c.b16 %v1371, %v1370
        %v1398 = vpack.c.b16 %v1373, %v1372
        %v1399 = vpack.c.b16 %v1375, %v1374
        %v1400 = vpack.c.b16 %v1377, %v1376
        %v1401 = vpack.c.b16 %v1379, %v1378
        %v1402 = vpack.c.b16 %v1381, %v1380
        %v1403 = vpack.c.b16 %v1383, %v1382
        %v1404 = vpack.c.b16 %v1385, %v1384
        %v1405 = vpack.c.b16 %v1387, %v1386
        %v1406 = vpack.c.b16 %v1389, %v1388
        %v1407 = vpack.c.b16 %v1391, %v1390
        %v1440 = vunpack.c.l.b16 %v1071
        %v1441 = vunpack.c.l.b16 %v1072
        %v1442 = vunpack.c.l.b16 %v1073
        %v1443 = vunpack.c.l.b16 %v1074
        %v1444 = vunpack.c.l.b16 %v1075
        %v1445 = vunpack.c.l.b16 %v1076
        %v1446 = vunpack.c.l.b16 %v1077
        %v1447 = vunpack.c.l.b16 %v1078
        %v1448 = vunpack.c.l.b16 %v1079
        %v1449 = vunpack.c.l.b16 %v1080
        %v1450 = vunpack.c.l.b16 %v1081
        %v1451 = vunpack.c.l.b16 %v1082
        %v1452 = vunpack.c.l.b16 %v1083
        %v1453 = vunpack.c.l.b16 %v1084
        %v1454 = vunpack.c.l.b16 %v1085
        %v1455 = vunpack.c.l.b16 %v1086
        %v1456 = vunpack.c.l.b16 %v1087
        %v1457 = vunpack.c.l.b16 %v1088
        %v1458 = vunpack.c.l.b16 %v1089
        %v1459 = vunpack.c.l.b16 %v1090
        %v1460 = vunpack.c.l.b16 %v1091
        %v1461 = vunpack.c.l.b16 %v1092
        %v1462 = vunpack.c.l.b16 %v1093
        %v1463 = vunpack.c.l.b16 %v1094
        %v1464 = vunpack.c.l.b16 %v1095
        %v1465 = vunpack.c.l.b16 %v1096
        %v1466 = vunpack.c.l.b16 %v1097
        %v1467 = vunpack.c.l.b16 %v1098
        %v1468 = vunpack.c.l.b16 %v1099
        %v1469 = vunpack.c.l.b16 %v1100
        %v1470 = vunpack.c.l.b16 %v1101
        %v1471 = vunpack.c.l.b16 %v1102
        %v1472 = vpack.c.b16 %v1361, %v1440
        %v1473 = vpack.c.b16 %v1441, %v1441
        %v1474 = vpack.c.b16 %v1363, %v1442
        %v1475 = vpack.c.b16 %v1443, %v1443
        %v1476 = vpack.c.b16 %v1365, %v1444
        %v1477 = vpack.c.b16 %v1445, %v1445
        %v1478 = vpack.c.b16 %v1367, %v1446
        %v1479 = vpack.c.b16 %v1447, %v1447
        %v1480 = vpack.c.b16 %v1369, %v1448
        %v1481 = vpack.c.b16 %v1449, %v1449
        %v1482 = vpack.c.b16 %v1371, %v1450
        %v1483 = vpack.c.b16 %v1451, %v1451
        %v1484 = vpack.c.b16 %v1373, %v1452
        %v1485 = vpack.c.b16 %v1453, %v1453
        %v1486 = vpack.c.b16 %v1375, %v1454
        %v1487 = vpack.c.b16 %v1455, %v1455
        %v1488 = vpack.c.b16 %v1377, %v1456
        %v1489 = vpack.c.b16 %v1457, %v1457
        %v1490 = vpack.c.b16 %v1379, %v1458
        %v1491 = vpack.c.b16 %v1459, %v1459
        %v1492 = vpack.c.b16 %v1381, %v1460
        %v1493 = vpack.c.b16 %v1461, %v1461
        %v1494 = vpack.c.b16 %v1383, %v1462
        %v1495 = vpack.c.b16 %v1463, %v1463
        %v1496 = vpack.c.b16 %v1385, %v1464
        %v1497 = vpack.c.b16 %v1465, %v1465
        %v1498 = vpack.c.b16 %v1387, %v1466
        %v1499 = vpack.c.b16 %v1467, %v1467
        %v1500 = vpack.c.b16 %v1389, %v1468
        %v1501 = vpack.c.b16 %v1469, %v1469
        %v1502 = vpack.c.b16 %v1391, %v1470
        %v1503 = vpack.c.b16 %v1471, %v1471
        %vm1504 = vcmask 1046528
        %v1505 = vrot.slane %v1472, 1
        %v1506 = vrot.slane %v1473, 1
        %v1507 = vsel %vm1504, %v1505, %v1506
        %v1508 = vrot.slane %v1474, 1
        %v1509 = vrot.slane %v1475, 1
        %v1510 = vsel %vm1504, %v1508, %v1509
        %v1511 = vrot.slane %v1476, 1
        %v1512 = vrot.slane %v1477, 1
        %v1513 = vsel %vm1504, %v1511, %v1512
        %v1514 = vrot.slane %v1478, 1
        %v1515 = vrot.slane %v1479, 1
        %v1516 = vsel %vm1504, %v1514, %v1515
        %v1517 = vrot.slane %v1480, 1
        %v1518 = vrot.slane %v1481, 1
        %v1519 = vsel %vm1504, %v1517, %v1518
        %v1520 = vrot.slane %v1482, 1
        %v1521 = vrot.slane %v1483, 1
        %v1522 = vsel %vm1504, %v1520, %v1521
        %v1523 = vrot.slane %v1484, 1
        %v1524 = vrot.slane %v1485, 1
        %v1525 = vsel %vm1504, %v1523, %v1524
        %v1526 = vrot.slane %v1486, 1
        %v1527 = vrot.slane %v1487, 1
        %v1528 = vsel %vm1504, %v1526, %v1527
        %v1529 = vrot.slane %v1488, 1
        %v1530 = vrot.slane %v1489, 1
        %v1531 = vsel %vm1504, %v1529, %v1530
        %v1532 = vrot.slane %v1490, 1
        %v1533 = vrot.slane %v1491, 1
        %v1534 = vsel %vm1504, %v1532, %v1533
        %v1535 = vrot.slane %v1492, 1
        %v1536 = vrot.slane %v1493, 1
        %v1537 = vsel %vm1504, %v1535, %v1536
        %v1538 = vrot.slane %v1494, 1
        %v1539 = vrot.slane %v1495, 1
        %v1540 = vsel %vm1504, %v1538, %v1539
        %v1541 = vrot.slane %v1496, 1
        %v1542 = vrot.slane %v1497, 1
        %v1543 = vsel %vm1504, %v1541, %v1542
        %v1544 = vrot.slane %v1498, 1
        %v1545 = vrot.slane %v1499, 1
        %v1546 = vsel %vm1504, %v1544, %v1545
        %v1547 = vrot.slane %v1500, 1
        %v1548 = vrot.slane %v1501, 1
        %v1549 = vsel %vm1504, %v1547, %v1548
        %v1550 = vrot.slane %v1502, 1
        %v1551 = vrot.slane %v1503, 1
        %v1552 = vsel %vm1504, %v1550, %v1551
        %1553 = vrot.lane.b32.xlu0 %v1507, 32
        %v1554 = vpop.permute.xlu0 %1553
        %1555 = vrot.lane.b32.xlu0 %v1510, 32
        %v1556 = vpop.permute.xlu0 %1555
        %1557 = vrot.lane.b32.xlu0 %v1513, 32
        %v1558 = vpop.permute.xlu0 %1557
        %1559 = vrot.lane.b32.xlu0 %v1516, 32
        %v1560 = vpop.permute.xlu0 %1559
        %1561 = vrot.lane.b32.xlu0 %v1519, 32
        %v1562 = vpop.permute.xlu0 %1561
        %1563 = vrot.lane.b32.xlu0 %v1522, 32
        %v1564 = vpop.permute.xlu0 %1563
        %1565 = vrot.lane.b32.xlu0 %v1525, 32
        %v1566 = vpop.permute.xlu0 %1565
        %1567 = vrot.lane.b32.xlu0 %v1528, 32
        %v1568 = vpop.permute.xlu0 %1567
        %1569 = vrot.lane.b32.xlu0 %v1531, 32
        %v1570 = vpop.permute.xlu0 %1569
        %1571 = vrot.lane.b32.xlu0 %v1534, 32
        %v1572 = vpop.permute.xlu0 %1571
        %1573 = vrot.lane.b32.xlu0 %v1537, 32
        %v1574 = vpop.permute.xlu0 %1573
        %1575 = vrot.lane.b32.xlu0 %v1540, 32
        %v1576 = vpop.permute.xlu0 %1575
        %1577 = vrot.lane.b32.xlu0 %v1543, 32
        %v1578 = vpop.permute.xlu0 %1577
        %1579 = vrot.lane.b32.xlu0 %v1546, 32
        %v1580 = vpop.permute.xlu0 %1579
        %1581 = vrot.lane.b32.xlu0 %v1549, 32
        %v1582 = vpop.permute.xlu0 %1581
        %1583 = vrot.lane.b32.xlu0 %v1552, 32
        %v1584 = vpop.permute.xlu0 %1583
        %v1617 = vunpack.c.l.b16 %v1103
        %v1618 = vunpack.c.l.b16 %v1104
        %v1619 = vunpack.c.l.b16 %v1105
        %v1620 = vunpack.c.l.b16 %v1106
        %v1621 = vunpack.c.l.b16 %v1107
        %v1622 = vunpack.c.l.b16 %v1108
        %v1623 = vunpack.c.l.b16 %v1109
        %v1624 = vunpack.c.l.b16 %v1110
        %v1625 = vunpack.c.l.b16 %v1111
        %v1626 = vunpack.c.l.b16 %v1112
        %v1627 = vunpack.c.l.b16 %v1113
        %v1628 = vunpack.c.l.b16 %v1114
        %v1629 = vunpack.c.l.b16 %v1115
        %v1630 = vunpack.c.l.b16 %v1116
        %v1631 = vunpack.c.l.b16 %v1117
        %v1632 = vunpack.c.l.b16 %v1118
        %v1633 = vunpack.c.l.b16 %v1119
        %v1634 = vunpack.c.l.b16 %v1120
        %v1635 = vunpack.c.l.b16 %v1121
        %v1636 = vunpack.c.l.b16 %v1122
        %v1637 = vunpack.c.l.b16 %v1123
        %v1638 = vunpack.c.l.b16 %v1124
        %v1639 = vunpack.c.l.b16 %v1125
        %v1640 = vunpack.c.l.b16 %v1126
        %v1641 = vunpack.c.l.b16 %v1127
        %v1642 = vunpack.c.l.b16 %v1128
        %v1643 = vunpack.c.l.b16 %v1129
        %v1644 = vunpack.c.l.b16 %v1130
        %v1645 = vunpack.c.l.b16 %v1131
        %v1646 = vunpack.c.l.b16 %v1132
        %v1647 = vunpack.c.l.b16 %v1133
        %v1648 = vunpack.c.l.b16 %v1134
        %v1649 = vpack.c.b16 %v1361, %v1617
        %v1650 = vpack.c.b16 %v1618, %v1618
        %v1651 = vpack.c.b16 %v1363, %v1619
        %v1652 = vpack.c.b16 %v1620, %v1620
        %v1653 = vpack.c.b16 %v1365, %v1621
        %v1654 = vpack.c.b16 %v1622, %v1622
        %v1655 = vpack.c.b16 %v1367, %v1623
        %v1656 = vpack.c.b16 %v1624, %v1624
        %v1657 = vpack.c.b16 %v1369, %v1625
        %v1658 = vpack.c.b16 %v1626, %v1626
        %v1659 = vpack.c.b16 %v1371, %v1627
        %v1660 = vpack.c.b16 %v1628, %v1628
        %v1661 = vpack.c.b16 %v1373, %v1629
        %v1662 = vpack.c.b16 %v1630, %v1630
        %v1663 = vpack.c.b16 %v1375, %v1631
        %v1664 = vpack.c.b16 %v1632, %v1632
        %v1665 = vpack.c.b16 %v1377, %v1633
        %v1666 = vpack.c.b16 %v1634, %v1634
        %v1667 = vpack.c.b16 %v1379, %v1635
        %v1668 = vpack.c.b16 %v1636, %v1636
        %v1669 = vpack.c.b16 %v1381, %v1637
        %v1670 = vpack.c.b16 %v1638, %v1638
        %v1671 = vpack.c.b16 %v1383, %v1639
        %v1672 = vpack.c.b16 %v1640, %v1640
        %v1673 = vpack.c.b16 %v1385, %v1641
        %v1674 = vpack.c.b16 %v1642, %v1642
        %v1675 = vpack.c.b16 %v1387, %v1643
        %v1676 = vpack.c.b16 %v1644, %v1644
        %v1677 = vpack.c.b16 %v1389, %v1645
        %v1678 = vpack.c.b16 %v1646, %v1646
        %v1679 = vpack.c.b16 %v1391, %v1647
        %v1680 = vpack.c.b16 %v1648, %v1648
        %vm1681 = vcmask 1045504
        %v1682 = vrot.slane %v1649, 2
        %v1683 = vrot.slane %v1650, 2
        %v1684 = vsel %vm1681, %v1682, %v1683
        %v1685 = vrot.slane %v1651, 2
        %v1686 = vrot.slane %v1652, 2
        %v1687 = vsel %vm1681, %v1685, %v1686
        %v1688 = vrot.slane %v1653, 2
        %v1689 = vrot.slane %v1654, 2
        %v1690 = vsel %vm1681, %v1688, %v1689
        %v1691 = vrot.slane %v1655, 2
        %v1692 = vrot.slane %v1656, 2
        %v1693 = vsel %vm1681, %v1691, %v1692
        %v1694 = vrot.slane %v1657, 2
        %v1695 = vrot.slane %v1658, 2
        %v1696 = vsel %vm1681, %v1694, %v1695
        %v1697 = vrot.slane %v1659, 2
        %v1698 = vrot.slane %v1660, 2
        %v1699 = vsel %vm1681, %v1697, %v1698
        %v1700 = vrot.slane %v1661, 2
        %v1701 = vrot.slane %v1662, 2
        %v1702 = vsel %vm1681, %v1700, %v1701
        %v1703 = vrot.slane %v1663, 2
        %v1704 = vrot.slane %v1664, 2
        %v1705 = vsel %vm1681, %v1703, %v1704
        %v1706 = vrot.slane %v1665, 2
        %v1707 = vrot.slane %v1666, 2
        %v1708 = vsel %vm1681, %v1706, %v1707
        %v1709 = vrot.slane %v1667, 2
        %v1710 = vrot.slane %v1668, 2
        %v1711 = vsel %vm1681, %v1709, %v1710
        %v1712 = vrot.slane %v1669, 2
        %v1713 = vrot.slane %v1670, 2
        %v1714 = vsel %vm1681, %v1712, %v1713
        %v1715 = vrot.slane %v1671, 2
        %v1716 = vrot.slane %v1672, 2
        %v1717 = vsel %vm1681, %v1715, %v1716
        %v1718 = vrot.slane %v1673, 2
        %v1719 = vrot.slane %v1674, 2
        %v1720 = vsel %vm1681, %v1718, %v1719
        %v1721 = vrot.slane %v1675, 2
        %v1722 = vrot.slane %v1676, 2
        %v1723 = vsel %vm1681, %v1721, %v1722
        %v1724 = vrot.slane %v1677, 2
        %v1725 = vrot.slane %v1678, 2
        %v1726 = vsel %vm1681, %v1724, %v1725
        %v1727 = vrot.slane %v1679, 2
        %v1728 = vrot.slane %v1680, 2
        %v1729 = vsel %vm1681, %v1727, %v1728
        %1730 = vrot.lane.b32.xlu0 %v1684, 64
        %v1731 = vpop.permute.xlu0 %1730
        %1732 = vrot.lane.b32.xlu0 %v1687, 64
        %v1733 = vpop.permute.xlu0 %1732
        %1734 = vrot.lane.b32.xlu0 %v1690, 64
        %v1735 = vpop.permute.xlu0 %1734
        %1736 = vrot.lane.b32.xlu0 %v1693, 64
        %v1737 = vpop.permute.xlu0 %1736
        %1738 = vrot.lane.b32.xlu0 %v1696, 64
        %v1739 = vpop.permute.xlu0 %1738
        %1740 = vrot.lane.b32.xlu0 %v1699, 64
        %v1741 = vpop.permute.xlu0 %1740
        %1742 = vrot.lane.b32.xlu0 %v1702, 64
        %v1743 = vpop.permute.xlu0 %1742
        %1744 = vrot.lane.b32.xlu0 %v1705, 64
        %v1745 = vpop.permute.xlu0 %1744
        %1746 = vrot.lane.b32.xlu0 %v1708, 64
        %v1747 = vpop.permute.xlu0 %1746
        %1748 = vrot.lane.b32.xlu0 %v1711, 64
        %v1749 = vpop.permute.xlu0 %1748
        %1750 = vrot.lane.b32.xlu0 %v1714, 64
        %v1751 = vpop.permute.xlu0 %1750
        %1752 = vrot.lane.b32.xlu0 %v1717, 64
        %v1753 = vpop.permute.xlu0 %1752
        %1754 = vrot.lane.b32.xlu0 %v1720, 64
        %v1755 = vpop.permute.xlu0 %1754
        %1756 = vrot.lane.b32.xlu0 %v1723, 64
        %v1757 = vpop.permute.xlu0 %1756
        %1758 = vrot.lane.b32.xlu0 %v1726, 64
        %v1759 = vpop.permute.xlu0 %1758
        %1760 = vrot.lane.b32.xlu0 %v1729, 64
        %v1761 = vpop.permute.xlu0 %1760
        %v1794 = vunpack.c.l.b16 %v1135
        %v1795 = vunpack.c.l.b16 %v1136
        %v1796 = vunpack.c.l.b16 %v1137
        %v1797 = vunpack.c.l.b16 %v1138
        %v1798 = vunpack.c.l.b16 %v1139
        %v1799 = vunpack.c.l.b16 %v1140
        %v1800 = vunpack.c.l.b16 %v1141
        %v1801 = vunpack.c.l.b16 %v1142
        %v1802 = vunpack.c.l.b16 %v1143
        %v1803 = vunpack.c.l.b16 %v1144
        %v1804 = vunpack.c.l.b16 %v1145
        %v1805 = vunpack.c.l.b16 %v1146
        %v1806 = vunpack.c.l.b16 %v1147
        %v1807 = vunpack.c.l.b16 %v1148
        %v1808 = vunpack.c.l.b16 %v1149
        %v1809 = vunpack.c.l.b16 %v1150
        %v1810 = vunpack.c.l.b16 %v1151
        %v1811 = vunpack.c.l.b16 %v1152
        %v1812 = vunpack.c.l.b16 %v1153
        %v1813 = vunpack.c.l.b16 %v1154
        %v1814 = vunpack.c.l.b16 %v1155
        %v1815 = vunpack.c.l.b16 %v1156
        %v1816 = vunpack.c.l.b16 %v1157
        %v1817 = vunpack.c.l.b16 %v1158
        %v1818 = vunpack.c.l.b16 %v1159
        %v1819 = vunpack.c.l.b16 %v1160
        %v1820 = vunpack.c.l.b16 %v1161
        %v1821 = vunpack.c.l.b16 %v1162
        %v1822 = vunpack.c.l.b16 %v1163
        %v1823 = vunpack.c.l.b16 %v1164
        %v1824 = vunpack.c.l.b16 %v1165
        %v1825 = vunpack.c.l.b16 %v1166
        %v1826 = vpack.c.b16 %v1795, %v1794
        %v1827 = vpack.c.b16 %v1797, %v1796
        %v1828 = vpack.c.b16 %v1799, %v1798
        %v1829 = vpack.c.b16 %v1801, %v1800
        %v1830 = vpack.c.b16 %v1803, %v1802
        %v1831 = vpack.c.b16 %v1805, %v1804
        %v1832 = vpack.c.b16 %v1807, %v1806
        %v1833 = vpack.c.b16 %v1809, %v1808
        %v1834 = vpack.c.b16 %v1811, %v1810
        %v1835 = vpack.c.b16 %v1813, %v1812
        %v1836 = vpack.c.b16 %v1815, %v1814
        %v1837 = vpack.c.b16 %v1817, %v1816
        %v1838 = vpack.c.b16 %v1819, %v1818
        %v1839 = vpack.c.b16 %v1821, %v1820
        %v1840 = vpack.c.b16 %v1823, %v1822
        %v1841 = vpack.c.b16 %v1825, %v1824
        %1842 = vrot.lane.b32.xlu0 %v1826, 96
        %v1843 = vpop.permute.xlu0 %1842
        %1844 = vrot.lane.b32.xlu0 %v1827, 96
        %v1845 = vpop.permute.xlu0 %1844
        %1846 = vrot.lane.b32.xlu0 %v1828, 96
        %v1847 = vpop.permute.xlu0 %1846
        %1848 = vrot.lane.b32.xlu0 %v1829, 96
        %v1849 = vpop.permute.xlu0 %1848
        %1850 = vrot.lane.b32.xlu0 %v1830, 96
        %v1851 = vpop.permute.xlu0 %1850
        %1852 = vrot.lane.b32.xlu0 %v1831, 96
        %v1853 = vpop.permute.xlu0 %1852
        %1854 = vrot.lane.b32.xlu0 %v1832, 96
        %v1855 = vpop.permute.xlu0 %1854
        %1856 = vrot.lane.b32.xlu0 %v1833, 96
        %v1857 = vpop.permute.xlu0 %1856
        %1858 = vrot.lane.b32.xlu0 %v1834, 96
        %v1859 = vpop.permute.xlu0 %1858
        %1860 = vrot.lane.b32.xlu0 %v1835, 96
        %v1861 = vpop.permute.xlu0 %1860
        %1862 = vrot.lane.b32.xlu0 %v1836, 96
        %v1863 = vpop.permute.xlu0 %1862
        %1864 = vrot.lane.b32.xlu0 %v1837, 96
        %v1865 = vpop.permute.xlu0 %1864
        %1866 = vrot.lane.b32.xlu0 %v1838, 96
        %v1867 = vpop.permute.xlu0 %1866
        %1868 = vrot.lane.b32.xlu0 %v1839, 96
        %v1869 = vpop.permute.xlu0 %1868
        %1870 = vrot.lane.b32.xlu0 %v1840, 96
        %v1871 = vpop.permute.xlu0 %1870
        %1872 = vrot.lane.b32.xlu0 %v1841, 96
        %v1873 = vpop.permute.xlu0 %1872
        %v1906 = vunpack.c.l.b16 %v1167
        %v1907 = vunpack.c.l.b16 %v1168
        %v1908 = vunpack.c.l.b16 %v1169
        %v1909 = vunpack.c.l.b16 %v1170
        %v1910 = vunpack.c.l.b16 %v1171
        %v1911 = vunpack.c.l.b16 %v1172
        %v1912 = vunpack.c.l.b16 %v1173
        %v1913 = vunpack.c.l.b16 %v1174
        %v1914 = vunpack.c.l.b16 %v1175
        %v1915 = vunpack.c.l.b16 %v1176
        %v1916 = vunpack.c.l.b16 %v1177
        %v1917 = vunpack.c.l.b16 %v1178
        %v1918 = vunpack.c.l.b16 %v1179
        %v1919 = vunpack.c.l.b16 %v1180
        %v1920 = vunpack.c.l.b16 %v1181
        %v1921 = vunpack.c.l.b16 %v1182
        %v1922 = vunpack.c.l.b16 %v1183
        %v1923 = vunpack.c.l.b16 %v1184
        %v1924 = vunpack.c.l.b16 %v1185
        %v1925 = vunpack.c.l.b16 %v1186
        %v1926 = vunpack.c.l.b16 %v1187
        %v1927 = vunpack.c.l.b16 %v1188
        %v1928 = vunpack.c.l.b16 %v1189
        %v1929 = vunpack.c.l.b16 %v1190
        %v1930 = vunpack.c.l.b16 %v1191
        %v1931 = vunpack.c.l.b16 %v1192
        %v1932 = vunpack.c.l.b16 %v1193
        %v1933 = vunpack.c.l.b16 %v1194
        %v1934 = vunpack.c.l.b16 %v1195
        %v1935 = vunpack.c.l.b16 %v1196
        %v1936 = vunpack.c.l.b16 %v1197
        %v1937 = vunpack.c.l.b16 %v1198
        %v1938 = vpack.c.b16 %v1795, %v1906
        %v1939 = vpack.c.b16 %v1907, %v1907
        %v1940 = vpack.c.b16 %v1797, %v1908
        %v1941 = vpack.c.b16 %v1909, %v1909
        %v1942 = vpack.c.b16 %v1799, %v1910
        %v1943 = vpack.c.b16 %v1911, %v1911
        %v1944 = vpack.c.b16 %v1801, %v1912
        %v1945 = vpack.c.b16 %v1913, %v1913
        %v1946 = vpack.c.b16 %v1803, %v1914
        %v1947 = vpack.c.b16 %v1915, %v1915
        %v1948 = vpack.c.b16 %v1805, %v1916
        %v1949 = vpack.c.b16 %v1917, %v1917
        %v1950 = vpack.c.b16 %v1807, %v1918
        %v1951 = vpack.c.b16 %v1919, %v1919
        %v1952 = vpack.c.b16 %v1809, %v1920
        %v1953 = vpack.c.b16 %v1921, %v1921
        %v1954 = vpack.c.b16 %v1811, %v1922
        %v1955 = vpack.c.b16 %v1923, %v1923
        %v1956 = vpack.c.b16 %v1813, %v1924
        %v1957 = vpack.c.b16 %v1925, %v1925
        %v1958 = vpack.c.b16 %v1815, %v1926
        %v1959 = vpack.c.b16 %v1927, %v1927
        %v1960 = vpack.c.b16 %v1817, %v1928
        %v1961 = vpack.c.b16 %v1929, %v1929
        %v1962 = vpack.c.b16 %v1819, %v1930
        %v1963 = vpack.c.b16 %v1931, %v1931
        %v1964 = vpack.c.b16 %v1821, %v1932
        %v1965 = vpack.c.b16 %v1933, %v1933
        %v1966 = vpack.c.b16 %v1823, %v1934
        %v1967 = vpack.c.b16 %v1935, %v1935
        %v1968 = vpack.c.b16 %v1825, %v1936
        %v1969 = vpack.c.b16 %v1937, %v1937
        %v1970 = vrot.slane %v1938, 1
        %v1971 = vrot.slane %v1939, 1
        %v1972 = vsel %vm1504, %v1970, %v1971
        %v1973 = vrot.slane %v1940, 1
        %v1974 = vrot.slane %v1941, 1
        %v1975 = vsel %vm1504, %v1973, %v1974
        %v1976 = vrot.slane %v1942, 1
        %v1977 = vrot.slane %v1943, 1
        %v1978 = vsel %vm1504, %v1976, %v1977
        %v1979 = vrot.slane %v1944, 1
        %v1980 = vrot.slane %v1945, 1
        %v1981 = vsel %vm1504, %v1979, %v1980
        %v1982 = vrot.slane %v1946, 1
        %v1983 = vrot.slane %v1947, 1
        %v1984 = vsel %vm1504, %v1982, %v1983
        %v1985 = vrot.slane %v1948, 1
        %v1986 = vrot.slane %v1949, 1
        %v1987 = vsel %vm1504, %v1985, %v1986
        %v1988 = vrot.slane %v1950, 1
        %v1989 = vrot.slane %v1951, 1
        %v1990 = vsel %vm1504, %v1988, %v1989
        %v1991 = vrot.slane %v1952, 1
        %v1992 = vrot.slane %v1953, 1
        %v1993 = vsel %vm1504, %v1991, %v1992
        %v1994 = vrot.slane %v1954, 1
        %v1995 = vrot.slane %v1955, 1
        %v1996 = vsel %vm1504, %v1994, %v1995
        %v1997 = vrot.slane %v1956, 1
        %v1998 = vrot.slane %v1957, 1
        %v1999 = vsel %vm1504, %v1997, %v1998
        %v2000 = vrot.slane %v1958, 1
        %v2001 = vrot.slane %v1959, 1
        %v2002 = vsel %vm1504, %v2000, %v2001
        %v2003 = vrot.slane %v1960, 1
        %v2004 = vrot.slane %v1961, 1
        %v2005 = vsel %vm1504, %v2003, %v2004
        %v2006 = vrot.slane %v1962, 1
        %v2007 = vrot.slane %v1963, 1
        %v2008 = vsel %vm1504, %v2006, %v2007
        %v2009 = vrot.slane %v1964, 1
        %v2010 = vrot.slane %v1965, 1
        %v2011 = vsel %vm1504, %v2009, %v2010
        %v2012 = vrot.slane %v1966, 1
        %v2013 = vrot.slane %v1967, 1
        %v2014 = vsel %vm1504, %v2012, %v2013
        %v2015 = vrot.slane %v1968, 1
        %v2016 = vrot.slane %v1969, 1
        %v2017 = vsel %vm1504, %v2015, %v2016
        %v2050 = vunpack.c.l.b16 %v1199
        %v2051 = vunpack.c.l.b16 %v1200
        %v2052 = vunpack.c.l.b16 %v1201
        %v2053 = vunpack.c.l.b16 %v1202
        %v2054 = vunpack.c.l.b16 %v1203
        %v2055 = vunpack.c.l.b16 %v1204
        %v2056 = vunpack.c.l.b16 %v1205
        %v2057 = vunpack.c.l.b16 %v1206
        %v2058 = vunpack.c.l.b16 %v1207
        %v2059 = vunpack.c.l.b16 %v1208
        %v2060 = vunpack.c.l.b16 %v1209
        %v2061 = vunpack.c.l.b16 %v1210
        %v2062 = vunpack.c.l.b16 %v1211
        %v2063 = vunpack.c.l.b16 %v1212
        %v2064 = vunpack.c.l.b16 %v1213
        %v2065 = vunpack.c.l.b16 %v1214
        %v2066 = vunpack.c.l.b16 %v1215
        %v2067 = vunpack.c.l.b16 %v1216
        %v2068 = vunpack.c.l.b16 %v1217
        %v2069 = vunpack.c.l.b16 %v1218
        %v2070 = vunpack.c.l.b16 %v1219
        %v2071 = vunpack.c.l.b16 %v1220
        %v2072 = vunpack.c.l.b16 %v1221
        %v2073 = vunpack.c.l.b16 %v1222
        %v2074 = vunpack.c.l.b16 %v1223
        %v2075 = vunpack.c.l.b16 %v1224
        %v2076 = vunpack.c.l.b16 %v1225
        %v2077 = vunpack.c.l.b16 %v1226
        %v2078 = vunpack.c.l.b16 %v1227
        %v2079 = vunpack.c.l.b16 %v1228
        %v2080 = vunpack.c.l.b16 %v1229
        %v2081 = vunpack.c.l.b16 %v1230
        %v2082 = vpack.c.b16 %v1795, %v2050
        %v2083 = vpack.c.b16 %v2051, %v2051
        %v2084 = vpack.c.b16 %v1797, %v2052
        %v2085 = vpack.c.b16 %v2053, %v2053
        %v2086 = vpack.c.b16 %v1799, %v2054
        %v2087 = vpack.c.b16 %v2055, %v2055
        %v2088 = vpack.c.b16 %v1801, %v2056
        %v2089 = vpack.c.b16 %v2057, %v2057
        %v2090 = vpack.c.b16 %v1803, %v2058
        %v2091 = vpack.c.b16 %v2059, %v2059
        %v2092 = vpack.c.b16 %v1805, %v2060
        %v2093 = vpack.c.b16 %v2061, %v2061
        %v2094 = vpack.c.b16 %v1807, %v2062
        %v2095 = vpack.c.b16 %v2063, %v2063
        %v2096 = vpack.c.b16 %v1809, %v2064
        %v2097 = vpack.c.b16 %v2065, %v2065
        %v2098 = vpack.c.b16 %v1811, %v2066
        %v2099 = vpack.c.b16 %v2067, %v2067
        %v2100 = vpack.c.b16 %v1813, %v2068
        %v2101 = vpack.c.b16 %v2069, %v2069
        %v2102 = vpack.c.b16 %v1815, %v2070
        %v2103 = vpack.c.b16 %v2071, %v2071
        %v2104 = vpack.c.b16 %v1817, %v2072
        %v2105 = vpack.c.b16 %v2073, %v2073
        %v2106 = vpack.c.b16 %v1819, %v2074
        %v2107 = vpack.c.b16 %v2075, %v2075
        %v2108 = vpack.c.b16 %v1821, %v2076
        %v2109 = vpack.c.b16 %v2077, %v2077
        %v2110 = vpack.c.b16 %v1823, %v2078
        %v2111 = vpack.c.b16 %v2079, %v2079
        %v2112 = vpack.c.b16 %v1825, %v2080
        %v2113 = vpack.c.b16 %v2081, %v2081
        %v2114 = vrot.slane %v2082, 2
        %v2115 = vrot.slane %v2083, 2
        %v2116 = vsel %vm1681, %v2114, %v2115
        %v2117 = vrot.slane %v2084, 2
        %v2118 = vrot.slane %v2085, 2
        %v2119 = vsel %vm1681, %v2117, %v2118
        %v2120 = vrot.slane %v2086, 2
        %v2121 = vrot.slane %v2087, 2
        %v2122 = vsel %vm1681, %v2120, %v2121
        %v2123 = vrot.slane %v2088, 2
        %v2124 = vrot.slane %v2089, 2
        %v2125 = vsel %vm1681, %v2123, %v2124
        %v2126 = vrot.slane %v2090, 2
        %v2127 = vrot.slane %v2091, 2
        %v2128 = vsel %vm1681, %v2126, %v2127
        %v2129 = vrot.slane %v2092, 2
        %v2130 = vrot.slane %v2093, 2
        %v2131 = vsel %vm1681, %v2129, %v2130
        %v2132 = vrot.slane %v2094, 2
        %v2133 = vrot.slane %v2095, 2
        %v2134 = vsel %vm1681, %v2132, %v2133
        %v2135 = vrot.slane %v2096, 2
        %v2136 = vrot.slane %v2097, 2
        %v2137 = vsel %vm1681, %v2135, %v2136
        %v2138 = vrot.slane %v2098, 2
        %v2139 = vrot.slane %v2099, 2
        %v2140 = vsel %vm1681, %v2138, %v2139
        %v2141 = vrot.slane %v2100, 2
        %v2142 = vrot.slane %v2101, 2
        %v2143 = vsel %vm1681, %v2141, %v2142
        %v2144 = vrot.slane %v2102, 2
        %v2145 = vrot.slane %v2103, 2
        %v2146 = vsel %vm1681, %v2144, %v2145
        %v2147 = vrot.slane %v2104, 2
        %v2148 = vrot.slane %v2105, 2
        %v2149 = vsel %vm1681, %v2147, %v2148
        %v2150 = vrot.slane %v2106, 2
        %v2151 = vrot.slane %v2107, 2
        %v2152 = vsel %vm1681, %v2150, %v2151
        %v2153 = vrot.slane %v2108, 2
        %v2154 = vrot.slane %v2109, 2
        %v2155 = vsel %vm1681, %v2153, %v2154
        %v2156 = vrot.slane %v2110, 2
        %v2157 = vrot.slane %v2111, 2
        %v2158 = vsel %vm1681, %v2156, %v2157
        %v2159 = vrot.slane %v2112, 2
        %v2160 = vrot.slane %v2113, 2
        %v2161 = vsel %vm1681, %v2159, %v2160
        %2162 = vrot.lane.b32.xlu0 %v2116, 32
        %v2163 = vpop.permute.xlu0 %2162
        %2164 = vrot.lane.b32.xlu0 %v2119, 32
        %v2165 = vpop.permute.xlu0 %2164
        %2166 = vrot.lane.b32.xlu0 %v2122, 32
        %v2167 = vpop.permute.xlu0 %2166
        %2168 = vrot.lane.b32.xlu0 %v2125, 32
        %v2169 = vpop.permute.xlu0 %2168
        %2170 = vrot.lane.b32.xlu0 %v2128, 32
        %v2171 = vpop.permute.xlu0 %2170
        %2172 = vrot.lane.b32.xlu0 %v2131, 32
        %v2173 = vpop.permute.xlu0 %2172
        %2174 = vrot.lane.b32.xlu0 %v2134, 32
        %v2175 = vpop.permute.xlu0 %2174
        %2176 = vrot.lane.b32.xlu0 %v2137, 32
        %v2177 = vpop.permute.xlu0 %2176
        %2178 = vrot.lane.b32.xlu0 %v2140, 32
        %v2179 = vpop.permute.xlu0 %2178
        %2180 = vrot.lane.b32.xlu0 %v2143, 32
        %v2181 = vpop.permute.xlu0 %2180
        %2182 = vrot.lane.b32.xlu0 %v2146, 32
        %v2183 = vpop.permute.xlu0 %2182
        %2184 = vrot.lane.b32.xlu0 %v2149, 32
        %v2185 = vpop.permute.xlu0 %2184
        %2186 = vrot.lane.b32.xlu0 %v2152, 32
        %v2187 = vpop.permute.xlu0 %2186
        %2188 = vrot.lane.b32.xlu0 %v2155, 32
        %v2189 = vpop.permute.xlu0 %2188
        %2190 = vrot.lane.b32.xlu0 %v2158, 32
        %v2191 = vpop.permute.xlu0 %2190
        %2192 = vrot.lane.b32.xlu0 %v2161, 32
        %v2193 = vpop.permute.xlu0 %2192
        %v2226 = vunpack.c.l.b16 %v1232
        %v2227 = vunpack.c.l.b16 %v1233
        %v2228 = vunpack.c.l.b16 %v1234
        %v2229 = vunpack.c.l.b16 %v1235
        %v2230 = vunpack.c.l.b16 %v1236
        %v2231 = vunpack.c.l.b16 %v1237
        %v2232 = vunpack.c.l.b16 %v1238
        %v2233 = vunpack.c.l.b16 %v1239
        %v2234 = vunpack.c.l.b16 %v1240
        %v2235 = vunpack.c.l.b16 %v1241
        %v2236 = vunpack.c.l.b16 %v1242
        %v2237 = vunpack.c.l.b16 %v1243
        %v2238 = vunpack.c.l.b16 %v1244
        %v2239 = vunpack.c.l.b16 %v1245
        %v2240 = vunpack.c.l.b16 %v1246
        %v2241 = vunpack.c.l.b16 %v1247
        %v2242 = vunpack.c.l.b16 %v1248
        %v2243 = vunpack.c.l.b16 %v1249
        %v2244 = vunpack.c.l.b16 %v1250
        %v2245 = vunpack.c.l.b16 %v1251
        %v2246 = vunpack.c.l.b16 %v1252
        %v2247 = vunpack.c.l.b16 %v1253
        %v2248 = vunpack.c.l.b16 %v1254
        %v2249 = vunpack.c.l.b16 %v1255
        %v2250 = vunpack.c.l.b16 %v1256
        %v2251 = vunpack.c.l.b16 %v1257
        %v2252 = vunpack.c.l.b16 %v1258
        %v2253 = vunpack.c.l.b16 %v1259
        %v2254 = vunpack.c.l.b16 %v1260
        %v2255 = vunpack.c.l.b16 %v1261
        %v2256 = vunpack.c.l.b16 %v1262
        %v2257 = vunpack.c.l.b16 %v1263
        %v2258 = vpack.c.b16 %v2227, %v2226
        %v2259 = vpack.c.b16 %v2229, %v2228
        %v2260 = vpack.c.b16 %v2231, %v2230
        %v2261 = vpack.c.b16 %v2233, %v2232
        %v2262 = vpack.c.b16 %v2235, %v2234
        %v2263 = vpack.c.b16 %v2237, %v2236
        %v2264 = vpack.c.b16 %v2239, %v2238
        %v2265 = vpack.c.b16 %v2241, %v2240
        %v2266 = vpack.c.b16 %v2243, %v2242
        %v2267 = vpack.c.b16 %v2245, %v2244
        %v2268 = vpack.c.b16 %v2247, %v2246
        %v2269 = vpack.c.b16 %v2249, %v2248
        %v2270 = vpack.c.b16 %v2251, %v2250
        %v2271 = vpack.c.b16 %v2253, %v2252
        %v2272 = vpack.c.b16 %v2255, %v2254
        %v2273 = vpack.c.b16 %v2257, %v2256
        %2274 = vrot.lane.b32.xlu0 %v2258, 64
        %v2275 = vpop.permute.xlu0 %2274
        %2276 = vrot.lane.b32.xlu0 %v2259, 64
        %v2277 = vpop.permute.xlu0 %2276
        %2278 = vrot.lane.b32.xlu0 %v2260, 64
        %v2279 = vpop.permute.xlu0 %2278
        %2280 = vrot.lane.b32.xlu0 %v2261, 64
        %v2281 = vpop.permute.xlu0 %2280
        %2282 = vrot.lane.b32.xlu0 %v2262, 64
        %v2283 = vpop.permute.xlu0 %2282
        %2284 = vrot.lane.b32.xlu0 %v2263, 64
        %v2285 = vpop.permute.xlu0 %2284
        %2286 = vrot.lane.b32.xlu0 %v2264, 64
        %v2287 = vpop.permute.xlu0 %2286
        %2288 = vrot.lane.b32.xlu0 %v2265, 64
        %v2289 = vpop.permute.xlu0 %2288
        %2290 = vrot.lane.b32.xlu0 %v2266, 64
        %v2291 = vpop.permute.xlu0 %2290
        %2292 = vrot.lane.b32.xlu0 %v2267, 64
        %v2293 = vpop.permute.xlu0 %2292
        %2294 = vrot.lane.b32.xlu0 %v2268, 64
        %v2295 = vpop.permute.xlu0 %2294
        %2296 = vrot.lane.b32.xlu0 %v2269, 64
        %v2297 = vpop.permute.xlu0 %2296
        %2298 = vrot.lane.b32.xlu0 %v2270, 64
        %v2299 = vpop.permute.xlu0 %2298
        %2300 = vrot.lane.b32.xlu0 %v2271, 64
        %v2301 = vpop.permute.xlu0 %2300
        %2302 = vrot.lane.b32.xlu0 %v2272, 64
        %v2303 = vpop.permute.xlu0 %2302
        %2304 = vrot.lane.b32.xlu0 %v2273, 64
        %v2305 = vpop.permute.xlu0 %2304
        %v2338 = vunpack.c.l.b16 %v1264
        %v2339 = vunpack.c.l.b16 %v1265
        %v2340 = vunpack.c.l.b16 %v1266
        %v2341 = vunpack.c.l.b16 %v1267
        %v2342 = vunpack.c.l.b16 %v1268
        %v2343 = vunpack.c.l.b16 %v1269
        %v2344 = vunpack.c.l.b16 %v1270
        %v2345 = vunpack.c.l.b16 %v1271
        %v2346 = vunpack.c.l.b16 %v1272
        %v2347 = vunpack.c.l.b16 %v1273
        %v2348 = vunpack.c.l.b16 %v1274
        %v2349 = vunpack.c.l.b16 %v1275
        %v2350 = vunpack.c.l.b16 %v1276
        %v2351 = vunpack.c.l.b16 %v1277
        %v2352 = vunpack.c.l.b16 %v1278
        %v2353 = vunpack.c.l.b16 %v1279
        %v2354 = vunpack.c.l.b16 %v1280
        %v2355 = vunpack.c.l.b16 %v1281
        %v2356 = vunpack.c.l.b16 %v1282
        %v2357 = vunpack.c.l.b16 %v1283
        %v2358 = vunpack.c.l.b16 %v1284
        %v2359 = vunpack.c.l.b16 %v1285
        %v2360 = vunpack.c.l.b16 %v1286
        %v2361 = vunpack.c.l.b16 %v1287
        %v2362 = vunpack.c.l.b16 %v1288
        %v2363 = vunpack.c.l.b16 %v1289
        %v2364 = vunpack.c.l.b16 %v1290
        %v2365 = vunpack.c.l.b16 %v1291
        %v2366 = vunpack.c.l.b16 %v1292
        %v2367 = vunpack.c.l.b16 %v1293
        %v2368 = vunpack.c.l.b16 %v1294
        %v2369 = vunpack.c.l.b16 %v1295
        %v2370 = vpack.c.b16 %v2227, %v2338
        %v2371 = vpack.c.b16 %v2339, %v2339
        %v2372 = vpack.c.b16 %v2229, %v2340
        %v2373 = vpack.c.b16 %v2341, %v2341
        %v2374 = vpack.c.b16 %v2231, %v2342
        %v2375 = vpack.c.b16 %v2343, %v2343
        %v2376 = vpack.c.b16 %v2233, %v2344
        %v2377 = vpack.c.b16 %v2345, %v2345
        %v2378 = vpack.c.b16 %v2235, %v2346
        %v2379 = vpack.c.b16 %v2347, %v2347
        %v2380 = vpack.c.b16 %v2237, %v2348
        %v2381 = vpack.c.b16 %v2349, %v2349
        %v2382 = vpack.c.b16 %v2239, %v2350
        %v2383 = vpack.c.b16 %v2351, %v2351
        %v2384 = vpack.c.b16 %v2241, %v2352
        %v2385 = vpack.c.b16 %v2353, %v2353
        %v2386 = vpack.c.b16 %v2243, %v2354
        %v2387 = vpack.c.b16 %v2355, %v2355
        %v2388 = vpack.c.b16 %v2245, %v2356
        %v2389 = vpack.c.b16 %v2357, %v2357
        %v2390 = vpack.c.b16 %v2247, %v2358
        %v2391 = vpack.c.b16 %v2359, %v2359
        %v2392 = vpack.c.b16 %v2249, %v2360
        %v2393 = vpack.c.b16 %v2361, %v2361
        %v2394 = vpack.c.b16 %v2251, %v2362
        %v2395 = vpack.c.b16 %v2363, %v2363
        %v2396 = vpack.c.b16 %v2253, %v2364
        %v2397 = vpack.c.b16 %v2365, %v2365
        %v2398 = vpack.c.b16 %v2255, %v2366
        %v2399 = vpack.c.b16 %v2367, %v2367
        %v2400 = vpack.c.b16 %v2257, %v2368
        %v2401 = vpack.c.b16 %v2369, %v2369
        %v2402 = vrot.slane %v2370, 1
        %v2403 = vrot.slane %v2371, 1
        %v2404 = vsel %vm1504, %v2402, %v2403
        %v2405 = vrot.slane %v2372, 1
        %v2406 = vrot.slane %v2373, 1
        %v2407 = vsel %vm1504, %v2405, %v2406
        %v2408 = vrot.slane %v2374, 1
        %v2409 = vrot.slane %v2375, 1
        %v2410 = vsel %vm1504, %v2408, %v2409
        %v2411 = vrot.slane %v2376, 1
        %v2412 = vrot.slane %v2377, 1
        %v2413 = vsel %vm1504, %v2411, %v2412
        %v2414 = vrot.slane %v2378, 1
        %v2415 = vrot.slane %v2379, 1
        %v2416 = vsel %vm1504, %v2414, %v2415
        %v2417 = vrot.slane %v2380, 1
        %v2418 = vrot.slane %v2381, 1
        %v2419 = vsel %vm1504, %v2417, %v2418
        %v2420 = vrot.slane %v2382, 1
        %v2421 = vrot.slane %v2383, 1
        %v2422 = vsel %vm1504, %v2420, %v2421
        %v2423 = vrot.slane %v2384, 1
        %v2424 = vrot.slane %v2385, 1
        %v2425 = vsel %vm1504, %v2423, %v2424
        %v2426 = vrot.slane %v2386, 1
        %v2427 = vrot.slane %v2387, 1
        %v2428 = vsel %vm1504, %v2426, %v2427
        %v2429 = vrot.slane %v2388, 1
        %v2430 = vrot.slane %v2389, 1
        %v2431 = vsel %vm1504, %v2429, %v2430
        %v2432 = vrot.slane %v2390, 1
        %v2433 = vrot.slane %v2391, 1
        %v2434 = vsel %vm1504, %v2432, %v2433
        %v2435 = vrot.slane %v2392, 1
        %v2436 = vrot.slane %v2393, 1
        %v2437 = vsel %vm1504, %v2435, %v2436
        %v2438 = vrot.slane %v2394, 1
        %v2439 = vrot.slane %v2395, 1
        %v2440 = vsel %vm1504, %v2438, %v2439
        %v2441 = vrot.slane %v2396, 1
        %v2442 = vrot.slane %v2397, 1
        %v2443 = vsel %vm1504, %v2441, %v2442
        %v2444 = vrot.slane %v2398, 1
        %v2445 = vrot.slane %v2399, 1
        %v2446 = vsel %vm1504, %v2444, %v2445
        %v2447 = vrot.slane %v2400, 1
        %v2448 = vrot.slane %v2401, 1
        %v2449 = vsel %vm1504, %v2447, %v2448
        %2450 = vrot.lane.b32.xlu0 %v2404, 96
        %v2451 = vpop.permute.xlu0 %2450
        %2452 = vrot.lane.b32.xlu0 %v2407, 96
        %v2453 = vpop.permute.xlu0 %2452
        %2454 = vrot.lane.b32.xlu0 %v2410, 96
        %v2455 = vpop.permute.xlu0 %2454
        %2456 = vrot.lane.b32.xlu0 %v2413, 96
        %v2457 = vpop.permute.xlu0 %2456
        %2458 = vrot.lane.b32.xlu0 %v2416, 96
        %v2459 = vpop.permute.xlu0 %2458
        %2460 = vrot.lane.b32.xlu0 %v2419, 96
        %v2461 = vpop.permute.xlu0 %2460
        %2462 = vrot.lane.b32.xlu0 %v2422, 96
        %v2463 = vpop.permute.xlu0 %2462
        %2464 = vrot.lane.b32.xlu0 %v2425, 96
        %v2465 = vpop.permute.xlu0 %2464
        %2466 = vrot.lane.b32.xlu0 %v2428, 96
        %v2467 = vpop.permute.xlu0 %2466
        %2468 = vrot.lane.b32.xlu0 %v2431, 96
        %v2469 = vpop.permute.xlu0 %2468
        %2470 = vrot.lane.b32.xlu0 %v2434, 96
        %v2471 = vpop.permute.xlu0 %2470
        %2472 = vrot.lane.b32.xlu0 %v2437, 96
        %v2473 = vpop.permute.xlu0 %2472
        %2474 = vrot.lane.b32.xlu0 %v2440, 96
        %v2475 = vpop.permute.xlu0 %2474
        %2476 = vrot.lane.b32.xlu0 %v2443, 96
        %v2477 = vpop.permute.xlu0 %2476
        %2478 = vrot.lane.b32.xlu0 %v2446, 96
        %v2479 = vpop.permute.xlu0 %2478
        %2480 = vrot.lane.b32.xlu0 %v2449, 96
        %v2481 = vpop.permute.xlu0 %2480
        %v2514 = vunpack.c.l.b16 %v1296
        %v2515 = vunpack.c.l.b16 %v1297
        %v2516 = vunpack.c.l.b16 %v1298
        %v2517 = vunpack.c.l.b16 %v1299
        %v2518 = vunpack.c.l.b16 %v1300
        %v2519 = vunpack.c.l.b16 %v1301
        %v2520 = vunpack.c.l.b16 %v1302
        %v2521 = vunpack.c.l.b16 %v1303
        %v2522 = vunpack.c.l.b16 %v1304
        %v2523 = vunpack.c.l.b16 %v1305
        %v2524 = vunpack.c.l.b16 %v1306
        %v2525 = vunpack.c.l.b16 %v1307
        %v2526 = vunpack.c.l.b16 %v1308
        %v2527 = vunpack.c.l.b16 %v1309
        %v2528 = vunpack.c.l.b16 %v1310
        %v2529 = vunpack.c.l.b16 %v1311
        %v2530 = vunpack.c.l.b16 %v1312
        %v2531 = vunpack.c.l.b16 %v1313
        %v2532 = vunpack.c.l.b16 %v1314
        %v2533 = vunpack.c.l.b16 %v1315
        %v2534 = vunpack.c.l.b16 %v1316
        %v2535 = vunpack.c.l.b16 %v1317
        %v2536 = vunpack.c.l.b16 %v1318
        %v2537 = vunpack.c.l.b16 %v1319
        %v2538 = vunpack.c.l.b16 %v1320
        %v2539 = vunpack.c.l.b16 %v1321
        %v2540 = vunpack.c.l.b16 %v1322
        %v2541 = vunpack.c.l.b16 %v1323
        %v2542 = vunpack.c.l.b16 %v1324
        %v2543 = vunpack.c.l.b16 %v1325
        %v2544 = vunpack.c.l.b16 %v1326
        %v2545 = vunpack.c.l.b16 %v1327
        %v2546 = vpack.c.b16 %v2227, %v2514
        %v2547 = vpack.c.b16 %v2515, %v2515
        %v2548 = vpack.c.b16 %v2229, %v2516
        %v2549 = vpack.c.b16 %v2517, %v2517
        %v2550 = vpack.c.b16 %v2231, %v2518
        %v2551 = vpack.c.b16 %v2519, %v2519
        %v2552 = vpack.c.b16 %v2233, %v2520
        %v2553 = vpack.c.b16 %v2521, %v2521
        %v2554 = vpack.c.b16 %v2235, %v2522
        %v2555 = vpack.c.b16 %v2523, %v2523
        %v2556 = vpack.c.b16 %v2237, %v2524
        %v2557 = vpack.c.b16 %v2525, %v2525
        %v2558 = vpack.c.b16 %v2239, %v2526
        %v2559 = vpack.c.b16 %v2527, %v2527
        %v2560 = vpack.c.b16 %v2241, %v2528
        %v2561 = vpack.c.b16 %v2529, %v2529
        %v2562 = vpack.c.b16 %v2243, %v2530
        %v2563 = vpack.c.b16 %v2531, %v2531
        %v2564 = vpack.c.b16 %v2245, %v2532
        %v2565 = vpack.c.b16 %v2533, %v2533
        %v2566 = vpack.c.b16 %v2247, %v2534
        %v2567 = vpack.c.b16 %v2535, %v2535
        %v2568 = vpack.c.b16 %v2249, %v2536
        %v2569 = vpack.c.b16 %v2537, %v2537
        %v2570 = vpack.c.b16 %v2251, %v2538
        %v2571 = vpack.c.b16 %v2539, %v2539
        %v2572 = vpack.c.b16 %v2253, %v2540
        %v2573 = vpack.c.b16 %v2541, %v2541
        %v2574 = vpack.c.b16 %v2255, %v2542
        %v2575 = vpack.c.b16 %v2543, %v2543
        %v2576 = vpack.c.b16 %v2257, %v2544
        %v2577 = vpack.c.b16 %v2545, %v2545
        %v2578 = vrot.slane %v2546, 2
        %v2579 = vrot.slane %v2547, 2
        %v2580 = vsel %vm1681, %v2578, %v2579
        %v2581 = vrot.slane %v2548, 2
        %v2582 = vrot.slane %v2549, 2
        %v2583 = vsel %vm1681, %v2581, %v2582
        %v2584 = vrot.slane %v2550, 2
        %v2585 = vrot.slane %v2551, 2
        %v2586 = vsel %vm1681, %v2584, %v2585
        %v2587 = vrot.slane %v2552, 2
        %v2588 = vrot.slane %v2553, 2
        %v2589 = vsel %vm1681, %v2587, %v2588
        %v2590 = vrot.slane %v2554, 2
        %v2591 = vrot.slane %v2555, 2
        %v2592 = vsel %vm1681, %v2590, %v2591
        %v2593 = vrot.slane %v2556, 2
        %v2594 = vrot.slane %v2557, 2
        %v2595 = vsel %vm1681, %v2593, %v2594
        %v2596 = vrot.slane %v2558, 2
        %v2597 = vrot.slane %v2559, 2
        %v2598 = vsel %vm1681, %v2596, %v2597
        %v2599 = vrot.slane %v2560, 2
        %v2600 = vrot.slane %v2561, 2
        %v2601 = vsel %vm1681, %v2599, %v2600
        %v2602 = vrot.slane %v2562, 2
        %v2603 = vrot.slane %v2563, 2
        %v2604 = vsel %vm1681, %v2602, %v2603
        %v2605 = vrot.slane %v2564, 2
        %v2606 = vrot.slane %v2565, 2
        %v2607 = vsel %vm1681, %v2605, %v2606
        %v2608 = vrot.slane %v2566, 2
        %v2609 = vrot.slane %v2567, 2
        %v2610 = vsel %vm1681, %v2608, %v2609
        %v2611 = vrot.slane %v2568, 2
        %v2612 = vrot.slane %v2569, 2
        %v2613 = vsel %vm1681, %v2611, %v2612
        %v2614 = vrot.slane %v2570, 2
        %v2615 = vrot.slane %v2571, 2
        %v2616 = vsel %vm1681, %v2614, %v2615
        %v2617 = vrot.slane %v2572, 2
        %v2618 = vrot.slane %v2573, 2
        %v2619 = vsel %vm1681, %v2617, %v2618
        %v2620 = vrot.slane %v2574, 2
        %v2621 = vrot.slane %v2575, 2
        %v2622 = vsel %vm1681, %v2620, %v2621
        %v2623 = vrot.slane %v2576, 2
        %v2624 = vrot.slane %v2577, 2
        %v2625 = vsel %vm1681, %v2623, %v2624
        %v2628 = vsel %vm503, %v1392, %v1554
        %v2631 = vsel %vm503, %v1393, %v1556
        %v2634 = vsel %vm503, %v1394, %v1558
        %v2637 = vsel %vm503, %v1395, %v1560
        %v2640 = vsel %vm503, %v1396, %v1562
        %v2643 = vsel %vm503, %v1397, %v1564
        %v2646 = vsel %vm503, %v1398, %v1566
        %v2649 = vsel %vm503, %v1399, %v1568
        %v2652 = vsel %vm503, %v1400, %v1570
        %v2655 = vsel %vm503, %v1401, %v1572
        %v2658 = vsel %vm503, %v1402, %v1574
        %v2661 = vsel %vm503, %v1403, %v1576
        %v2664 = vsel %vm503, %v1404, %v1578
        %v2667 = vsel %vm503, %v1405, %v1580
        %v2670 = vsel %vm503, %v1406, %v1582
        %v2673 = vsel %vm503, %v1407, %v1584
        %vm2674 = vcmask 523264
        %v2676 = vsel %vm2674, %v2628, %v1731
        %v2678 = vsel %vm2674, %v2631, %v1733
        %v2680 = vsel %vm2674, %v2634, %v1735
        %v2682 = vsel %vm2674, %v2637, %v1737
        %v2684 = vsel %vm2674, %v2640, %v1739
        %v2686 = vsel %vm2674, %v2643, %v1741
        %v2688 = vsel %vm2674, %v2646, %v1743
        %v2690 = vsel %vm2674, %v2649, %v1745
        %v2692 = vsel %vm2674, %v2652, %v1747
        %v2694 = vsel %vm2674, %v2655, %v1749
        %v2696 = vsel %vm2674, %v2658, %v1751
        %v2698 = vsel %vm2674, %v2661, %v1753
        %v2700 = vsel %vm2674, %v2664, %v1755
        %v2702 = vsel %vm2674, %v2667, %v1757
        %v2704 = vsel %vm2674, %v2670, %v1759
        %v2706 = vsel %vm2674, %v2673, %v1761
        %vm2707 = vcmask 785408
        %v2709 = vsel %vm2707, %v2676, %v1843
        %v2712 = vsel %vm2707, %v2678, %v1845
        %v2715 = vsel %vm2707, %v2680, %v1847
        %v2718 = vsel %vm2707, %v2682, %v1849
        %v2721 = vsel %vm2707, %v2684, %v1851
        %v2724 = vsel %vm2707, %v2686, %v1853
        %v2727 = vsel %vm2707, %v2688, %v1855
        %v2730 = vsel %vm2707, %v2690, %v1857
        %v2733 = vsel %vm2707, %v2692, %v1859
        %v2736 = vsel %vm2707, %v2694, %v1861
        %v2739 = vsel %vm2707, %v2696, %v1863
        %v2742 = vsel %vm2707, %v2698, %v1865
        %v2745 = vsel %vm2707, %v2700, %v1867
        %v2748 = vsel %vm2707, %v2702, %v1869
        %v2751 = vsel %vm2707, %v2704, %v1871
        %v2754 = vsel %vm2707, %v2706, %v1873
        %v2758 = vsel %vm503, %v1972, %v2163
        %v2761 = vsel %vm503, %v1975, %v2165
        %v2764 = vsel %vm503, %v1978, %v2167
        %v2767 = vsel %vm503, %v1981, %v2169
        %v2770 = vsel %vm503, %v1984, %v2171
        %v2773 = vsel %vm503, %v1987, %v2173
        %v2776 = vsel %vm503, %v1990, %v2175
        %v2779 = vsel %vm503, %v1993, %v2177
        %v2782 = vsel %vm503, %v1996, %v2179
        %v2785 = vsel %vm503, %v1999, %v2181
        %v2788 = vsel %vm503, %v2002, %v2183
        %v2791 = vsel %vm503, %v2005, %v2185
        %v2794 = vsel %vm503, %v2008, %v2187
        %v2797 = vsel %vm503, %v2011, %v2189
        %v2800 = vsel %vm503, %v2014, %v2191
        %v2803 = vsel %vm503, %v2017, %v2193
        %v2805 = vsel %vm2674, %v2758, %v2275
        %v2807 = vsel %vm2674, %v2761, %v2277
        %v2809 = vsel %vm2674, %v2764, %v2279
        %v2811 = vsel %vm2674, %v2767, %v2281
        %v2813 = vsel %vm2674, %v2770, %v2283
        %v2815 = vsel %vm2674, %v2773, %v2285
        %v2817 = vsel %vm2674, %v2776, %v2287
        %v2819 = vsel %vm2674, %v2779, %v2289
        %v2821 = vsel %vm2674, %v2782, %v2291
        %v2823 = vsel %vm2674, %v2785, %v2293
        %v2825 = vsel %vm2674, %v2788, %v2295
        %v2827 = vsel %vm2674, %v2791, %v2297
        %v2829 = vsel %vm2674, %v2794, %v2299
        %v2831 = vsel %vm2674, %v2797, %v2301
        %v2833 = vsel %vm2674, %v2800, %v2303
        %v2835 = vsel %vm2674, %v2803, %v2305
        %v2837 = vsel %vm2707, %v2805, %v2451
        %v2840 = vsel %vm2707, %v2807, %v2453
        %v2843 = vsel %vm2707, %v2809, %v2455
        %v2846 = vsel %vm2707, %v2811, %v2457
        %v2849 = vsel %vm2707, %v2813, %v2459
        %v2852 = vsel %vm2707, %v2815, %v2461
        %v2855 = vsel %vm2707, %v2817, %v2463
        %v2858 = vsel %vm2707, %v2819, %v2465
        %v2861 = vsel %vm2707, %v2821, %v2467
        %v2864 = vsel %vm2707, %v2823, %v2469
        %v2867 = vsel %vm2707, %v2825, %v2471
        %v2870 = vsel %vm2707, %v2827, %v2473
        %v2873 = vsel %vm2707, %v2829, %v2475
        %v2876 = vsel %vm2707, %v2831, %v2477
        %v2879 = vsel %vm2707, %v2833, %v2479
        %v2882 = vsel %vm2707, %v2835, %v2481
        %v2884 = vld [vmem:[%s3] sm:$0xff]
        %v2885 = vld [vmem:[%s3 + $0x8] sm:$0xf]
        %v2886 = vld [vmem:[%s3 + $0xc] sm:$0xff]
        %v2887 = vld [vmem:[%s3 + $0x14] sm:$0xf]
        %v2888 = vld [vmem:[%s3 + $0x18] sm:$0xff]
        %v2889 = vld [vmem:[%s3 + $0x20] sm:$0xf]
        %v2890 = vld [vmem:[%s3 + $0x24] sm:$0xff]
        %v2891 = vld [vmem:[%s3 + $0x2c] sm:$0xf]
        %v2900 = vunpack.c.l.b16 %v2884
        %v2901 = vunpack.c.h.b16 %v2884
        %v2902 = vunpack.c.l.b16 %v2885
        %v2903 = vunpack.c.l.b16 %v2886
        %v2904 = vunpack.c.h.b16 %v2886
        %v2905 = vunpack.c.l.b16 %v2887
        %v2906 = vunpack.c.l.b16 %v2888
        %v2907 = vunpack.c.h.b16 %v2888
        %v2908 = vunpack.c.l.b16 %v2889
        %v2909 = vunpack.c.l.b16 %v2890
        %v2910 = vunpack.c.h.b16 %v2890
        %v2911 = vunpack.c.l.b16 %v2891
        %v2912 = vpack.c.b16 %v2903, %v2900
        %v2913 = vpack.c.b16 %v2904, %v2901
        %v2914 = vpack.c.b16 %v2905, %v2902
        %v2915 = vpack.c.b16 %v2909, %v2906
        %v2916 = vpack.c.b16 %v2910, %v2907
        %v2917 = vpack.c.b16 %v2911, %v2908
        %v2923 = vsel %vm503, %v2914, 0
        %v2926 = vsel %vm503, %v2917, 0
        %v2929 = vsel %vm503, %v2580, 0
        %v2932 = vsel %vm503, %v2583, 0
        %v2935 = vsel %vm503, %v2586, 0
        %v2938 = vsel %vm503, %v2589, 0
        %v2941 = vsel %vm503, %v2592, 0
        %v2944 = vsel %vm503, %v2595, 0
        %v2947 = vsel %vm503, %v2598, 0
        %v2950 = vsel %vm503, %v2601, 0
        %v2953 = vsel %vm503, %v2604, 0
        %v2956 = vsel %vm503, %v2607, 0
        %v2959 = vsel %vm503, %v2610, 0
        %v2962 = vsel %vm503, %v2613, 0
        %v2965 = vsel %vm503, %v2616, 0
        %v2968 = vsel %vm503, %v2619, 0
        %v2971 = vsel %vm503, %v2622, 0
        %v2974 = vsel %vm503, %v2625, 0
        %2976 = vmatprep.subr.bf16.mxu0 %v2837
        %2977 = vmatpush1.bf16.xpose.msra.mxu0 %v2709
        %2978 = vmatprep.subr.bf16.mxu0 %v2840
        %2979 = vmatpush1.bf16.xpose.msra.mxu0 %v2712
        %2980 = vmatprep.subr.bf16.mxu0 %v2843
        %2981 = vmatpush1.bf16.xpose.msra.mxu0 %v2715
        %2982 = vmatprep.subr.bf16.mxu0 %v2846
        %2983 = vmatpush1.bf16.xpose.msra.mxu0 %v2718
        %2984 = vmatprep.subr.bf16.mxu0 %v2849
        %2985 = vmatpush1.bf16.xpose.msra.mxu0 %v2721
        %2986 = vmatprep.subr.bf16.mxu0 %v2852
        %2987 = vmatpush1.bf16.xpose.msra.mxu0 %v2724
        %2988 = vmatprep.subr.bf16.mxu0 %v2855
        %2989 = vmatpush1.bf16.xpose.msra.mxu0 %v2727
        %2990 = vmatprep.subr.bf16.mxu0 %v2858
        %2991 = vmatpush1.bf16.xpose.msra.mxu0 %v2730
        %2992 = vmatprep.subr.bf16.mxu0 %v2861
        %2993 = vmatpush1.bf16.xpose.msra.mxu0 %v2733
        %2994 = vmatprep.subr.bf16.mxu0 %v2864
        %2995 = vmatpush1.bf16.xpose.msra.mxu0 %v2736
        %2996 = vmatprep.subr.bf16.mxu0 %v2867
        %2997 = vmatpush1.bf16.xpose.msra.mxu0 %v2739
        %2998 = vmatprep.subr.bf16.mxu0 %v2870
        %2999 = vmatpush1.bf16.xpose.msra.mxu0 %v2742
        %3000 = vmatprep.subr.bf16.mxu0 %v2873
        %3001 = vmatpush1.bf16.xpose.msra.mxu0 %v2745
        %3002 = vmatprep.subr.bf16.mxu0 %v2876
        %3003 = vmatpush1.bf16.xpose.msra.mxu0 %v2748
        %3004 = vmatprep.subr.bf16.mxu0 %v2879
        %3005 = vmatpush1.bf16.xpose.msra.mxu0 %v2751
        %3006 = vmatprep.subr.bf16.mxu0 %v2882
        %3007 = vmatpush1.bf16.xpose.msra.mxu0 %v2754
        %3008 = vmatprep.mubr.bf16.mxu0 %v2913
        %3009 = vmatmul.mubr.bf16.gmra.mrb[0].mxu0 %v2912
        %v3010 = vpop.f32.mrb[0].mxu0
        %v3011 = vadd.f32 0.0, %v3010
        %v3012 = vpop.f32.mrb[0].mxu0
        %v3013 = vadd.f32 0.0, %v3012
        %v3014 = vpop.f32.mrb[0].mxu0
        %v3015 = vadd.f32 0.0, %v3014
        %v3016 = vpop.f32.mrb[0].mxu0
        %v3017 = vadd.f32 0.0, %v3016
        %3018 = vmatprep.mubr.bf16.mxu0 %v2916
        %3019 = vmatmul.mubr.bf16.gmra.mrb[0].mxu0 %v2915
        %v3020 = vpop.f32.mrb[0].mxu0
        %v3021 = vadd.f32 0.0, %v3020
        %v3022 = vpop.f32.mrb[0].mxu0
        %v3023 = vadd.f32 0.0, %v3022
        %v3024 = vpop.f32.mrb[0].mxu0
        %v3025 = vadd.f32 0.0, %v3024
        %v3026 = vpop.f32.mrb[0].mxu0
        %v3027 = vadd.f32 0.0, %v3026
        %3028 = vdwg.mxu0
        %3029 = vmatprep.subr.bf16.mxu0 0
        %3030 = vmatpush1.bf16.xpose.msra.mxu0 %v2929
        %3031 = vmatprep.subr.bf16.mxu0 0
        %3032 = vmatpush1.bf16.xpose.msra.mxu0 %v2932
        %3033 = vmatprep.subr.bf16.mxu0 0
        %3034 = vmatpush1.bf16.xpose.msra.mxu0 %v2935
        %3035 = vmatprep.subr.bf16.mxu0 0
        %3036 = vmatpush1.bf16.xpose.msra.mxu0 %v2938
        %3037 = vmatprep.subr.bf16.mxu0 0
        %3038 = vmatpush1.bf16.xpose.msra.mxu0 %v2941
        %3039 = vmatprep.subr.bf16.mxu0 0
        %3040 = vmatpush1.bf16.xpose.msra.mxu0 %v2944
        %3041 = vmatprep.subr.bf16.mxu0 0
        %3042 = vmatpush1.bf16.xpose.msra.mxu0 %v2947
        %3043 = vmatprep.subr.bf16.mxu0 0
        %3044 = vmatpush1.bf16.xpose.msra.mxu0 %v2950
        %3045 = vmatprep.subr.bf16.mxu0 0
        %3046 = vmatpush1.bf16.xpose.msra.mxu0 %v2953
        %3047 = vmatprep.subr.bf16.mxu0 0
        %3048 = vmatpush1.bf16.xpose.msra.mxu0 %v2956
        %3049 = vmatprep.subr.bf16.mxu0 0
        %3050 = vmatpush1.bf16.xpose.msra.mxu0 %v2959
        %3051 = vmatprep.subr.bf16.mxu0 0
        %3052 = vmatpush1.bf16.xpose.msra.mxu0 %v2962
        %3053 = vmatprep.subr.bf16.mxu0 0
        %3054 = vmatpush1.bf16.xpose.msra.mxu0 %v2965
        %3055 = vmatprep.subr.bf16.mxu0 0
        %3056 = vmatpush1.bf16.xpose.msra.mxu0 %v2968
        %3057 = vmatprep.subr.bf16.mxu0 0
        %3058 = vmatpush1.bf16.xpose.msra.mxu0 %v2971
        %3059 = vmatprep.subr.bf16.mxu0 0
        %3060 = vmatpush1.bf16.xpose.msra.mxu0 %v2974
        %3061 = vmatprep.mubr.bf16.mxu0 0
        %3062 = vmatmul.mubr.bf16.gmra.mrb[0].mxu0 %v2923
        %v3063 = vpop.f32.mrb[0].mxu0
        %v3064 = vadd.f32 %v3011, %v3063
        %v3065 = vpop.f32.mrb[0].mxu0
        %v3066 = vadd.f32 %v3013, %v3065
        %v3067 = vpop.f32.mrb[0].mxu0
        %v3068 = vadd.f32 %v3015, %v3067
        %v3069 = vpop.f32.mrb[0].mxu0
        %v3070 = vadd.f32 %v3017, %v3069
        %3071 = vmatprep.mubr.bf16.mxu0 0
        %3072 = vmatmul.mubr.bf16.gmra.mrb[0].mxu0 %v2926
        %v3073 = vpop.f32.mrb[0].mxu0
        %v3074 = vadd.f32 %v3021, %v3073
        %v3075 = vpop.f32.mrb[0].mxu0
        %v3076 = vadd.f32 %v3023, %v3075
        %v3077 = vpop.f32.mrb[0].mxu0
        %v3078 = vadd.f32 %v3025, %v3077
        %v3079 = vpop.f32.mrb[0].mxu0
        %v3080 = vadd.f32 %v3027, %v3079
        %3081 = vdwg.mxu0
        %v3082 = vld [vmem:[%s4] sm:$0xf]
        %v3083 = vld [vmem:[%s4 + $0x4] sm:$0xf]
        %v3084 = vld [vmem:[%s4 + $0x8] sm:$0xf]
        %v3085 = vld [vmem:[%s4 + $0xc] sm:$0xf]
        %v3086 = vld [vmem:[%s4 + $0x10] sm:$0xf]
        %v3087 = vld [vmem:[%s4 + $0x14] sm:$0xf]
        %v3088 = vld [vmem:[%s4 + $0x18] sm:$0xf]
        %v3089 = vld [vmem:[%s4 + $0x1c] sm:$0xf]
        %v3090 = vld [vmem:[%s4 + $0x20] sm:$0xf]
        %v3091 = vld [vmem:[%s4 + $0x24] sm:$0xf]
        %v3092 = vld [vmem:[%s4 + $0x28] sm:$0xf]
        %v3093 = vld [vmem:[%s4 + $0x2c] sm:$0xf]
        %v3094 = vld [vmem:[%s4 + $0x30] sm:$0xf]
        %v3095 = vld [vmem:[%s4 + $0x34] sm:$0xf]
        %v3096 = vld [vmem:[%s4 + $0x38] sm:$0xf]
        %v3097 = vld [vmem:[%s4 + $0x3c] sm:$0xf]
        %v3098 = vld [vmem:[%s4 + $0x40] sm:$0xf]
        %v3099 = vld [vmem:[%s4 + $0x44] sm:$0xf]
        %v3100 = vld [vmem:[%s4 + $0x48] sm:$0xf]
        %v3101 = vld [vmem:[%s4 + $0x4c] sm:$0xf]
        %v3102 = vld [vmem:[%s4 + $0x50] sm:$0xf]
        %v3103 = vld [vmem:[%s4 + $0x54] sm:$0xf]
        %v3104 = vld [vmem:[%s4 + $0x58] sm:$0xf]
        %v3105 = vld [vmem:[%s4 + $0x5c] sm:$0xf]
        %v3106 = vpack.c.bf16 %v3068, %v3064
        %v3107 = vpack.c.bf16 %v3070, %v3066
        %v3108 = vpack.c.bf16 %v3078, %v3074
        %v3109 = vpack.c.bf16 %v3080, %v3076
        %v3110 = vld [vmem:[%s5] sm:$0xff]
        %v3111 = vld [vmem:[%s5 + $0x8] sm:$0xff]
        %v3112 = vld [vmem:[%s5 + $0x10] sm:$0xff]
        %v3113 = vld [vmem:[%s5 + $0x18] sm:$0xff]
        %v3114 = vld [vmem:[%s5 + $0x20] sm:$0xff]
        %v3115 = vld [vmem:[%s5 + $0x28] sm:$0xff]
        %v3116 = vld [vmem:[%s5 + $0x30] sm:$0xff]
        %v3117 = vld [vmem:[%s5 + $0x38] sm:$0xff]
        %v3118 = vld [vmem:[%s5 + $0x40] sm:$0xff]
        %v3119 = vld [vmem:[%s5 + $0x48] sm:$0xff]
        %v3120 = vld [vmem:[%s5 + $0x50] sm:$0xff]
        %v3121 = vld [vmem:[%s5 + $0x58] sm:$0xff]
        %v3122 = vld [vmem:[%s5 + $0x60] sm:$0xff]
        %v3123 = vld [vmem:[%s5 + $0x68] sm:$0xff]
        %v3124 = vld [vmem:[%s5 + $0x70] sm:$0xff]
        %v3125 = vld [vmem:[%s5 + $0x78] sm:$0xff]
        %v3126 = vld [vmem:[%s5 + $0x80] sm:$0xff]
        %v3127 = vld [vmem:[%s5 + $0x88] sm:$0xff]
        %v3128 = vld [vmem:[%s5 + $0x90] sm:$0xff]
        %v3129 = vld [vmem:[%s5 + $0x98] sm:$0xff]
        %v3130 = vld [vmem:[%s5 + $0xa0] sm:$0xff]
        %v3131 = vld [vmem:[%s5 + $0xa8] sm:$0xff]
        %v3132 = vld [vmem:[%s5 + $0xb0] sm:$0xff]
        %v3133 = vld [vmem:[%s5 + $0xb8] sm:$0xff]
        %3135 = vset.pattern.permute.xlu0 0
        %3136 = vperm.xlu0 %3135, %v3110
        %v3137 = vpop.permute.xlu0 %3136
        %3140 = vset.pattern.permute.xlu0 0
        %3141 = vperm.xlu0 %3140, %v3111
        %v3142 = vpop.permute.xlu0 %3141
        %3145 = vset.pattern.permute.xlu0 0
        %3146 = vperm.xlu0 %3145, %v3112
        %v3147 = vpop.permute.xlu0 %3146
        %3150 = vset.pattern.permute.xlu0 0
        %3151 = vperm.xlu0 %3150, %v3113
        %v3152 = vpop.permute.xlu0 %3151
        %3155 = vset.pattern.permute.xlu0 0
        %3156 = vperm.xlu0 %3155, %v3114
        %v3157 = vpop.permute.xlu0 %3156
        %3160 = vset.pattern.permute.xlu0 0
        %3161 = vperm.xlu0 %3160, %v3115
        %v3162 = vpop.permute.xlu0 %3161
        %3165 = vset.pattern.permute.xlu0 0
        %3166 = vperm.xlu0 %3165, %v3116
        %v3167 = vpop.permute.xlu0 %3166
        %3170 = vset.pattern.permute.xlu0 0
        %3171 = vperm.xlu0 %3170, %v3117
        %v3172 = vpop.permute.xlu0 %3171
        %3175 = vset.pattern.permute.xlu0 0
        %3176 = vperm.xlu0 %3175, %v3118
        %v3177 = vpop.permute.xlu0 %3176
        %3180 = vset.pattern.permute.xlu0 0
        %3181 = vperm.xlu0 %3180, %v3119
        %v3182 = vpop.permute.xlu0 %3181
        %3185 = vset.pattern.permute.xlu0 0
        %3186 = vperm.xlu0 %3185, %v3120
        %v3187 = vpop.permute.xlu0 %3186
        %3190 = vset.pattern.permute.xlu0 0
        %3191 = vperm.xlu0 %3190, %v3121
        %v3192 = vpop.permute.xlu0 %3191
        %3195 = vset.pattern.permute.xlu0 0
        %3196 = vperm.xlu0 %3195, %v3122
        %v3197 = vpop.permute.xlu0 %3196
        %3200 = vset.pattern.permute.xlu0 0
        %3201 = vperm.xlu0 %3200, %v3123
        %v3202 = vpop.permute.xlu0 %3201
        %3205 = vset.pattern.permute.xlu0 0
        %3206 = vperm.xlu0 %3205, %v3124
        %v3207 = vpop.permute.xlu0 %3206
        %3210 = vset.pattern.permute.xlu0 0
        %3211 = vperm.xlu0 %3210, %v3125
        %v3212 = vpop.permute.xlu0 %3211
        %3215 = vset.pattern.permute.xlu0 0
        %3216 = vperm.xlu0 %3215, %v3126
        %v3217 = vpop.permute.xlu0 %3216
        %3220 = vset.pattern.permute.xlu0 0
        %3221 = vperm.xlu0 %3220, %v3127
        %v3222 = vpop.permute.xlu0 %3221
        %3225 = vset.pattern.permute.xlu0 0
        %3226 = vperm.xlu0 %3225, %v3128
        %v3227 = vpop.permute.xlu0 %3226
        %3230 = vset.pattern.permute.xlu0 0
        %3231 = vperm.xlu0 %3230, %v3129
        %v3232 = vpop.permute.xlu0 %3231
        %3235 = vset.pattern.permute.xlu0 0
        %3236 = vperm.xlu0 %3235, %v3130
        %v3237 = vpop.permute.xlu0 %3236
        %3240 = vset.pattern.permute.xlu0 0
        %3241 = vperm.xlu0 %3240, %v3131
        %v3242 = vpop.permute.xlu0 %3241
        %3245 = vset.pattern.permute.xlu0 0
        %3246 = vperm.xlu0 %3245, %v3132
        %v3247 = vpop.permute.xlu0 %3246
        %3250 = vset.pattern.permute.xlu0 0
        %3251 = vperm.xlu0 %3250, %v3133
        %v3252 = vpop.permute.xlu0 %3251
        %v3278 = vunpack.c.l.b16 %v3082
        %v3279 = vunpack.c.l.b16 %v3083
        %v3280 = vunpack.c.l.b16 %v3084
        %v3281 = vunpack.c.l.b16 %v3085
        %v3282 = vunpack.c.l.b16 %v3086
        %v3283 = vunpack.c.l.b16 %v3087
        %v3284 = vunpack.c.l.b16 %v3088
        %v3285 = vunpack.c.l.b16 %v3089
        %v3286 = vunpack.c.l.b16 %v3090
        %v3287 = vunpack.c.l.b16 %v3091
        %v3288 = vunpack.c.l.b16 %v3092
        %v3289 = vunpack.c.l.b16 %v3093
        %v3290 = vunpack.c.l.b16 %v3094
        %v3291 = vunpack.c.l.b16 %v3095
        %v3292 = vunpack.c.l.b16 %v3096
        %v3293 = vunpack.c.l.b16 %v3097
        %v3294 = vunpack.c.l.b16 %v3098
        %v3295 = vunpack.c.l.b16 %v3099
        %v3296 = vunpack.c.l.b16 %v3100
        %v3297 = vunpack.c.l.b16 %v3101
        %v3298 = vunpack.c.l.b16 %v3102
        %v3299 = vunpack.c.l.b16 %v3103
        %v3300 = vunpack.c.l.b16 %v3104
        %v3301 = vunpack.c.l.b16 %v3105
        %v3302 = vpack.c.b16 %v3279, %v3278
        %v3303 = vpack.c.b16 %v3281, %v3280
        %v3304 = vpack.c.b16 %v3283, %v3282
        %v3305 = vpack.c.b16 %v3285, %v3284
        %v3306 = vpack.c.b16 %v3287, %v3286
        %v3307 = vpack.c.b16 %v3289, %v3288
        %v3308 = vpack.c.b16 %v3291, %v3290
        %v3309 = vpack.c.b16 %v3293, %v3292
        %v3310 = vpack.c.b16 %v3295, %v3294
        %v3311 = vpack.c.b16 %v3297, %v3296
        %v3312 = vpack.c.b16 %v3299, %v3298
        %v3313 = vpack.c.b16 %v3301, %v3300
        %v3315 = vsel %vm503, %v3302, 0
        %v3318 = vsel %vm503, %v3303, 0
        %v3321 = vsel %vm503, %v3304, 0
        %v3324 = vsel %vm503, %v3305, 0
        %v3327 = vsel %vm503, %v3306, 0
        %v3330 = vsel %vm503, %v3307, 0
        %v3333 = vsel %vm503, %v3308, 0
        %v3336 = vsel %vm503, %v3309, 0
        %v3339 = vsel %vm503, %v3310, 0
        %v3342 = vsel %vm503, %v3311, 0
        %v3345 = vsel %vm503, %v3312, 0
        %v3348 = vsel %vm503, %v3313, 0
        %3350 = vmatprep.subr.bf16.mxu0 %v3107
        %3351 = vmatpush1.bf16.msra.mxu0 %v3106
        %3352 = vmatprep.subr.bf16.mxu0 %v3109
        %3353 = vmatpush1.bf16.msra.mxu0 %v3108
        %3354 = vmatprep.subr.bf16.mxu0 0
        %3355 = vmatpush1.bf16.msra.mxu0 0
        %3356 = vmatprep.subr.bf16.mxu0 0
        %3357 = vmatpush1.bf16.msra.mxu0 0
        %3358 = vmatprep.subr.bf16.mxu0 0
        %3359 = vmatpush1.bf16.msra.mxu0 0
        %3360 = vmatprep.subr.bf16.mxu0 0
        %3361 = vmatpush1.bf16.msra.mxu0 0
        %3362 = vmatprep.subr.bf16.mxu0 0
        %3363 = vmatpush1.bf16.msra.mxu0 0
        %3364 = vmatprep.subr.bf16.mxu0 0
        %3365 = vmatpush1.bf16.msra.mxu0 0
        %3366 = vmatprep.subr.bf16.mxu0 0
        %3367 = vmatpush1.bf16.msra.mxu0 0
        %3368 = vmatprep.subr.bf16.mxu0 0
        %3369 = vmatpush1.bf16.msra.mxu0 0
        %3370 = vmatprep.subr.bf16.mxu0 0
        %3371 = vmatpush1.bf16.msra.mxu0 0
        %3372 = vmatprep.subr.bf16.mxu0 0
        %3373 = vmatpush1.bf16.msra.mxu0 0
        %3374 = vmatprep.subr.bf16.mxu0 0
        %3375 = vmatpush1.bf16.msra.mxu0 0
        %3376 = vmatprep.subr.bf16.mxu0 0
        %3377 = vmatpush1.bf16.msra.mxu0 0
        %3378 = vmatprep.subr.bf16.mxu0 0
        %3379 = vmatpush1.bf16.msra.mxu0 0
        %3380 = vmatprep.subr.bf16.mxu0 0
        %3381 = vmatpush1.bf16.msra.mxu0 0
        %3382 = vmatprep.mubr.bf16.mxu0 0
        %3383 = vmatmul.mubr.bf16.gmra.mrb[0].mxu0 %v3315
        %v3384 = vpop.f32.mrb[0].mxu0
        %v3385 = vadd.f32 %v3137, %v3384
        %v3386 = vpop.f32.mrb[0].mxu0
        %v3387 = vadd.f32 %v3137, %v3386
        %v3388 = vpop.f32.mrb[0].mxu0
        %v3389 = vadd.f32 %v3142, %v3388
        %v3390 = vpop.f32.mrb[0].mxu0
        %v3391 = vadd.f32 %v3142, %v3390
        %3392 = vmatprep.mubr.bf16.mxu0 0
        %3393 = vmatmul.mubr.bf16.gmra.mrb[0].mxu0 %v3318
        %v3394 = vpop.f32.mrb[0].mxu0
        %v3395 = vadd.f32 %v3147, %v3394
        %v3396 = vpop.f32.mrb[0].mxu0
        %v3397 = vadd.f32 %v3147, %v3396
        %v3398 = vpop.f32.mrb[0].mxu0
        %v3399 = vadd.f32 %v3152, %v3398
        %v3400 = vpop.f32.mrb[0].mxu0
        %v3401 = vadd.f32 %v3152, %v3400
        %3402 = vmatprep.mubr.bf16.mxu0 0
        %3403 = vmatmul.mubr.bf16.gmra.mrb[0].mxu0 %v3321
        %v3404 = vpop.f32.mrb[0].mxu0
        %v3405 = vadd.f32 %v3157, %v3404
        %v3406 = vpop.f32.mrb[0].mxu0
        %v3407 = vadd.f32 %v3157, %v3406
        %v3408 = vpop.f32.mrb[0].mxu0
        %v3409 = vadd.f32 %v3162, %v3408
        %v3410 = vpop.f32.mrb[0].mxu0
        %v3411 = vadd.f32 %v3162, %v3410
        %3412 = vmatprep.mubr.bf16.mxu0 0
        %3413 = vmatmul.mubr.bf16.gmra.mrb[0].mxu0 %v3324
        %v3414 = vpop.f32.mrb[0].mxu0
        %v3415 = vadd.f32 %v3167, %v3414
        %v3416 = vpop.f32.mrb[0].mxu0
        %v3417 = vadd.f32 %v3167, %v3416
        %v3418 = vpop.f32.mrb[0].mxu0
        %v3419 = vadd.f32 %v3172, %v3418
        %v3420 = vpop.f32.mrb[0].mxu0
        %v3421 = vadd.f32 %v3172, %v3420
        %3422 = vmatprep.mubr.bf16.mxu0 0
        %3423 = vmatmul.mubr.bf16.gmra.mrb[0].mxu0 %v3327
        %v3424 = vpop.f32.mrb[0].mxu0
        %v3425 = vadd.f32 %v3177, %v3424
        %v3426 = vpop.f32.mrb[0].mxu0
        %v3427 = vadd.f32 %v3177, %v3426
        %v3428 = vpop.f32.mrb[0].mxu0
        %v3429 = vadd.f32 %v3182, %v3428
        %v3430 = vpop.f32.mrb[0].mxu0
        %v3431 = vadd.f32 %v3182, %v3430
        %3432 = vmatprep.mubr.bf16.mxu0 0
        %3433 = vmatmul.mubr.bf16.gmra.mrb[0].mxu0 %v3330
        %v3434 = vpop.f32.mrb[0].mxu0
        %v3435 = vadd.f32 %v3187, %v3434
        %v3436 = vpop.f32.mrb[0].mxu0
        %v3437 = vadd.f32 %v3187, %v3436
        %v3438 = vpop.f32.mrb[0].mxu0
        %v3439 = vadd.f32 %v3192, %v3438
        %v3440 = vpop.f32.mrb[0].mxu0
        %v3441 = vadd.f32 %v3192, %v3440
        %3442 = vmatprep.mubr.bf16.mxu0 0
        %3443 = vmatmul.mubr.bf16.gmra.mrb[0].mxu0 %v3333
        %v3444 = vpop.f32.mrb[0].mxu0
        %v3445 = vadd.f32 %v3197, %v3444
        %v3446 = vpop.f32.mrb[0].mxu0
        %v3447 = vadd.f32 %v3197, %v3446
        %v3448 = vpop.f32.mrb[0].mxu0
        %v3449 = vadd.f32 %v3202, %v3448
        %v3450 = vpop.f32.mrb[0].mxu0
        %v3451 = vadd.f32 %v3202, %v3450
        %3452 = vmatprep.mubr.bf16.mxu0 0
        %3453 = vmatmul.mubr.bf16.gmra.mrb[0].mxu0 %v3336
        %v3454 = vpop.f32.mrb[0].mxu0
        %v3455 = vadd.f32 %v3207, %v3454
        %v3456 = vpop.f32.mrb[0].mxu0
        %v3457 = vadd.f32 %v3207, %v3456
        %v3458 = vpop.f32.mrb[0].mxu0
        %v3459 = vadd.f32 %v3212, %v3458
        %v3460 = vpop.f32.mrb[0].mxu0
        %v3461 = vadd.f32 %v3212, %v3460
        %3462 = vmatprep.mubr.bf16.mxu0 0
        %3463 = vmatmul.mubr.bf16.gmra.mrb[0].mxu0 %v3339
        %v3464 = vpop.f32.mrb[0].mxu0
        %v3465 = vadd.f32 %v3217, %v3464
        %v3466 = vpop.f32.mrb[0].mxu0
        %v3467 = vadd.f32 %v3217, %v3466
        %v3468 = vpop.f32.mrb[0].mxu0
        %v3469 = vadd.f32 %v3222, %v3468
        %v3470 = vpop.f32.mrb[0].mxu0
        %v3471 = vadd.f32 %v3222, %v3470
        %3472 = vmatprep.mubr.bf16.mxu0 0
        %3473 = vmatmul.mubr.bf16.gmra.mrb[0].mxu0 %v3342
        %v3474 = vpop.f32.mrb[0].mxu0
        %v3475 = vadd.f32 %v3227, %v3474
        %v3476 = vpop.f32.mrb[0].mxu0
        %v3477 = vadd.f32 %v3227, %v3476
        %v3478 = vpop.f32.mrb[0].mxu0
        %v3479 = vadd.f32 %v3232, %v3478
        %v3480 = vpop.f32.mrb[0].mxu0
        %v3481 = vadd.f32 %v3232, %v3480
        %3482 = vmatprep.mubr.bf16.mxu0 0
        %3483 = vmatmul.mubr.bf16.gmra.mrb[0].mxu0 %v3345
        %v3484 = vpop.f32.mrb[0].mxu0
        %v3485 = vadd.f32 %v3237, %v3484
        %v3486 = vpop.f32.mrb[0].mxu0
        %v3487 = vadd.f32 %v3237, %v3486
        %v3488 = vpop.f32.mrb[0].mxu0
        %v3489 = vadd.f32 %v3242, %v3488
        %v3490 = vpop.f32.mrb[0].mxu0
        %v3491 = vadd.f32 %v3242, %v3490
        %3492 = vmatprep.mubr.bf16.mxu0 0
        %3493 = vmatmul.mubr.bf16.gmra.mrb[0].mxu0 %v3348
        %v3494 = vpop.f32.mrb[0].mxu0
        %v3495 = vadd.f32 %v3247, %v3494
        %v3496 = vpop.f32.mrb[0].mxu0
        %v3497 = vadd.f32 %v3247, %v3496
        %v3498 = vpop.f32.mrb[0].mxu0
        %v3499 = vadd.f32 %v3252, %v3498
        %v3500 = vpop.f32.mrb[0].mxu0
        %v3501 = vadd.f32 %v3252, %v3500
        %3502 = vdwg.mxu0
        %v3503 = vmul.f32 %v3385, %v3385
        %v3504 = vmul.f32 %v3387, %v3387
        %v3505 = vmul.f32 %v3389, %v3389
        %v3506 = vmul.f32 %v3391, %v3391
        %v3507 = vmul.f32 %v3395, %v3395
        %v3508 = vmul.f32 %v3397, %v3397
        %v3509 = vmul.f32 %v3399, %v3399
        %v3510 = vmul.f32 %v3401, %v3401
        %v3511 = vmul.f32 %v3405, %v3405
        %v3512 = vmul.f32 %v3407, %v3407
        %v3513 = vmul.f32 %v3409, %v3409
        %v3514 = vmul.f32 %v3411, %v3411
        %v3515 = vmul.f32 %v3415, %v3415
        %v3516 = vmul.f32 %v3417, %v3417
        %v3517 = vmul.f32 %v3419, %v3419
        %v3518 = vmul.f32 %v3421, %v3421
        %v3519 = vmul.f32 %v3425, %v3425
        %v3520 = vmul.f32 %v3427, %v3427
        %v3521 = vmul.f32 %v3429, %v3429
        %v3522 = vmul.f32 %v3431, %v3431
        %v3523 = vmul.f32 %v3435, %v3435
        %v3524 = vmul.f32 %v3437, %v3437
        %v3525 = vmul.f32 %v3439, %v3439
        %v3526 = vmul.f32 %v3441, %v3441
        %v3527 = vmul.f32 %v3385, %v3503
        %v3528 = vmul.f32 %v3387, %v3504
        %v3529 = vmul.f32 %v3389, %v3505
        %v3530 = vmul.f32 %v3391, %v3506
        %v3531 = vmul.f32 %v3395, %v3507
        %v3532 = vmul.f32 %v3397, %v3508
        %v3533 = vmul.f32 %v3399, %v3509
        %v3534 = vmul.f32 %v3401, %v3510
        %v3535 = vmul.f32 %v3405, %v3511
        %v3536 = vmul.f32 %v3407, %v3512
        %v3537 = vmul.f32 %v3409, %v3513
        %v3538 = vmul.f32 %v3411, %v3514
        %v3539 = vmul.f32 %v3415, %v3515
        %v3540 = vmul.f32 %v3417, %v3516
        %v3541 = vmul.f32 %v3419, %v3517
        %v3542 = vmul.f32 %v3421, %v3518
        %v3543 = vmul.f32 %v3425, %v3519
        %v3544 = vmul.f32 %v3427, %v3520
        %v3545 = vmul.f32 %v3429, %v3521
        %v3546 = vmul.f32 %v3431, %v3522
        %v3547 = vmul.f32 %v3435, %v3523
        %v3548 = vmul.f32 %v3437, %v3524
        %v3549 = vmul.f32 %v3439, %v3525
        %v3550 = vmul.f32 %v3441, %v3526
        %v3551 = vmul.f32 %v3527, 0.044715
        %v3552 = vmul.f32 %v3528, 0.044715
        %v3553 = vmul.f32 %v3529, 0.044715
        %v3554 = vmul.f32 %v3530, 0.044715
        %v3555 = vmul.f32 %v3531, 0.044715
        %v3556 = vmul.f32 %v3532, 0.044715
        %v3557 = vmul.f32 %v3533, 0.044715
        %v3558 = vmul.f32 %v3534, 0.044715
        %v3559 = vmul.f32 %v3535, 0.044715
        %v3560 = vmul.f32 %v3536, 0.044715
        %v3561 = vmul.f32 %v3537, 0.044715
        %v3562 = vmul.f32 %v3538, 0.044715
        %v3563 = vmul.f32 %v3539, 0.044715
        %v3564 = vmul.f32 %v3540, 0.044715
        %v3565 = vmul.f32 %v3541, 0.044715
        %v3566 = vmul.f32 %v3542, 0.044715
        %v3567 = vmul.f32 %v3543, 0.044715
        %v3568 = vmul.f32 %v3544, 0.044715
        %v3569 = vmul.f32 %v3545, 0.044715
        %v3570 = vmul.f32 %v3546, 0.044715
        %v3571 = vmul.f32 %v3547, 0.044715
        %v3572 = vmul.f32 %v3548, 0.044715
        %v3573 = vmul.f32 %v3549, 0.044715
        %v3574 = vmul.f32 %v3550, 0.044715
        %v3575 = vadd.f32 %v3385, %v3551
        %v3576 = vadd.f32 %v3387, %v3552
        %v3577 = vadd.f32 %v3389, %v3553
        %v3578 = vadd.f32 %v3391, %v3554
        %v3579 = vadd.f32 %v3395, %v3555
        %v3580 = vadd.f32 %v3397, %v3556
        %v3581 = vadd.f32 %v3399, %v3557
        %v3582 = vadd.f32 %v3401, %v3558
        %v3583 = vadd.f32 %v3405, %v3559
        %v3584 = vadd.f32 %v3407, %v3560
        %v3585 = vadd.f32 %v3409, %v3561
        %v3586 = vadd.f32 %v3411, %v3562
        %v3587 = vadd.f32 %v3415, %v3563
        %v3588 = vadd.f32 %v3417, %v3564
        %v3589 = vadd.f32 %v3419, %v3565
        %v3590 = vadd.f32 %v3421, %v3566
        %v3591 = vadd.f32 %v3425, %v3567
        %v3592 = vadd.f32 %v3427, %v3568
        %v3593 = vadd.f32 %v3429, %v3569
        %v3594 = vadd.f32 %v3431, %v3570
        %v3595 = vadd.f32 %v3435, %v3571
        %v3596 = vadd.f32 %v3437, %v3572
        %v3597 = vadd.f32 %v3439, %v3573
        %v3598 = vadd.f32 %v3441, %v3574
        %v3599 = vmul.f32 %v3575, 0.7978846
        %v3600 = vmul.f32 %v3576, 0.7978846
        %v3601 = vmul.f32 %v3577, 0.7978846
        %v3602 = vmul.f32 %v3578, 0.7978846
        %v3603 = vmul.f32 %v3579, 0.7978846
        %v3604 = vmul.f32 %v3580, 0.7978846
        %v3605 = vmul.f32 %v3581, 0.7978846
        %v3606 = vmul.f32 %v3582, 0.7978846
        %v3607 = vmul.f32 %v3583, 0.7978846
        %v3608 = vmul.f32 %v3584, 0.7978846
        %v3609 = vmul.f32 %v3585, 0.7978846
        %v3610 = vmul.f32 %v3586, 0.7978846
        %v3611 = vmul.f32 %v3587, 0.7978846
        %v3612 = vmul.f32 %v3588, 0.7978846
        %v3613 = vmul.f32 %v3589, 0.7978846
        %v3614 = vmul.f32 %v3590, 0.7978846
        %v3615 = vmul.f32 %v3591, 0.7978846
        %v3616 = vmul.f32 %v3592, 0.7978846
        %v3617 = vmul.f32 %v3593, 0.7978846
        %v3618 = vmul.f32 %v3594, 0.7978846
        %v3619 = vmul.f32 %v3595, 0.7978846
        %v3620 = vmul.f32 %v3596, 0.7978846
        %v3621 = vmul.f32 %v3597, 0.7978846
        %v3622 = vmul.f32 %v3598, 0.7978846
        %v3623 = vtanh.pop %v3599
        %v3624 = vtanh.pop %v3600
        %v3625 = vtanh.pop %v3601
        %v3626 = vtanh.pop %v3602
        %v3627 = vtanh.pop %v3603
        %v3628 = vtanh.pop %v3604
        %v3629 = vtanh.pop %v3605
        %v3630 = vtanh.pop %v3606
        %v3631 = vtanh.pop %v3607
        %v3632 = vtanh.pop %v3608
        %v3633 = vtanh.pop %v3609
        %v3634 = vtanh.pop %v3610
        %v3635 = vtanh.pop %v3611
        %v3636 = vtanh.pop %v3612
        %v3637 = vtanh.pop %v3613
        %v3638 = vtanh.pop %v3614
        %v3639 = vtanh.pop %v3615
        %v3640 = vtanh.pop %v3616
        %v3641 = vtanh.pop %v3617
        %v3642 = vtanh.pop %v3618
        %v3643 = vtanh.pop %v3619
        %v3644 = vtanh.pop %v3620
        %v3645 = vtanh.pop %v3621
        %v3646 = vtanh.pop %v3622
        %v3647 = vadd.f32 %v3623, 1.0
        %v3648 = vadd.f32 %v3624, 1.0
        %v3649 = vadd.f32 %v3625, 1.0
        %v3650 = vadd.f32 %v3626, 1.0
        %v3651 = vadd.f32 %v3627, 1.0
        %v3652 = vadd.f32 %v3628, 1.0
        %v3653 = vadd.f32 %v3629, 1.0
        %v3654 = vadd.f32 %v3630, 1.0
        %v3655 = vadd.f32 %v3631, 1.0
        %v3656 = vadd.f32 %v3632, 1.0
        %v3657 = vadd.f32 %v3633, 1.0
        %v3658 = vadd.f32 %v3634, 1.0
        %v3659 = vadd.f32 %v3635, 1.0
        %v3660 = vadd.f32 %v3636, 1.0
        %v3661 = vadd.f32 %v3637, 1.0
        %v3662 = vadd.f32 %v3638, 1.0
        %v3663 = vadd.f32 %v3639, 1.0
        %v3664 = vadd.f32 %v3640, 1.0
        %v3665 = vadd.f32 %v3641, 1.0
        %v3666 = vadd.f32 %v3642, 1.0
        %v3667 = vadd.f32 %v3643, 1.0
        %v3668 = vadd.f32 %v3644, 1.0
        %v3669 = vadd.f32 %v3645, 1.0
        %v3670 = vadd.f32 %v3646, 1.0
        %v3671 = vmul.f32 %v3647, 0.5
        %v3672 = vmul.f32 %v3648, 0.5
        %v3673 = vmul.f32 %v3649, 0.5
        %v3674 = vmul.f32 %v3650, 0.5
        %v3675 = vmul.f32 %v3651, 0.5
        %v3676 = vmul.f32 %v3652, 0.5
        %v3677 = vmul.f32 %v3653, 0.5
        %v3678 = vmul.f32 %v3654, 0.5
        %v3679 = vmul.f32 %v3655, 0.5
        %v3680 = vmul.f32 %v3656, 0.5
        %v3681 = vmul.f32 %v3657, 0.5
        %v3682 = vmul.f32 %v3658, 0.5
        %v3683 = vmul.f32 %v3659, 0.5
        %v3684 = vmul.f32 %v3660, 0.5
        %v3685 = vmul.f32 %v3661, 0.5
        %v3686 = vmul.f32 %v3662, 0.5
        %v3687 = vmul.f32 %v3663, 0.5
        %v3688 = vmul.f32 %v3664, 0.5
        %v3689 = vmul.f32 %v3665, 0.5
        %v3690 = vmul.f32 %v3666, 0.5
        %v3691 = vmul.f32 %v3667, 0.5
        %v3692 = vmul.f32 %v3668, 0.5
        %v3693 = vmul.f32 %v3669, 0.5
        %v3694 = vmul.f32 %v3670, 0.5
        %v3695 = vmul.f32 %v3385, %v3671
        %v3696 = vmul.f32 %v3387, %v3672
        %v3697 = vmul.f32 %v3389, %v3673
        %v3698 = vmul.f32 %v3391, %v3674
        %v3699 = vmul.f32 %v3395, %v3675
        %v3700 = vmul.f32 %v3397, %v3676
        %v3701 = vmul.f32 %v3399, %v3677
        %v3702 = vmul.f32 %v3401, %v3678
        %v3703 = vmul.f32 %v3405, %v3679
        %v3704 = vmul.f32 %v3407, %v3680
        %v3705 = vmul.f32 %v3409, %v3681
        %v3706 = vmul.f32 %v3411, %v3682
        %v3707 = vmul.f32 %v3415, %v3683
        %v3708 = vmul.f32 %v3417, %v3684
        %v3709 = vmul.f32 %v3419, %v3685
        %v3710 = vmul.f32 %v3421, %v3686
        %v3711 = vmul.f32 %v3425, %v3687
        %v3712 = vmul.f32 %v3427, %v3688
        %v3713 = vmul.f32 %v3429, %v3689
        %v3714 = vmul.f32 %v3431, %v3690
        %v3715 = vmul.f32 %v3435, %v3691
        %v3716 = vmul.f32 %v3437, %v3692
        %v3717 = vmul.f32 %v3439, %v3693
        %v3718 = vmul.f32 %v3441, %v3694
        %v3719 = vmul.f32 %v3695, %v3445
        %v3720 = vmul.f32 %v3696, %v3447
        %v3721 = vmul.f32 %v3697, %v3449
        %v3722 = vmul.f32 %v3698, %v3451
        %v3723 = vmul.f32 %v3699, %v3455
        %v3724 = vmul.f32 %v3700, %v3457
        %v3725 = vmul.f32 %v3701, %v3459
        %v3726 = vmul.f32 %v3702, %v3461
        %v3727 = vmul.f32 %v3703, %v3465
        %v3728 = vmul.f32 %v3704, %v3467
        %v3729 = vmul.f32 %v3705, %v3469
        %v3730 = vmul.f32 %v3706, %v3471
        %v3731 = vmul.f32 %v3707, %v3475
        %v3732 = vmul.f32 %v3708, %v3477
        %v3733 = vmul.f32 %v3709, %v3479
        %v3734 = vmul.f32 %v3710, %v3481
        %v3735 = vmul.f32 %v3711, %v3485
        %v3736 = vmul.f32 %v3712, %v3487
        %v3737 = vmul.f32 %v3713, %v3489
        %v3738 = vmul.f32 %v3714, %v3491
        %v3739 = vmul.f32 %v3715, %v3495
        %v3740 = vmul.f32 %v3716, %v3497
        %v3741 = vmul.f32 %v3717, %v3499
        %v3742 = vmul.f32 %v3718, %v3501
        %v3743 = vld [vmem:[%s6] sm:$0xf]
        %v3744 = vld [vmem:[%s6 + $0x4] sm:$0xf]
        %v3745 = vld [vmem:[%s6 + $0x8] sm:$0xf]
        %v3746 = vld [vmem:[%s6 + $0xc] sm:$0xf]
        %v3747 = vpack.c.bf16 %v3721, %v3719
        %v3748 = vpack.c.bf16 %v3722, %v3720
        %v3749 = vpack.c.bf16 %v3725, %v3723
        %v3750 = vpack.c.bf16 %v3726, %v3724
        %v3751 = vpack.c.bf16 %v3729, %v3727
        %v3752 = vpack.c.bf16 %v3730, %v3728
        %v3753 = vpack.c.bf16 %v3733, %v3731
        %v3754 = vpack.c.bf16 %v3734, %v3732
        %v3755 = vpack.c.bf16 %v3737, %v3735
        %v3756 = vpack.c.bf16 %v3738, %v3736
        %v3757 = vpack.c.bf16 %v3741, %v3739
        %v3758 = vpack.c.bf16 %v3742, %v3740
        %v3759 = vld [vmem:[%s7] sm:$0xff]
        %v3760 = vld [vmem:[%s7 + $0x8] sm:$0xff]
        %v3761 = vld [vmem:[%s7 + $0x10] sm:$0xff]
        %v3762 = vld [vmem:[%s7 + $0x18] sm:$0xff]
        %3764 = vset.pattern.permute.xlu0 0
        %3765 = vperm.xlu0 %3764, %v3759
        %v3766 = vpop.permute.xlu0 %3765
        %3769 = vset.pattern.permute.xlu0 0
        %3770 = vperm.xlu0 %3769, %v3760
        %v3771 = vpop.permute.xlu0 %3770
        %3774 = vset.pattern.permute.xlu0 0
        %3775 = vperm.xlu0 %3774, %v3761
        %v3776 = vpop.permute.xlu0 %3775
        %3779 = vset.pattern.permute.xlu0 0
        %3780 = vperm.xlu0 %3779, %v3762
        %v3781 = vpop.permute.xlu0 %3780
        %v3787 = vunpack.c.l.b16 %v3743
        %v3788 = vunpack.c.l.b16 %v3744
        %v3789 = vunpack.c.l.b16 %v3745
        %v3790 = vunpack.c.l.b16 %v3746
        %v3791 = vpack.c.b16 %v3788, %v3787
        %v3792 = vpack.c.b16 %v3790, %v3789
        %v3794 = vsel %vm2707, %v3791, 0
        %v3797 = vsel %vm2707, %v3792, 0
        %3799 = vmatprep.subr.bf16.mxu0 %v3748
        %3800 = vmatpush1.bf16.msra.mxu0 %v3747
        %3801 = vmatprep.subr.bf16.mxu0 %v3750
        %3802 = vmatpush1.bf16.msra.mxu0 %v3749
        %3803 = vmatprep.subr.bf16.mxu0 %v3752
        %3804 = vmatpush1.bf16.msra.mxu0 %v3751
        %3805 = vmatprep.subr.bf16.mxu0 %v3754
        %3806 = vmatpush1.bf16.msra.mxu0 %v3753
        %3807 = vmatprep.subr.bf16.mxu0 %v3756
        %3808 = vmatpush1.bf16.msra.mxu0 %v3755
        %3809 = vmatprep.subr.bf16.mxu0 %v3758
        %3810 = vmatpush1.bf16.msra.mxu0 %v3757
        %3811 = vmatprep.subr.bf16.mxu0 0
        %3812 = vmatpush1.bf16.msra.mxu0 0
        %3813 = vmatprep.subr.bf16.mxu0 0
        %3814 = vmatpush1.bf16.msra.mxu0 0
        %3815 = vmatprep.subr.bf16.mxu0 0
        %3816 = vmatpush1.bf16.msra.mxu0 0
        %3817 = vmatprep.subr.bf16.mxu0 0
        %3818 = vmatpush1.bf16.msra.mxu0 0
        %3819 = vmatprep.subr.bf16.mxu0 0
        %3820 = vmatpush1.bf16.msra.mxu0 0
        %3821 = vmatprep.subr.bf16.mxu0 0
        %3822 = vmatpush1.bf16.msra.mxu0 0
        %3823 = vmatprep.subr.bf16.mxu0 0
        %3824 = vmatpush1.bf16.msra.mxu0 0
        %3825 = vmatprep.subr.bf16.mxu0 0
        %3826 = vmatpush1.bf16.msra.mxu0 0
        %3827 = vmatprep.subr.bf16.mxu0 0
        %3828 = vmatpush1.bf16.msra.mxu0 0
        %3829 = vmatprep.subr.bf16.mxu0 0
        %3830 = vmatpush1.bf16.msra.mxu0 0
        %3831 = vmatprep.mubr.bf16.mxu0 0
        %3832 = vmatmul.mubr.bf16.gmra.mrb[0].mxu0 %v3794
        %v3833 = vpop.f32.mrb[0].mxu0
        %v3834 = vadd.f32 %v3766, %v3833
        %v3835 = vpop.f32.mrb[0].mxu0
        %v3836 = vadd.f32 %v3766, %v3835
        %v3837 = vpop.f32.mrb[0].mxu0
        %v3838 = vadd.f32 %v3771, %v3837
        %v3839 = vpop.f32.mrb[0].mxu0
        %v3840 = vadd.f32 %v3771, %v3839
        %3841 = vmatprep.mubr.bf16.mxu0 0
        %3842 = vmatmul.mubr.bf16.gmra.mrb[0].mxu0 %v3797
        %v3843 = vpop.f32.mrb[0].mxu0
        %v3844 = vadd.f32 %v3776, %v3843
        %v3845 = vpop.f32.mrb[0].mxu0
        %v3846 = vadd.f32 %v3776, %v3845
        %v3847 = vpop.f32.mrb[0].mxu0
        %v3848 = vadd.f32 %v3781, %v3847
        %v3849 = vpop.f32.mrb[0].mxu0
        %v3850 = vadd.f32 %v3781, %v3849
        %3851 = vdwg.mxu0
        %v3852 = vmul.f32 %v305, %v3834
        %v3853 = vmul.f32 %v306, %v3836
        %v3854 = vmul.f32 %v307, %v3838
        %v3855 = vmul.f32 %v308, %v3840
        %v3856 = vmul.f32 %v309, %v3844
        %v3857 = vmul.f32 %v310, %v3846
        %v3858 = vmul.f32 %v311, %v3848
        %v3859 = vmul.f32 %v312, %v3850
        %v3860 = vadd.f32 %v3852, %v305
        %v3861 = vadd.f32 %v3853, %v306
        %v3862 = vadd.f32 %v3854, %v307
        %v3863 = vadd.f32 %v3855, %v308
        %v3864 = vadd.f32 %v3856, %v309
        %v3865 = vadd.f32 %v3857, %v310
        %v3866 = vadd.f32 %v3858, %v311
        %v3867 = vadd.f32 %v3859, %v312
        %3868 = vst [vmem:[%s298] sm:$0xff] %v3860
        %3869 = vst [vmem:[%s298 + $0x8] sm:$0xff] %v3861
        %3870 = vst [vmem:[%s298 + $0x10] sm:$0xff] %v3862
        %3871 = vst [vmem:[%s298 + $0x18] sm:$0xff] %v3863
        %3872 = vst [vmem:[%s298 + $0x20] sm:$0xff] %v3864
        %3873 = vst [vmem:[%s298 + $0x28] sm:$0xff] %v3865
        %3874 = vst [vmem:[%s298 + $0x30] sm:$0xff] %v3866
        %3875 = vst [vmem:[%s298 + $0x38] sm:$0xff] %v3867
        %s3876 = sand.u32 %s203, 1
        %s3877 = scalar_lea.sflag [#allocation4], %s3876
        %s3878 = sand.u32 %s203, 1
        %s3879 = smul.addr %s3878, 64
        %s3880 = scalar_lea.vmem [#allocation3], %s3879
        // Predicated region
        $region53: #{tpu_custom_call.1} parent=51 // pred_check
          %p3881 = pneg %p213
        $region54: #{tpu_custom_call.1} parent=51 // pred_check_branch
          %3883 = sbr.rel (%p3881) target = $region56
        $region55: #{tpu_custom_call.1} parent=51 // pred_region
          %s3885 = ssub.s32 1024, 1024
          %3886 = vsyncadd %s3877, %s3885
          %s3887 = smul.addr %s22, 8
          %s3888 = smul.addr %s3887, 128
          %s3889 = scalar_lea.hbm %s8, %s3888
          %s3890 = sshll.u32 %s3880, 4
          %s3891 = int_to_ptr.vmem [resolvable:$true] %s3890
          %3896 = dma.vmem_to_hbm [thread:$0]  %s3891, 1024, %s3889, %s3877, 256, 256, 16
        $region56: #{tpu_custom_call.1} parent=51 // pred_fallthru
          _
      $region52: #{tpu_custom_call.1} parent=5 // pred_fallthru
        _
      %p3897 = scmp.le.s32.totalorder 2, %s17
      // Predicated region
      $region57: #{tpu_custom_call.1} parent=5 // pred_check
        %p3898 = pneg %p3897
      $region58: #{tpu_custom_call.1} parent=5 // pred_check_branch
        %3900 = sbr.rel (%p3898) target = $region60
      $region59: #{tpu_custom_call.1} parent=5 // pred_region
        %s3901 = ssub.s32 %s17, 2
        // Predicated region
        $region61: #{tpu_custom_call.1} parent=59 // pred_check
          %p3902 = pneg %p219
        $region62: #{tpu_custom_call.1} parent=59 // pred_check_branch
          %3904 = sbr.rel (%p3902) target = $region64
        $region63: #{tpu_custom_call.1} parent=59 // pred_region
          %s3905 = sand.u32 %s204, 1
          %s3906 = scalar_lea.sflag [#allocation4], %s3905
          %s3907 = sand.u32 %s204, 1
          %s3908 = smul.addr %s3907, 64
          %s3909 = scalar_lea.vmem [#allocation3], %s3908
          %3910 = dma.done %s3906, 1024
        $region64: #{tpu_custom_call.1} parent=59 // pred_fallthru
          _
      $region60: #{tpu_custom_call.1} parent=5 // pred_fallthru
        _
    $region6: #{tpu_custom_call.1} parent=1 // loop_footer
      %s21 = sadd.s32 1, %s17
    $region7: #{tpu_custom_call.1} parent=1 // loop_footer_branch
      %16 = sbr.rel target = $region3
    $region8: #{tpu_custom_call.1} parent=1 // loop_exit
      _
    %3911 = vsyncpa [#allocation4], 1
    %s3912 = scalar_lea.sflag [#allocation4], 1
    %3913 = vsyncpa %s3912, 1

</llo_original>
